<compile_context>
chip_gen: v6e
topology: v6e:2x2x1
jax: 0.10.0
libtpu: 0.0.40
codegen_flags: <defaults>
</compile_context>

<pallas_src>
import functools
import math

import jax
import jax.numpy as jnp
from jax.experimental import pallas as pl
from jax.experimental.pallas import tpu as pltpu

LANE = 128
VMEM_LIMIT = 64 * 1024 * 1024


def _round_up(v, m):
    return ((v + m - 1) // m) * m


def _apply_act(y, act, valid_n):
    """Activation codes match the PyTorch module. y is f32, last axis = features."""
    if act == 0:
        return y
    if act == 1:
        return jnp.maximum(y, 0.0)                                   # F.relu
    if act == 2:
        return jax.nn.sigmoid(y)                                     # torch.sigmoid
    if act == 3:
        return jnp.tanh(y)                                           # torch.tanh
    if act == 4:
        return jnp.where(y > 0, y, 0.2 * y)                          # F.leaky_relu(0.2)
    if act == 6:
        return jnp.where(y > 0, y, jnp.exp(jnp.minimum(y, 0.0)) - 1.0)   # F.elu
    if act == 7:
        # softmax over the feature/channel axis; padded lanes masked out of the sum.
        lanes = y.shape[-1]
        masked = valid_n is not None and valid_n < lanes
        if masked:
            lane_id = jax.lax.broadcasted_iota(jnp.int32, y.shape, y.ndim - 1)
            y = jnp.where(lane_id < valid_n, y, -1e30)
        m = jnp.max(y, axis=-1, keepdims=True)
        e = jnp.exp(y - m)
        s = jnp.sum(e, axis=-1, keepdims=True)
        out = e / s
        if masked:
            out = jnp.where(lane_id < valid_n, out, 0.0)
        return out
    # TODO(synk): act == 5 is F.prelu(x) with no weight, which raises in PyTorch too;
    # it is not supported here.
    raise NotImplementedError(f"activation code {act} is not supported")


def _zero_pad_value(y, pad_cfg):
    """nn.ZeroPad2d on an in-register [H, W, C] value (no scratch, no masked stores)."""
    if pad_cfg is None:
        return y
    left, right, top, bottom = pad_cfg
    H, W, C = y.shape
    dt = y.dtype
    if left or right:
        parts = []
        if left:
            parts.append(jnp.zeros((H, left, C), dt))
        parts.append(y)
        if right:
            parts.append(jnp.zeros((H, right, C), dt))
        y = jnp.concatenate(parts, axis=1)
    if top or bottom:
        W2 = y.shape[1]
        parts = []
        if top:
            parts.append(jnp.zeros((top, W2, C), dt))
        parts.append(y)
        if bottom:
            parts.append(jnp.zeros((bottom, W2, C), dt))
        y = jnp.concatenate(parts, axis=0)
    return y


def _max_pool_value(y, pool_cfg):
    """nn.MaxPool2d on an in-register [H, W, C] value.

    Non-overlapping windows (stride == kernel, the common case) use crop+reshape+max;
    overlapping windows fall back to strided value slices.
    """
    if pool_cfg is None:
        return y
    pL, pW, sL, sW = pool_cfg
    HP, WP, C = y.shape
    PH = (HP - pL) // sL + 1
    PW = (WP - pW) // sW + 1

    # --- pool along H (leading, non-tiled axis) ---
    if sL == pL:
        y = y[:PH * pL].reshape(PH, pL, WP, C)
        y = jnp.max(y, axis=1)
    else:
        acc = None
        for i in range(pL):
            p = jax.lax.slice(y, (i, 0, 0), (i + sL * (PH - 1) + 1, WP, C), (sL, 1, 1))
            acc = p if acc is None else jnp.maximum(acc, p)
        y = acc

    # --- pool along W ---
    if sW == pW:
        y = y[:, :PW * pW, :].reshape(PH, PW, pW, C)
        y = jnp.max(y, axis=2)
    else:
        # TODO(synk): overlapping-window W pooling uses a strided slice along the
        # sublane axis; switch to ref-level strided reads if Mosaic rejects it.
        acc = None
        for j in range(pW):
            p = jax.lax.slice(y, (0, j, 0), (PH, j + sW * (PW - 1) + 1, C), (1, sW, 1))
            acc = p if acc is None else jnp.maximum(acc, p)
        y = acc
    return y


# ----------------------------------------------------------------------------
# Fused conv layer kernel: im2col conv + bias + activation + ZeroPad2d + MaxPool2d
# ----------------------------------------------------------------------------
def _conv_layer_kernel(x_ref, w_ref, b_ref, o_ref, *,
                       KH, KW, sh, sw, OH, OW, act, pad_cfg, pool_cfg, compute_dtype):
    Cin = x_ref.shape[-1]
    OC = b_ref.shape[-1]
    xv = x_ref[...][0]                                   # [H, W, Cin] value

    # im2col slab with the KH*KW taps folded into the contraction dim:
    # one [OH*OW, KH*KW*Cin] @ [KH*KW*Cin, OC] MXU dot per (batch, layer).
    parts = []
    for kh in range(KH):
        for kw in range(KW):
            seg = jax.lax.slice(
                xv, (kh, kw, 0),
                (kh + sh * (OH - 1) + 1, kw + sw * (OW - 1) + 1, Cin),
                (sh, sw, 1))                             # [OH, OW, Cin]
            parts.append(seg)
    slab = parts[0] if len(parts) == 1 else jnp.concatenate(parts, axis=-1)
    slab = slab.reshape(OH * OW, KH * KW * Cin).astype(compute_dtype)

    y = jnp.dot(slab, w_ref[...], preferred_element_type=jnp.float32)   # [OH*OW, OC] f32
    y = _apply_act(y + b_ref[...], act, OC)
    y = y.reshape(OH, OW, OC)

    y = _zero_pad_value(y, pad_cfg)      # nn.ZeroPad2d (border zeros join the max)
    y = _max_pool_value(y, pool_cfg)     # nn.MaxPool2d

    o_ref[...] = y[None].astype(o_ref.dtype)             # one bulk store per grid step


def _conv_layer_call(x, w, b, *, KH, KW, stride, act, pad_cfg, pool_cfg):
    """x: [N, H, W, Cin] (channels-last, real C), w: [KH*KW*Cin, OC], b: [1, OC]."""
    N, H, W_, Cin = (int(d) for d in x.shape)
    sh, sw = stride
    OH, OW = (H - KH) // sh + 1, (W_ - KW) // sw + 1
    OC = int(w.shape[-1])
    if pad_cfg is not None:
        left, right, top, bottom = pad_cfg
    else:
        left = right = top = bottom = 0
    HP, WP = OH + top + bottom, OW + left + right
    if pool_cfg is not None:
        pL, pW, sL, sW = pool_cfg
        FH, FW = (HP - pL) // sL + 1, (WP - pW) // sW + 1
    else:
        FH, FW = HP, WP

    kern = functools.partial(_conv_layer_kernel, KH=KH, KW=KW, sh=sh, sw=sw,
                             OH=OH, OW=OW, act=act, pad_cfg=pad_cfg,
                             pool_cfg=pool_cfg, compute_dtype=x.dtype)

    flops = 2 * N * OH * OW * KH * KW * Cin * OC
    transc = N * OH * OW * OC if act in (2, 3, 6, 7) else 0
    bytes_accessed = (int(x.size) * x.dtype.itemsize + int(w.size) * w.dtype.itemsize
                      + int(b.size) * b.dtype.itemsize
                      + N * FH * FW * OC * x.dtype.itemsize)

    # TODO(synk): for large images, add an output-row-block grid axis (parallel) so
    # the per-step block stays small and v7x gets a second parallel axis.
    return pl.pallas_call(
        kern,
        out_shape=jax.ShapeDtypeStruct((N, FH, FW, OC), x.dtype),
        grid=(N,),
        in_specs=[
            pl.BlockSpec((1, H, W_, Cin), lambda n: (n, 0, 0, 0)),
            pl.BlockSpec((int(w.shape[0]), OC), lambda n: (0, 0)),
            pl.BlockSpec((1, OC), lambda n: (0, 0)),
        ],
        out_specs=pl.BlockSpec((1, FH, FW, OC), lambda n: (n, 0, 0, 0)),
        compiler_params=pltpu.CompilerParams(
            dimension_semantics=("parallel",),
            vmem_limit_bytes=VMEM_LIMIT,
        ),
        cost_estimate=pl.CostEstimate(flops=int(flops), transcendentals=int(transc),
                                      bytes_accessed=int(bytes_accessed)),
    )(x, w, b)


# ----------------------------------------------------------------------------
# Fused FC stack kernel: all Linear layers + activations in one call
# ----------------------------------------------------------------------------
def _fc_stack_kernel(*refs, acts, valid_ns, compute_dtype):
    x_ref = refs[0]
    o_ref = refs[-1]
    h = x_ref[...]
    for li, (act, vn) in enumerate(zip(acts, valid_ns)):
        w = refs[1 + 2 * li][...]
        b = refs[2 + 2 * li][...]
        y = jnp.dot(h.astype(compute_dtype), w,
                    preferred_element_type=jnp.float32) + b
        h = _apply_act(y, act, vn)
    o_ref[...] = h.astype(o_ref.dtype)


def _fc_stack_call(x, weights, biases, acts, valid_ns):
    B, F0 = (int(d) for d in x.shape)
    Flast = int(weights[-1].shape[-1])
    # For tiny batches one block; for big batches tile M in 512-row chunks
    # (multiple of the 256-wide v6e/v7x MXU).
    TM = B if B <= 512 else 512

    kern = functools.partial(_fc_stack_kernel, acts=tuple(acts),
                             valid_ns=tuple(valid_ns), compute_dtype=x.dtype)
    in_specs = [pl.BlockSpec((TM, F0), lambda m: (m, 0))]
    operands = [x]
    for w, b in zip(weights, biases):
        in_specs.append(pl.BlockSpec(tuple(int(d) for d in w.shape), lambda m: (0, 0)))
        in_specs.append(pl.BlockSpec(tuple(int(d) for d in b.shape), lambda m: (0, 0)))
        operands.extend([w, b])

    flops = 2 * B * sum(int(w.shape[0]) * int(w.shape[1]) for w in weights)
    transc = sum(B * int(w.shape[1]) for w, a in zip(weights, acts) if a in (2, 3, 6, 7))
    bytes_accessed = (sum(int(o.size) * o.dtype.itemsize for o in operands)
                      + B * Flast * 4)

    return pl.pallas_call(
        kern,
        out_shape=jax.ShapeDtypeStruct((B, Flast), jnp.float32),
        grid=(pl.cdiv(B, TM),),
        in_specs=in_specs,
        out_specs=pl.BlockSpec((TM, Flast), lambda m: (m, 0)),
        compiler_params=pltpu.CompilerParams(
            dimension_semantics=("parallel",),
            vmem_limit_bytes=VMEM_LIMIT,
        ),
        cost_estimate=pl.CostEstimate(flops=int(flops), transcendentals=int(transc),
                                      bytes_accessed=int(bytes_accessed)),
    )(*operands)


# ----------------------------------------------------------------------------
# JAX/Pallas replica of ReplicaConvolutionalNetwork
# ----------------------------------------------------------------------------
class ReplicaConvolutionalNetwork:
    def __init__(self, seed=0, compute_dtype=jnp.bfloat16):
        self.compute_dtype = compute_dtype
        self.conv_layers = []
        self.fc_layers = []
        self._key = jax.random.PRNGKey(seed)
        # TODO(synk): nn.Dropout is stochastic in training mode; all layers in the demo
        # use dropoutrate=0.0, so dropout is the identity here.

    def _split(self):
        self._key, k = jax.random.split(self._key)
        return k

    def add_conv_layer(self, in_channels, out_channels, kernel_size_L, kernel_size_W,
                       conv_stride_L, conv_stride_W, pooling_size_L, pooling_size_W,
                       padding_size_L, padding_size_W, pool_stride_L, pool_stride_W,
                       dropoutrate, acti_func, padding_left, padding_top,
                       add_pooling=True, add_padding=True):
        # nn.Conv2d default init: U(-1/sqrt(fan_in), 1/sqrt(fan_in)).
        fan_in = in_channels * kernel_size_L * kernel_size_W
        bound = 1.0 / math.sqrt(fan_in)
        w = jax.random.uniform(self._split(),
                               (out_channels, in_channels, kernel_size_L, kernel_size_W),
                               jnp.float32, -bound, bound)
        b = jax.random.uniform(self._split(), (out_channels,), jnp.float32, -bound, bound)

        # Pack [OC, Cin, KH, KW] -> [KH*KW*Cin, OC] so the taps fold into the MXU
        # contraction dim (matches the in-kernel im2col slab ordering).  Real (unpadded)
        # channel counts everywhere.
        wk = jnp.transpose(w, (2, 3, 1, 0)).reshape(
            kernel_size_L * kernel_size_W * in_channels, out_channels
        ).astype(self.compute_dtype)
        bk = b.reshape(1, out_channels).astype(jnp.float32)

        pool = ((pooling_size_L, pooling_size_W, pool_stride_L, pool_stride_W)
                if add_pooling else None)
        # nn.ZeroPad2d((left, right, top, bottom)) argument order of the module.
        pad = ((padding_left, padding_size_L, padding_top, padding_size_W)
               if add_padding else None)
        self.conv_layers.append(dict(
            w=wk, b=bk, stride=(conv_stride_L, conv_stride_W),
            KH=kernel_size_L, KW=kernel_size_W,
            in_channels=in_channels, out_channels=out_channels,
            act=acti_func, pool=pool, pad=pad))

    def add_fc_layer(self, in_features, out_features, dropoutrate, act_func=1):
        bound = 1.0 / math.sqrt(in_features)
        w = jax.random.uniform(self._split(), (out_features, in_features),
                               jnp.float32, -bound, bound)
        b = jax.random.uniform(self._split(), (out_features,), jnp.float32, -bound, bound)
        in_p = _round_up(in_features, LANE)
        out_p = _round_up(out_features, LANE)
        # Pre-transposed ([in, out]) and zero-padded to lane-dense widths at init time.
        wk = (jnp.zeros((in_p, out_p), jnp.float32)
              .at[:in_features, :out_features].set(w.T)).astype(self.compute_dtype)
        bk = jnp.zeros((1, out_p), jnp.float32).at[0, :out_features].set(b)
        self.fc_layers.append(dict(w=wk, b=bk, in_features=in_features,
                                   out_features=out_features, act=act_func))

    def forward(self, x):
        x = jnp.asarray(x, jnp.float32)                  # NCHW, like the PyTorch module
        N = int(x.shape[0])
        # Single layout conversion: NCHW -> channels-last NHWC (real channel count).
        h = jnp.transpose(x, (0, 2, 3, 1)).astype(self.compute_dtype)
        cur_c = int(x.shape[1])

        convShapes = {}
        count = 0
        for layer in self.conv_layers:
            convlayers = {}
            H, W_ = int(h.shape[1]), int(h.shape[2])
            convlayers[0] = [cur_c, H, W_]
            KH, KW = layer["KH"], layer["KW"]
            sh, sw = layer["stride"]
            OH, OW = (H - KH) // sh + 1, (W_ - KW) // sw + 1
            h = _conv_layer_call(h, layer["w"], layer["b"], KH=KH, KW=KW,
                                 stride=(sh, sw), act=layer["act"],
                                 pad_cfg=layer["pad"], pool_cfg=layer["pool"])
            cur_c = layer["out_channels"]
            convlayers[1] = [cur_c, OH, OW]
            if layer["pad"] is not None:
                left, right, top, bottom = layer["pad"]
                HP, WP = OH + top + bottom, OW + left + right
            else:
                HP, WP = OH, OW
            convlayers[2] = [cur_c, HP, WP]
            if layer["pool"] is not None:
                pL, pW, sL, sW = layer["pool"]
                FH, FW = (HP - pL) // sL + 1, (WP - pW) // sW + 1
            else:
                FH, FW = HP, WP
            convlayers[3] = [cur_c, FH, FW]
            count += 1
            convShapes[count] = convlayers

        # Flatten once in PyTorch NCHW order before the FC stack.
        FH, FW = int(h.shape[1]), int(h.shape[2])
        feat = cur_c * FH * FW
        flat = jnp.transpose(h, (0, 3, 1, 2)).reshape(N, feat)

        fullShapes = {}
        if not self.fc_layers:
            return flat.astype(jnp.float32), convShapes, fullShapes

        feat_p = _round_up(feat, LANE)
        if feat_p != feat:
            flat = jnp.zeros((N, feat_p), self.compute_dtype).at[:, :feat].set(flat)
        else:
            flat = flat.astype(self.compute_dtype)

        out = _fc_stack_call(flat,
                             [l["w"] for l in self.fc_layers],
                             [l["b"] for l in self.fc_layers],
                             [l["act"] for l in self.fc_layers],
                             [l["out_features"] for l in self.fc_layers])

        prev = feat
        for i, l in enumerate(self.fc_layers):
            fullShapes[i + 1] = {0: prev, 1: l["out_features"]}
            prev = l["out_features"]
        x_out = out[:, :self.fc_layers[-1]["out_features"]]
        return x_out, convShapes, fullShapes


# ----------------------------------------------------------------------------
# Pure-JAX (XLA) reference for a loose numerical sanity check in the demo.
# ----------------------------------------------------------------------------
def _act_ref(y, act, axis=-1):
    if act == 0:
        return y
    if act == 1:
        return jnp.maximum(y, 0.0)
    if act == 2:
        return jax.nn.sigmoid(y)
    if act == 3:
        return jnp.tanh(y)
    if act == 4:
        return jnp.where(y > 0, y, 0.2 * y)
    if act == 6:
        return jnp.where(y > 0, y, jnp.exp(jnp.minimum(y, 0.0)) - 1.0)
    if act == 7:
        return jax.nn.softmax(y, axis=axis)
    raise NotImplementedError


def _reference_forward(net, x):
    h = jnp.asarray(x, jnp.float32)
    for layer in net.conv_layers:
        KH, KW = layer["KH"], layer["KW"]
        Cin, OC = layer["in_channels"], layer["out_channels"]
        w4 = layer["w"].astype(jnp.float32).reshape(KH, KW, Cin, OC).transpose(3, 2, 0, 1)
        h = jax.lax.conv_general_dilated(h, w4, layer["stride"], "VALID",
                                         dimension_numbers=("NCHW", "OIHW", "NCHW"))
        h = h + layer["b"].astype(jnp.float32).reshape(1, OC, 1, 1)
        h = _act_ref(h, layer["act"], axis=1)
        if layer["pad"] is not None:
            l, r, t, bm = layer["pad"]
            h = jnp.pad(h, ((0, 0), (0, 0), (t, bm), (l, r)))
        if layer["pool"] is not None:
            pL, pW, sL, sW = layer["pool"]
            h = jax.lax.reduce_window(h, -jnp.inf, jax.lax.max,
                                      (1, 1, pL, pW), (1, 1, sL, sW), "VALID")
    h = h.reshape(h.shape[0], -1)
    for fc in net.fc_layers:
        w = fc["w"].astype(jnp.float32)[:fc["in_features"], :fc["out_features"]]
        b = fc["b"][0, :fc["out_features"]]
        h = _act_ref(h @ w + b, fc["act"], axis=-1)
    return h


if __name__ == "__main__":
    key = jax.random.PRNGKey(0)
    x = jax.random.normal(key, (2, 4, 16, 16), jnp.float32)  # NCHW

    net = ReplicaConvolutionalNetwork(seed=0)
    # conv1: 4->8, 3x3, stride 1, relu, ZeroPad2d(1,1,1,1), MaxPool 2x2/2
    net.add_conv_layer(4, 8, 3, 3, 1, 1, 2, 2, 1, 1, 2, 2,
                       dropoutrate=0.0, acti_func=1, padding_left=1, padding_top=1)
    # conv2: 8->16, 3x3, stride 1, tanh, ZeroPad2d(1,1,1,1), MaxPool 2x2/2
    net.add_conv_layer(8, 16, 3, 3, 1, 1, 2, 2, 1, 1, 2, 2,
                       dropoutrate=0.0, acti_func=3, padding_left=1, padding_top=1)
    # fc1: 16*4*4 -> 64 (relu), fc2: 64 -> 10 (softmax over dim=1)
    net.add_fc_layer(16 * 4 * 4, 64, dropoutrate=0.0, act_func=1)
    net.add_fc_layer(64, 10, dropoutrate=0.0, act_func=7)

    out, convShapes, fullShapes = net.forward(x)
    out = jax.block_until_ready(out)
    assert out.shape == (2, 10)
    assert convShapes is not None and fullShapes is not None
    # Sanity 1: final layer is a softmax -> rows sum to ~1.
    assert bool(jnp.all(jnp.abs(jnp.sum(out, axis=1) - 1.0) < 1e-2))
    # Sanity 2: loose match against an f32 XLA reference (bf16 activations/MXU cause
    # small drift, so the tolerance is generous).
    ref = jax.block_until_ready(_reference_forward(net, x))
    assert bool(jnp.max(jnp.abs(out - ref)) < 3e-2)
    print("KERNEL_OK")
</pallas_src>

<mosaic_0001>
module attributes {stable_mosaic.version = 11 : i64} {
  func.func @_conv_layer_kernel(%arg0: i32, %arg1: memref<1x16x16x4xbf16, #tpu.memory_space<vmem>>, %arg2: memref<36x8xbf16, #tpu.memory_space<vmem>>, %arg3: memref<1x8xf32, #tpu.memory_space<vmem>>, %arg4: memref<1x8x8x8xbf16, #tpu.memory_space<vmem>>) attributes {dimension_semantics = [#tpu.dimension_semantics<parallel>], iteration_bounds = array<i64: 2>, scalar_prefetch = 0 : i64, scratch_operands = 0 : i64, tpu.core_type = #tpu.core_type<tc>, window_params = [{transform_indices = @transform_0, window_bounds = array<i64: 1, 16, 16, 4>}, {pipeline_mode = #tpu.pipeline_mode<synchronous>, transform_indices = @transform_1, window_bounds = array<i64: 36, 8>}, {pipeline_mode = #tpu.pipeline_mode<synchronous>, transform_indices = @transform_2, window_bounds = array<i64: 1, 8>}, {transform_indices = @transform_3, window_bounds = array<i64: 1, 8, 8, 8>}]} {
    %c0 = arith.constant 0 : index
    %c0_0 = arith.constant 0 : index
    %c0_1 = arith.constant 0 : index
    %c0_2 = arith.constant 0 : index
    %0 = vector.load %arg1[%c0, %c0_0, %c0_1, %c0_2] : memref<1x16x16x4xbf16, #tpu.memory_space<vmem>>, vector<1x16x16x4xbf16>
    %1 = vector.shape_cast %0 : vector<1x16x16x4xbf16> to vector<16x16x4xbf16>
    %2 = vector.extract_strided_slice %1 {offsets = [0, 0, 0], sizes = [14, 14, 4], strides = [1, 1, 1]} : vector<16x16x4xbf16> to vector<14x14x4xbf16>
    %3 = vector.extract_strided_slice %1 {offsets = [0, 1, 0], sizes = [14, 14, 4], strides = [1, 1, 1]} : vector<16x16x4xbf16> to vector<14x14x4xbf16>
    %4 = vector.extract_strided_slice %1 {offsets = [0, 2, 0], sizes = [14, 14, 4], strides = [1, 1, 1]} : vector<16x16x4xbf16> to vector<14x14x4xbf16>
    %5 = vector.extract_strided_slice %1 {offsets = [1, 0, 0], sizes = [14, 14, 4], strides = [1, 1, 1]} : vector<16x16x4xbf16> to vector<14x14x4xbf16>
    %6 = vector.extract_strided_slice %1 {offsets = [1, 1, 0], sizes = [14, 14, 4], strides = [1, 1, 1]} : vector<16x16x4xbf16> to vector<14x14x4xbf16>
    %7 = vector.extract_strided_slice %1 {offsets = [1, 2, 0], sizes = [14, 14, 4], strides = [1, 1, 1]} : vector<16x16x4xbf16> to vector<14x14x4xbf16>
    %8 = vector.extract_strided_slice %1 {offsets = [2, 0, 0], sizes = [14, 14, 4], strides = [1, 1, 1]} : vector<16x16x4xbf16> to vector<14x14x4xbf16>
    %9 = vector.extract_strided_slice %1 {offsets = [2, 1, 0], sizes = [14, 14, 4], strides = [1, 1, 1]} : vector<16x16x4xbf16> to vector<14x14x4xbf16>
    %10 = vector.extract_strided_slice %1 {offsets = [2, 2, 0], sizes = [14, 14, 4], strides = [1, 1, 1]} : vector<16x16x4xbf16> to vector<14x14x4xbf16>
    %11 = tpu.concatenate %2, %3, %4, %5, %6, %7, %8, %9, %10 in 2 : vector<14x14x4xbf16>, vector<14x14x4xbf16>, vector<14x14x4xbf16>, vector<14x14x4xbf16>, vector<14x14x4xbf16>, vector<14x14x4xbf16>, vector<14x14x4xbf16>, vector<14x14x4xbf16>, vector<14x14x4xbf16> -> vector<14x14x36xbf16>
    %12 = vector.shape_cast %11 : vector<14x14x36xbf16> to vector<196x36xbf16>
    %c0_3 = arith.constant 0 : index
    %c0_4 = arith.constant 0 : index
    %13 = vector.load %arg2[%c0_3, %c0_4] : memref<36x8xbf16, #tpu.memory_space<vmem>>, vector<36x8xbf16>
    %cst = arith.constant dense<0.000000e+00> : vector<196x8xf32>
    %14 = tpu.matmul %12, %13, %cst {dimension_numbers = #tpu.dot_dimension_numbers<[1], [0], [0], [1], [0, 0, 1, 1], [], []>} : vector<196x36xbf16>, vector<36x8xbf16>, vector<196x8xf32> -> vector<196x8xf32>
    %c0_5 = arith.constant 0 : index
    %c0_6 = arith.constant 0 : index
    %15 = vector.load %arg3[%c0_5, %c0_6] : memref<1x8xf32, #tpu.memory_space<vmem>>, vector<1x8xf32>
    %16 = vector.broadcast %15 : vector<1x8xf32> to vector<196x8xf32>
    %17 = arith.addf %14, %16 : vector<196x8xf32>
    %cst_7 = arith.constant 0.000000e+00 : f32
    %18 = vector.broadcast %cst_7 : f32 to vector<196x8xf32>
    %19 = arith.maximumf %17, %18 : vector<196x8xf32>
    %20 = vector.shape_cast %19 : vector<196x8xf32> to vector<14x14x8xf32>
    %cst_8 = arith.constant 0.000000e+00 : f32
    %21 = vector.broadcast %cst_8 : f32 to vector<14x1x8xf32>
    %cst_9 = arith.constant 0.000000e+00 : f32
    %22 = vector.broadcast %cst_9 : f32 to vector<14x1x8xf32>
    %23 = tpu.concatenate %21, %20, %22 in 1 : vector<14x1x8xf32>, vector<14x14x8xf32>, vector<14x1x8xf32> -> vector<14x16x8xf32>
    %cst_10 = arith.constant 0.000000e+00 : f32
    %24 = vector.broadcast %cst_10 : f32 to vector<1x16x8xf32>
    %cst_11 = arith.constant 0.000000e+00 : f32
    %25 = vector.broadcast %cst_11 : f32 to vector<1x16x8xf32>
    %26 = tpu.concatenate %24, %23, %25 in 0 : vector<1x16x8xf32>, vector<14x16x8xf32>, vector<1x16x8xf32> -> vector<16x16x8xf32>
    %27 = vector.shape_cast %26 : vector<16x16x8xf32> to vector<8x2x16x8xf32>
    %cst_12 = arith.constant dense<0xFF800000> : vector<8x16x8xf32>
    %28 = vector.multi_reduction <maximumf>, %27, %cst_12 [1] : vector<8x2x16x8xf32> to vector<8x16x8xf32>
    %29 = vector.shape_cast %28 : vector<8x16x8xf32> to vector<8x8x2x8xf32>
    %cst_13 = arith.constant dense<0xFF800000> : vector<8x8x8xf32>
    %30 = vector.multi_reduction <maximumf>, %29, %cst_13 [2] : vector<8x8x2x8xf32> to vector<8x8x8xf32>
    %31 = vector.shape_cast %30 : vector<8x8x8xf32> to vector<1x8x8x8xf32>
    %32 = arith.truncf %31 : vector<1x8x8x8xf32> to vector<1x8x8x8xbf16>
    %c0_14 = arith.constant 0 : index
    %c0_15 = arith.constant 0 : index
    %c0_16 = arith.constant 0 : index
    %c0_17 = arith.constant 0 : index
    %33 = vector.load %arg4[%c0_14, %c0_15, %c0_16, %c0_17] : memref<1x8x8x8xbf16, #tpu.memory_space<vmem>>, vector<1x8x8x8xbf16>
    tpu.vector_store %arg4[%c0_14, %c0_15, %c0_16, %c0_17], %32 {strides = array<i32>} : memref<1x8x8x8xbf16, #tpu.memory_space<vmem>>, vector<1x8x8x8xbf16>,
    return
  }
  func.func @transform_0(%arg0: i32) -> (i32, i32, i32, i32) {
    %c0_i32 = arith.constant 0 : i32
    %c0_i32_0 = arith.constant 0 : i32
    %c0_i32_1 = arith.constant 0 : i32
    %c0_i32_2 = arith.constant 0 : i32
    return %arg0, %c0_i32, %c0_i32_0, %c0_i32_1 : i32, i32, i32, i32
  }
  func.func @transform_1(%arg0: i32) -> (i32, i32) {
    %c0_i32 = arith.constant 0 : i32
    %c0_i32_0 = arith.constant 0 : i32
    %c0_i32_1 = arith.constant 0 : i32
    return %c0_i32, %c0_i32_0 : i32, i32
  }
  func.func @transform_2(%arg0: i32) -> (i32, i32) {
    %c0_i32 = arith.constant 0 : i32
    %c0_i32_0 = arith.constant 0 : i32
    %c0_i32_1 = arith.constant 0 : i32
    return %c0_i32, %c0_i32_0 : i32, i32
  }
  func.func @transform_3(%arg0: i32) -> (i32, i32, i32, i32) {
    %c0_i32 = arith.constant 0 : i32
    %c0_i32_0 = arith.constant 0 : i32
    %c0_i32_1 = arith.constant 0 : i32
    %c0_i32_2 = arith.constant 0 : i32
    return %arg0, %c0_i32, %c0_i32_0, %c0_i32_1 : i32, i32, i32, i32
  }
}

</mosaic_0001>

<llo_original>
// kernel: tpu_custom_call.1
$region0: #{tpu_custom_call.1}
  #allocation0 [shape = 'u32[]', space=smem, size = 0x4, offset = 0x4, fixed_abs, tag = 'smem constant byte address 0x4 - core index']
  #allocation1 [shape = 'u32[144,128]{1,0:T(1,128)}', space=vmem, size = 0x12000, scoped, tag = 'internal scratch']
  %s0 = inlined_call_operand.vmem [shape: bf16[2,16,16,4], index: 0, kind: input, shape index: {}]
  %s1 = inlined_call_operand.vmem [shape: bf16[36,8], index: 1, kind: input, shape index: {}]
  %s2 = inlined_call_operand.vmem [shape: f32[1,8], index: 2, kind: input, shape index: {}]
  %s3 = inlined_call_operand.hbm [shape: bf16[2,8,8,8], index: 3, kind: output, shape index: {}]
  %s4 = sld [smem:[#allocation0]]
  $region45: #{tpu_custom_call.1} parent=0
    _
  %s6 = ssub.s32 1, %s4
  %s7 = scalar_select 0, %s6, %s4
  $region1: #{tpu_custom_call.1} parent=0
    #allocation2 [shape = 'u8[32768]{0}', space=vmem, size = 0x8000, scoped, tag = 'output window, operand 0']
    #allocation3 [shape = 's32[2]{0}', space=sflag, size = 0x8, scoped, tag = 'scoped memory for tpu_custom_call.1']
    %8 = vsyncpa [#allocation3], 0
    %s9 = scalar_lea.sflag [#allocation3], 1
    %10 = vsyncpa %s9, 0
    loop: start=0, step=1, limit=4
    $region2: #{tpu_custom_call.1} parent=1 // loop_pre_header
      _
    $region3: #{tpu_custom_call.1} parent=1 // loop_header
      %s12 = sphi 0, %s16
      %p13 = scmp.ge.s32.totalorder %s12, 4
      %s22 = sphi 0, %s24
      %s25 = sphi 0, %s22
      %s26 = sphi 0, %s25
      %s42 = sphi 0, %s26
      %s46 = sphi 0, %s46
      %s48 = sphi 0, %s46
      %s49 = sphi 0, %s48
      %s63 = sphi 0, %s49
      %s67 = sphi 0, %s67
      %s69 = sphi 0, %s67
      %s70 = sphi 0, %s69
      %s84 = sphi 0, %s70
      %s90 = sphi 0, %s92
      %s93 = sphi 0, %s90
      %s94 = sphi 0, %s93
      %s110 = sphi 0, %s94
    $region4: #{tpu_custom_call.1} parent=1 // loop_header_branch
      %15 = sbr.rel (%p13) target = $region8
    $region5: #{tpu_custom_call.1} parent=1 // loop_body
      %s17 = ssub.s32 %s12, 1
      %s18 = ssub.s32 %s12, 2
      %s19 = sadd.s32 %s12, 1
      %s20 = ssub.s32 %s12, %s19
      %p21 = scmp.eq.s32.totalorder %s20, 0
      %s23 = sadd.s32 %s22, 1
      %s24 = scalar_select %p21, %s22, %s23
      %p27 = pneg %p21
      %p28 = scmp.eq.s32.totalorder %s12, 1
      %p29 = por %p27, %p28
      %p30 = scmp.ne.s32.totalorder %s22, %s25
      %p31 = scmp.eq.s32.totalorder %s12, 0
      %p32 = por %p30, %p31
      %p33 = scmp.ne.s32.totalorder %s22, %s25
      %p34 = scmp.eq.s32.totalorder %s17, 1
      %p35 = por %p33, %p34
      %p36 = scmp.ne.s32.totalorder %s25, %s26
      %p37 = scmp.eq.s32.totalorder %s17, 0
      %p38 = por %p36, %p37
      %p39 = scmp.ne.s32.totalorder %s25, %s26
      %p40 = scmp.eq.s32.totalorder %s18, 1
      %p41 = por %p39, %p40
      %p43 = scmp.ne.s32.totalorder %s26, %s42
      %p44 = scmp.eq.s32.totalorder %s18, 0
      %p45 = por %p43, %p44
      %s47 = sadd.s32 %s46, 1
      %p50 = scmp.eq.s32.totalorder %s12, 1
      %p51 = scmp.ne.s32.totalorder %s46, %s48
      %p52 = scmp.eq.s32.totalorder %s12, 0
      %p53 = por %p51, %p52
      %p54 = scmp.ne.s32.totalorder %s46, %s48
      %p55 = scmp.eq.s32.totalorder %s17, 1
      %p56 = por %p54, %p55
      %p57 = scmp.ne.s32.totalorder %s48, %s49
      %p58 = scmp.eq.s32.totalorder %s17, 0
      %p59 = por %p57, %p58
      %p60 = scmp.ne.s32.totalorder %s48, %s49
      %p61 = scmp.eq.s32.totalorder %s18, 1
      %p62 = por %p60, %p61
      %p64 = scmp.ne.s32.totalorder %s49, %s63
      %p65 = scmp.eq.s32.totalorder %s18, 0
      %p66 = por %p64, %p65
      %s68 = sadd.s32 %s67, 1
      %p71 = scmp.eq.s32.totalorder %s12, 1
      %p72 = scmp.ne.s32.totalorder %s67, %s69
      %p73 = scmp.eq.s32.totalorder %s12, 0
      %p74 = por %p72, %p73
      %p75 = scmp.ne.s32.totalorder %s67, %s69
      %p76 = scmp.eq.s32.totalorder %s17, 1
      %p77 = por %p75, %p76
      %p78 = scmp.ne.s32.totalorder %s69, %s70
      %p79 = scmp.eq.s32.totalorder %s17, 0
      %p80 = por %p78, %p79
      %p81 = scmp.ne.s32.totalorder %s69, %s70
      %p82 = scmp.eq.s32.totalorder %s18, 1
      %p83 = por %p81, %p82
      %p85 = scmp.ne.s32.totalorder %s70, %s84
      %p86 = scmp.eq.s32.totalorder %s18, 0
      %p87 = por %p85, %p86
      %s88 = ssub.s32 %s12, %s19
      %p89 = scmp.eq.s32.totalorder %s88, 0
      %s91 = sadd.s32 %s90, 1
      %s92 = scalar_select %p89, %s90, %s91
      %p95 = pneg %p89
      %p96 = scmp.eq.s32.totalorder %s12, 1
      %p97 = por %p95, %p96
      %p98 = scmp.ne.s32.totalorder %s90, %s93
      %p99 = scmp.eq.s32.totalorder %s12, 0
      %p100 = por %p98, %p99
      %p101 = scmp.ne.s32.totalorder %s90, %s93
      %p102 = scmp.eq.s32.totalorder %s17, 1
      %p103 = por %p101, %p102
      %p104 = scmp.ne.s32.totalorder %s93, %s94
      %p105 = scmp.eq.s32.totalorder %s17, 0
      %p106 = por %p104, %p105
      %p107 = scmp.ne.s32.totalorder %s93, %s94
      %p108 = scmp.eq.s32.totalorder %s18, 1
      %p109 = por %p107, %p108
      %p111 = scmp.ne.s32.totalorder %s94, %s110
      %p112 = scmp.eq.s32.totalorder %s18, 0
      %p113 = por %p111, %p112
      %p114 = scmp.le.s32.totalorder 1, %s12
      %p115 = scmp.lt.s32.totalorder %s12, 3
      %p116 = pnand %p114, %p115
      %p117 = pneg %p116
      // Predicated region
      $region9: #{tpu_custom_call.1} parent=5 // pred_check
        _
      $region10: #{tpu_custom_call.1} parent=5 // pred_check_branch
        %119 = sbr.rel (%p116) target = $region12
      $region11: #{tpu_custom_call.1} parent=5 // pred_region
        %s120 = ssub.s32 %s12, 1
        // Predicated region
        $region13: #{tpu_custom_call.1} parent=11 // pred_check
          %p121 = pneg %p59
        $region14: #{tpu_custom_call.1} parent=11 // pred_check_branch
          %123 = sbr.rel (%p121) target = $region16
        $region15: #{tpu_custom_call.1} parent=11 // pred_region
          _
        $region16: #{tpu_custom_call.1} parent=11 // pred_fallthru
          _
        // Predicated region
        $region17: #{tpu_custom_call.1} parent=11 // pred_check
          %p124 = pneg %p80
        $region18: #{tpu_custom_call.1} parent=11 // pred_check_branch
          %126 = sbr.rel (%p124) target = $region20
        $region19: #{tpu_custom_call.1} parent=11 // pred_region
          _
        $region20: #{tpu_custom_call.1} parent=11 // pred_fallthru
          _
      $region12: #{tpu_custom_call.1} parent=5 // pred_fallthru
        _
      %p127 = scmp.lt.s32.totalorder %s12, 2
      // Predicated region
      $region21: #{tpu_custom_call.1} parent=5 // pred_check
        %p128 = pneg %p127
      $region22: #{tpu_custom_call.1} parent=5 // pred_check_branch
        %130 = sbr.rel (%p128) target = $region24
      $region23: #{tpu_custom_call.1} parent=5 // pred_region
        // Predicated region
        $region25: #{tpu_custom_call.1} parent=23 // pred_check
          %p131 = pneg %p32
        $region26: #{tpu_custom_call.1} parent=23 // pred_check_branch
          %133 = sbr.rel (%p131) target = $region28
        $region27: #{tpu_custom_call.1} parent=23 // pred_region
          %p134 = scmp.lt.s32.totalorder %s12, 1
          %s135 = scalar_select %p134, %s12, 1
          %s136 = smul.addr %s135, 32
          %s137 = smul.addr %s136, 4
          %s138 = scalar_lea.vmem %s0, %s137
        $region28: #{tpu_custom_call.1} parent=23 // pred_fallthru
          _
      $region24: #{tpu_custom_call.1} parent=5 // pred_fallthru
        _
      %p139 = scmp.le.s32.totalorder 1, %s12
      %p140 = scmp.lt.s32.totalorder %s12, 3
      %p141 = pnand %p139, %p140
      %p142 = pneg %p141
      // Predicated region
      $region29: #{tpu_custom_call.1} parent=5 // pred_check
        _
      $region30: #{tpu_custom_call.1} parent=5 // pred_check_branch
        %144 = sbr.rel (%p141) target = $region32
      $region31: #{tpu_custom_call.1} parent=5 // pred_region
        %s145 = ssub.s32 %s12, 1
        %p146 = scmp.lt.s32.totalorder %s17, 1
        %s147 = scalar_select %p146, %s17, 1
        %s148 = smul.addr %s147, 32
        %s149 = smul.addr %s148, 4
        %s150 = scalar_lea.vmem %s0, %s149
        %p151 = pneg %p38
        %p152 = pneg %p35
        %p153 = pneg %p59
        %p154 = pneg %p56
        %p155 = pneg %p80
        %p156 = pneg %p77
        %p157 = pneg %p106
        %p158 = pneg %p103
        %s159 = sand.u32 %s93, 1
        %s160 = scalar_lea.sflag [#allocation3], %s159
        %s161 = sand.u32 %s93, 1
        %s162 = smul.addr %s161, 32
        %s163 = scalar_lea.vmem [#allocation2], %s162
        %p164 = scmp.lt.s32.totalorder %s17, 1
        %s165 = scalar_select %p164, %s17, 1
        %s166 = smul.addr %s165, 32
        %s167 = smul.addr %s166, 4
        %s168 = scalar_lea.vmem %s0, %s167
        %v170 = vld [vmem:[%s168] sm:$0xf]
        %v171 = vld [vmem:[%s168 + $0x4] sm:$0xf]
        %v172 = vld [vmem:[%s168 + $0x8] sm:$0xf]
        %v173 = vld [vmem:[%s168 + $0xc] sm:$0xf]
        %v174 = vld [vmem:[%s168 + $0x10] sm:$0xf]
        %v175 = vld [vmem:[%s168 + $0x14] sm:$0xf]
        %v176 = vld [vmem:[%s168 + $0x18] sm:$0xf]
        %v177 = vld [vmem:[%s168 + $0x1c] sm:$0xf]
        %v178 = vld [vmem:[%s168 + $0x20] sm:$0xf]
        %v179 = vld [vmem:[%s168 + $0x24] sm:$0xf]
        %v180 = vld [vmem:[%s168 + $0x28] sm:$0xf]
        %v181 = vld [vmem:[%s168 + $0x2c] sm:$0xf]
        %v182 = vld [vmem:[%s168 + $0x30] sm:$0xf]
        %v183 = vld [vmem:[%s168 + $0x34] sm:$0xf]
        %v184 = vld [vmem:[%s168 + $0x38] sm:$0xf]
        %v185 = vld [vmem:[%s168 + $0x3c] sm:$0xf]
        %v186 = vld [vmem:[%s168 + $0x40] sm:$0xf]
        %v187 = vld [vmem:[%s168 + $0x44] sm:$0xf]
        %v188 = vld [vmem:[%s168 + $0x48] sm:$0xf]
        %v189 = vld [vmem:[%s168 + $0x4c] sm:$0xf]
        %v190 = vld [vmem:[%s168 + $0x50] sm:$0xf]
        %v191 = vld [vmem:[%s168 + $0x54] sm:$0xf]
        %v192 = vld [vmem:[%s168 + $0x58] sm:$0xf]
        %v193 = vld [vmem:[%s168 + $0x5c] sm:$0xf]
        %v194 = vld [vmem:[%s168 + $0x60] sm:$0xf]
        %v195 = vld [vmem:[%s168 + $0x64] sm:$0xf]
        %v196 = vld [vmem:[%s168 + $0x68] sm:$0xf]
        %v197 = vld [vmem:[%s168 + $0x6c] sm:$0xf]
        %v198 = vld [vmem:[%s168 + $0x70] sm:$0xf]
        %v199 = vld [vmem:[%s168 + $0x74] sm:$0xf]
        %v200 = vld [vmem:[%s168 + $0x78] sm:$0xf]
        %v201 = vld [vmem:[%s168 + $0x7c] sm:$0xf]
        %v230 = vunpack.c.l.b16 %v170
        %v231 = vunpack.c.l.b16 %v171
        %v232 = vunpack.c.l.b16 %v172
        %v233 = vunpack.c.l.b16 %v173
        %v234 = vunpack.c.l.b16 %v174
        %v235 = vunpack.c.l.b16 %v175
        %v236 = vunpack.c.l.b16 %v176
        %v237 = vunpack.c.l.b16 %v177
        %v238 = vunpack.c.l.b16 %v178
        %v239 = vunpack.c.l.b16 %v179
        %v240 = vunpack.c.l.b16 %v180
        %v241 = vunpack.c.l.b16 %v181
        %v242 = vunpack.c.l.b16 %v182
        %v243 = vunpack.c.l.b16 %v183
        %v244 = vunpack.c.l.b16 %v184
        %v245 = vunpack.c.l.b16 %v185
        %v246 = vunpack.c.l.b16 %v186
        %v247 = vunpack.c.l.b16 %v187
        %v248 = vunpack.c.l.b16 %v188
        %v249 = vunpack.c.l.b16 %v189
        %v250 = vunpack.c.l.b16 %v190
        %v251 = vunpack.c.l.b16 %v191
        %v252 = vunpack.c.l.b16 %v192
        %v253 = vunpack.c.l.b16 %v193
        %v254 = vunpack.c.l.b16 %v194
        %v255 = vunpack.c.l.b16 %v195
        %v256 = vunpack.c.l.b16 %v196
        %v257 = vunpack.c.l.b16 %v197
        %v258 = vpack.c.b16 %v231, %v230
        %v259 = vpack.c.b16 %v233, %v232
        %v260 = vpack.c.b16 %v235, %v234
        %v261 = vpack.c.b16 %v237, %v236
        %v262 = vpack.c.b16 %v239, %v238
        %v263 = vpack.c.b16 %v241, %v240
        %v264 = vpack.c.b16 %v243, %v242
        %v265 = vpack.c.b16 %v245, %v244
        %v266 = vpack.c.b16 %v247, %v246
        %v267 = vpack.c.b16 %v249, %v248
        %v268 = vpack.c.b16 %v251, %v250
        %v269 = vpack.c.b16 %v253, %v252
        %v270 = vpack.c.b16 %v255, %v254
        %v271 = vpack.c.b16 %v257, %v256
        %v273 = vshrl.u32 %v258, 16
        %v275 = vshll.u32 %v258, 16
        %v277 = vrot.slane %v275, 1
        %v278 = vor.u32 %v273, %v277
        %v280 = vshrl.u32 %v259, 16
        %v282 = vshll.u32 %v259, 16
        %v284 = vrot.slane %v282, 1
        %v285 = vor.u32 %v280, %v284
        %v287 = vshrl.u32 %v260, 16
        %v289 = vshll.u32 %v260, 16
        %v291 = vrot.slane %v289, 1
        %v292 = vor.u32 %v287, %v291
        %v294 = vshrl.u32 %v261, 16
        %v296 = vshll.u32 %v261, 16
        %v298 = vrot.slane %v296, 1
        %v299 = vor.u32 %v294, %v298
        %v301 = vshrl.u32 %v262, 16
        %v303 = vshll.u32 %v262, 16
        %v305 = vrot.slane %v303, 1
        %v306 = vor.u32 %v301, %v305
        %v308 = vshrl.u32 %v263, 16
        %v310 = vshll.u32 %v263, 16
        %v312 = vrot.slane %v310, 1
        %v313 = vor.u32 %v308, %v312
        %v315 = vshrl.u32 %v264, 16
        %v317 = vshll.u32 %v264, 16
        %v319 = vrot.slane %v317, 1
        %v320 = vor.u32 %v315, %v319
        %v322 = vshrl.u32 %v265, 16
        %v324 = vshll.u32 %v265, 16
        %v326 = vrot.slane %v324, 1
        %v327 = vor.u32 %v322, %v326
        %v329 = vshrl.u32 %v266, 16
        %v331 = vshll.u32 %v266, 16
        %v333 = vrot.slane %v331, 1
        %v334 = vor.u32 %v329, %v333
        %v336 = vshrl.u32 %v267, 16
        %v338 = vshll.u32 %v267, 16
        %v340 = vrot.slane %v338, 1
        %v341 = vor.u32 %v336, %v340
        %v343 = vshrl.u32 %v268, 16
        %v345 = vshll.u32 %v268, 16
        %v347 = vrot.slane %v345, 1
        %v348 = vor.u32 %v343, %v347
        %v350 = vshrl.u32 %v269, 16
        %v352 = vshll.u32 %v269, 16
        %v354 = vrot.slane %v352, 1
        %v355 = vor.u32 %v350, %v354
        %v357 = vshrl.u32 %v270, 16
        %v359 = vshll.u32 %v270, 16
        %v361 = vrot.slane %v359, 1
        %v362 = vor.u32 %v357, %v361
        %v364 = vshrl.u32 %v271, 16
        %v366 = vshll.u32 %v271, 16
        %v368 = vrot.slane %v366, 1
        %v369 = vor.u32 %v364, %v368
        %370 = vrot.lane.b32.xlu0 %v278, 4
        %v371 = vpop.permute.xlu0 %370
        %372 = vrot.lane.b32.xlu0 %v285, 4
        %v373 = vpop.permute.xlu0 %372
        %374 = vrot.lane.b32.xlu0 %v292, 4
        %v375 = vpop.permute.xlu0 %374
        %376 = vrot.lane.b32.xlu0 %v299, 4
        %v377 = vpop.permute.xlu0 %376
        %378 = vrot.lane.b32.xlu0 %v306, 4
        %v379 = vpop.permute.xlu0 %378
        %380 = vrot.lane.b32.xlu0 %v313, 4
        %v381 = vpop.permute.xlu0 %380
        %382 = vrot.lane.b32.xlu0 %v320, 4
        %v383 = vpop.permute.xlu0 %382
        %384 = vrot.lane.b32.xlu0 %v327, 4
        %v385 = vpop.permute.xlu0 %384
        %386 = vrot.lane.b32.xlu0 %v334, 4
        %v387 = vpop.permute.xlu0 %386
        %388 = vrot.lane.b32.xlu0 %v341, 4
        %v389 = vpop.permute.xlu0 %388
        %390 = vrot.lane.b32.xlu0 %v348, 4
        %v391 = vpop.permute.xlu0 %390
        %392 = vrot.lane.b32.xlu0 %v355, 4
        %v393 = vpop.permute.xlu0 %392
        %394 = vrot.lane.b32.xlu0 %v362, 4
        %v395 = vpop.permute.xlu0 %394
        %396 = vrot.lane.b32.xlu0 %v369, 4
        %v397 = vpop.permute.xlu0 %396
        %v398 = vrot.slane %v258, 1
        %v399 = vrot.slane %v259, 1
        %v400 = vrot.slane %v260, 1
        %v401 = vrot.slane %v261, 1
        %v402 = vrot.slane %v262, 1
        %v403 = vrot.slane %v263, 1
        %v404 = vrot.slane %v264, 1
        %v405 = vrot.slane %v265, 1
        %v406 = vrot.slane %v266, 1
        %v407 = vrot.slane %v267, 1
        %v408 = vrot.slane %v268, 1
        %v409 = vrot.slane %v269, 1
        %v410 = vrot.slane %v270, 1
        %v411 = vrot.slane %v271, 1
        %412 = vrot.lane.b32.xlu0 %v398, 8
        %v413 = vpop.permute.xlu0 %412
        %414 = vrot.lane.b32.xlu0 %v399, 8
        %v415 = vpop.permute.xlu0 %414
        %416 = vrot.lane.b32.xlu0 %v400, 8
        %v417 = vpop.permute.xlu0 %416
        %418 = vrot.lane.b32.xlu0 %v401, 8
        %v419 = vpop.permute.xlu0 %418
        %420 = vrot.lane.b32.xlu0 %v402, 8
        %v421 = vpop.permute.xlu0 %420
        %422 = vrot.lane.b32.xlu0 %v403, 8
        %v423 = vpop.permute.xlu0 %422
        %424 = vrot.lane.b32.xlu0 %v404, 8
        %v425 = vpop.permute.xlu0 %424
        %426 = vrot.lane.b32.xlu0 %v405, 8
        %v427 = vpop.permute.xlu0 %426
        %428 = vrot.lane.b32.xlu0 %v406, 8
        %v429 = vpop.permute.xlu0 %428
        %430 = vrot.lane.b32.xlu0 %v407, 8
        %v431 = vpop.permute.xlu0 %430
        %432 = vrot.lane.b32.xlu0 %v408, 8
        %v433 = vpop.permute.xlu0 %432
        %434 = vrot.lane.b32.xlu0 %v409, 8
        %v435 = vpop.permute.xlu0 %434
        %436 = vrot.lane.b32.xlu0 %v410, 8
        %v437 = vpop.permute.xlu0 %436
        %438 = vrot.lane.b32.xlu0 %v411, 8
        %v439 = vpop.permute.xlu0 %438
        %v442 = vunpack.c.l.b16 %v198
        %v443 = vunpack.c.l.b16 %v199
        %v444 = vpack.c.b16 %v443, %v442
        %445 = vrot.lane.b32.xlu0 %v259, 12
        %v446 = vpop.permute.xlu0 %445
        %447 = vrot.lane.b32.xlu0 %v260, 12
        %v448 = vpop.permute.xlu0 %447
        %449 = vrot.lane.b32.xlu0 %v261, 12
        %v450 = vpop.permute.xlu0 %449
        %451 = vrot.lane.b32.xlu0 %v262, 12
        %v452 = vpop.permute.xlu0 %451
        %453 = vrot.lane.b32.xlu0 %v263, 12
        %v454 = vpop.permute.xlu0 %453
        %455 = vrot.lane.b32.xlu0 %v264, 12
        %v456 = vpop.permute.xlu0 %455
        %457 = vrot.lane.b32.xlu0 %v265, 12
        %v458 = vpop.permute.xlu0 %457
        %459 = vrot.lane.b32.xlu0 %v266, 12
        %v460 = vpop.permute.xlu0 %459
        %461 = vrot.lane.b32.xlu0 %v267, 12
        %v462 = vpop.permute.xlu0 %461
        %463 = vrot.lane.b32.xlu0 %v268, 12
        %v464 = vpop.permute.xlu0 %463
        %465 = vrot.lane.b32.xlu0 %v269, 12
        %v466 = vpop.permute.xlu0 %465
        %467 = vrot.lane.b32.xlu0 %v270, 12
        %v468 = vpop.permute.xlu0 %467
        %469 = vrot.lane.b32.xlu0 %v271, 12
        %v470 = vpop.permute.xlu0 %469
        %471 = vrot.lane.b32.xlu0 %v444, 12
        %v472 = vpop.permute.xlu0 %471
        %v474 = vshrl.u32 %v444, 16
        %v476 = vshll.u32 %v444, 16
        %v478 = vrot.slane %v476, 1
        %v479 = vor.u32 %v474, %v478
        %480 = vrot.lane.b32.xlu0 %v285, 16
        %v481 = vpop.permute.xlu0 %480
        %482 = vrot.lane.b32.xlu0 %v292, 16
        %v483 = vpop.permute.xlu0 %482
        %484 = vrot.lane.b32.xlu0 %v299, 16
        %v485 = vpop.permute.xlu0 %484
        %486 = vrot.lane.b32.xlu0 %v306, 16
        %v487 = vpop.permute.xlu0 %486
        %488 = vrot.lane.b32.xlu0 %v313, 16
        %v489 = vpop.permute.xlu0 %488
        %490 = vrot.lane.b32.xlu0 %v320, 16
        %v491 = vpop.permute.xlu0 %490
        %492 = vrot.lane.b32.xlu0 %v327, 16
        %v493 = vpop.permute.xlu0 %492
        %494 = vrot.lane.b32.xlu0 %v334, 16
        %v495 = vpop.permute.xlu0 %494
        %496 = vrot.lane.b32.xlu0 %v341, 16
        %v497 = vpop.permute.xlu0 %496
        %498 = vrot.lane.b32.xlu0 %v348, 16
        %v499 = vpop.permute.xlu0 %498
        %500 = vrot.lane.b32.xlu0 %v355, 16
        %v501 = vpop.permute.xlu0 %500
        %502 = vrot.lane.b32.xlu0 %v362, 16
        %v503 = vpop.permute.xlu0 %502
        %504 = vrot.lane.b32.xlu0 %v369, 16
        %v505 = vpop.permute.xlu0 %504
        %506 = vrot.lane.b32.xlu0 %v479, 16
        %v507 = vpop.permute.xlu0 %506
        %v508 = vrot.slane %v444, 1
        %509 = vrot.lane.b32.xlu0 %v399, 20
        %v510 = vpop.permute.xlu0 %509
        %511 = vrot.lane.b32.xlu0 %v400, 20
        %v512 = vpop.permute.xlu0 %511
        %513 = vrot.lane.b32.xlu0 %v401, 20
        %v514 = vpop.permute.xlu0 %513
        %515 = vrot.lane.b32.xlu0 %v402, 20
        %v516 = vpop.permute.xlu0 %515
        %517 = vrot.lane.b32.xlu0 %v403, 20
        %v518 = vpop.permute.xlu0 %517
        %519 = vrot.lane.b32.xlu0 %v404, 20
        %v520 = vpop.permute.xlu0 %519
        %521 = vrot.lane.b32.xlu0 %v405, 20
        %v522 = vpop.permute.xlu0 %521
        %523 = vrot.lane.b32.xlu0 %v406, 20
        %v524 = vpop.permute.xlu0 %523
        %525 = vrot.lane.b32.xlu0 %v407, 20
        %v526 = vpop.permute.xlu0 %525
        %527 = vrot.lane.b32.xlu0 %v408, 20
        %v528 = vpop.permute.xlu0 %527
        %529 = vrot.lane.b32.xlu0 %v409, 20
        %v530 = vpop.permute.xlu0 %529
        %531 = vrot.lane.b32.xlu0 %v410, 20
        %v532 = vpop.permute.xlu0 %531
        %533 = vrot.lane.b32.xlu0 %v411, 20
        %v534 = vpop.permute.xlu0 %533
        %535 = vrot.lane.b32.xlu0 %v508, 20
        %v536 = vpop.permute.xlu0 %535
        %v539 = vunpack.c.l.b16 %v200
        %v540 = vunpack.c.l.b16 %v201
        %v541 = vpack.c.b16 %v540, %v539
        %542 = vrot.lane.b32.xlu0 %v260, 24
        %v543 = vpop.permute.xlu0 %542
        %544 = vrot.lane.b32.xlu0 %v261, 24
        %v545 = vpop.permute.xlu0 %544
        %546 = vrot.lane.b32.xlu0 %v262, 24
        %v547 = vpop.permute.xlu0 %546
        %548 = vrot.lane.b32.xlu0 %v263, 24
        %v549 = vpop.permute.xlu0 %548
        %550 = vrot.lane.b32.xlu0 %v264, 24
        %v551 = vpop.permute.xlu0 %550
        %552 = vrot.lane.b32.xlu0 %v265, 24
        %v553 = vpop.permute.xlu0 %552
        %554 = vrot.lane.b32.xlu0 %v266, 24
        %v555 = vpop.permute.xlu0 %554
        %556 = vrot.lane.b32.xlu0 %v267, 24
        %v557 = vpop.permute.xlu0 %556
        %558 = vrot.lane.b32.xlu0 %v268, 24
        %v559 = vpop.permute.xlu0 %558
        %560 = vrot.lane.b32.xlu0 %v269, 24
        %v561 = vpop.permute.xlu0 %560
        %562 = vrot.lane.b32.xlu0 %v270, 24
        %v563 = vpop.permute.xlu0 %562
        %564 = vrot.lane.b32.xlu0 %v271, 24
        %v565 = vpop.permute.xlu0 %564
        %566 = vrot.lane.b32.xlu0 %v444, 24
        %v567 = vpop.permute.xlu0 %566
        %568 = vrot.lane.b32.xlu0 %v541, 24
        %v569 = vpop.permute.xlu0 %568
        %v571 = vshrl.u32 %v541, 16
        %v573 = vshll.u32 %v541, 16
        %v575 = vrot.slane %v573, 1
        %v576 = vor.u32 %v571, %v575
        %577 = vrot.lane.b32.xlu0 %v292, 28
        %v578 = vpop.permute.xlu0 %577
        %579 = vrot.lane.b32.xlu0 %v299, 28
        %v580 = vpop.permute.xlu0 %579
        %581 = vrot.lane.b32.xlu0 %v306, 28
        %v582 = vpop.permute.xlu0 %581
        %583 = vrot.lane.b32.xlu0 %v313, 28
        %v584 = vpop.permute.xlu0 %583
        %585 = vrot.lane.b32.xlu0 %v320, 28
        %v586 = vpop.permute.xlu0 %585
        %587 = vrot.lane.b32.xlu0 %v327, 28
        %v588 = vpop.permute.xlu0 %587
        %589 = vrot.lane.b32.xlu0 %v334, 28
        %v590 = vpop.permute.xlu0 %589
        %591 = vrot.lane.b32.xlu0 %v341, 28
        %v592 = vpop.permute.xlu0 %591
        %593 = vrot.lane.b32.xlu0 %v348, 28
        %v594 = vpop.permute.xlu0 %593
        %595 = vrot.lane.b32.xlu0 %v355, 28
        %v596 = vpop.permute.xlu0 %595
        %597 = vrot.lane.b32.xlu0 %v362, 28
        %v598 = vpop.permute.xlu0 %597
        %599 = vrot.lane.b32.xlu0 %v369, 28
        %v600 = vpop.permute.xlu0 %599
        %601 = vrot.lane.b32.xlu0 %v479, 28
        %v602 = vpop.permute.xlu0 %601
        %603 = vrot.lane.b32.xlu0 %v576, 28
        %v604 = vpop.permute.xlu0 %603
        %v605 = vrot.slane %v541, 1
        %606 = vrot.lane.b32.xlu0 %v400, 32
        %v607 = vpop.permute.xlu0 %606
        %608 = vrot.lane.b32.xlu0 %v401, 32
        %v609 = vpop.permute.xlu0 %608
        %610 = vrot.lane.b32.xlu0 %v402, 32
        %v611 = vpop.permute.xlu0 %610
        %612 = vrot.lane.b32.xlu0 %v403, 32
        %v613 = vpop.permute.xlu0 %612
        %614 = vrot.lane.b32.xlu0 %v404, 32
        %v615 = vpop.permute.xlu0 %614
        %616 = vrot.lane.b32.xlu0 %v405, 32
        %v617 = vpop.permute.xlu0 %616
        %618 = vrot.lane.b32.xlu0 %v406, 32
        %v619 = vpop.permute.xlu0 %618
        %620 = vrot.lane.b32.xlu0 %v407, 32
        %v621 = vpop.permute.xlu0 %620
        %622 = vrot.lane.b32.xlu0 %v408, 32
        %v623 = vpop.permute.xlu0 %622
        %624 = vrot.lane.b32.xlu0 %v409, 32
        %v625 = vpop.permute.xlu0 %624
        %626 = vrot.lane.b32.xlu0 %v410, 32
        %v627 = vpop.permute.xlu0 %626
        %628 = vrot.lane.b32.xlu0 %v411, 32
        %v629 = vpop.permute.xlu0 %628
        %630 = vrot.lane.b32.xlu0 %v508, 32
        %v631 = vpop.permute.xlu0 %630
        %632 = vrot.lane.b32.xlu0 %v605, 32
        %v633 = vpop.permute.xlu0 %632
        %vm634 = vcmask 31744
        %v636 = vsel %vm634, %v258, %v371
        %v638 = vsel %vm634, %v259, %v373
        %v640 = vsel %vm634, %v260, %v375
        %v642 = vsel %vm634, %v261, %v377
        %v644 = vsel %vm634, %v262, %v379
        %v646 = vsel %vm634, %v263, %v381
        %v648 = vsel %vm634, %v264, %v383
        %v650 = vsel %vm634, %v265, %v385
        %v652 = vsel %vm634, %v266, %v387
        %v654 = vsel %vm634, %v267, %v389
        %v656 = vsel %vm634, %v268, %v391
        %v658 = vsel %vm634, %v269, %v393
        %v660 = vsel %vm634, %v270, %v395
        %v662 = vsel %vm634, %v271, %v397
        %vm663 = vcmask 64512
        %v665 = vsel %vm663, %v636, %v413
        %v667 = vsel %vm663, %v638, %v415
        %v669 = vsel %vm663, %v640, %v417
        %v671 = vsel %vm663, %v642, %v419
        %v673 = vsel %vm663, %v644, %v421
        %v675 = vsel %vm663, %v646, %v423
        %v677 = vsel %vm663, %v648, %v425
        %v679 = vsel %vm663, %v650, %v427
        %v681 = vsel %vm663, %v652, %v429
        %v683 = vsel %vm663, %v654, %v431
        %v685 = vsel %vm663, %v656, %v433
        %v687 = vsel %vm663, %v658, %v435
        %v689 = vsel %vm663, %v660, %v437
        %v691 = vsel %vm663, %v662, %v439
        %vm692 = vcmask 97280
        %v694 = vsel %vm692, %v665, %v446
        %v696 = vsel %vm692, %v667, %v448
        %v698 = vsel %vm692, %v669, %v450
        %v700 = vsel %vm692, %v671, %v452
        %v702 = vsel %vm692, %v673, %v454
        %v704 = vsel %vm692, %v675, %v456
        %v706 = vsel %vm692, %v677, %v458
        %v708 = vsel %vm692, %v679, %v460
        %v710 = vsel %vm692, %v681, %v462
        %v712 = vsel %vm692, %v683, %v464
        %v714 = vsel %vm692, %v685, %v466
        %v716 = vsel %vm692, %v687, %v468
        %v718 = vsel %vm692, %v689, %v470
        %v720 = vsel %vm692, %v691, %v472
        %vm721 = vcmask 130048
        %v723 = vsel %vm721, %v694, %v481
        %v725 = vsel %vm721, %v696, %v483
        %v727 = vsel %vm721, %v698, %v485
        %v729 = vsel %vm721, %v700, %v487
        %v731 = vsel %vm721, %v702, %v489
        %v733 = vsel %vm721, %v704, %v491
        %v735 = vsel %vm721, %v706, %v493
        %v737 = vsel %vm721, %v708, %v495
        %v739 = vsel %vm721, %v710, %v497
        %v741 = vsel %vm721, %v712, %v499
        %v743 = vsel %vm721, %v714, %v501
        %v745 = vsel %vm721, %v716, %v503
        %v747 = vsel %vm721, %v718, %v505
        %v749 = vsel %vm721, %v720, %v507
        %vm750 = vcmask 162816
        %v752 = vsel %vm750, %v723, %v510
        %v754 = vsel %vm750, %v725, %v512
        %v756 = vsel %vm750, %v727, %v514
        %v758 = vsel %vm750, %v729, %v516
        %v760 = vsel %vm750, %v731, %v518
        %v762 = vsel %vm750, %v733, %v520
        %v764 = vsel %vm750, %v735, %v522
        %v766 = vsel %vm750, %v737, %v524
        %v768 = vsel %vm750, %v739, %v526
        %v770 = vsel %vm750, %v741, %v528
        %v772 = vsel %vm750, %v743, %v530
        %v774 = vsel %vm750, %v745, %v532
        %v776 = vsel %vm750, %v747, %v534
        %v778 = vsel %vm750, %v749, %v536
        %vm779 = vcmask 195584
        %v781 = vsel %vm779, %v752, %v543
        %v783 = vsel %vm779, %v754, %v545
        %v785 = vsel %vm779, %v756, %v547
        %v787 = vsel %vm779, %v758, %v549
        %v789 = vsel %vm779, %v760, %v551
        %v791 = vsel %vm779, %v762, %v553
        %v793 = vsel %vm779, %v764, %v555
        %v795 = vsel %vm779, %v766, %v557
        %v797 = vsel %vm779, %v768, %v559
        %v799 = vsel %vm779, %v770, %v561
        %v801 = vsel %vm779, %v772, %v563
        %v803 = vsel %vm779, %v774, %v565
        %v805 = vsel %vm779, %v776, %v567
        %v807 = vsel %vm779, %v778, %v569
        %vm808 = vcmask 228352
        %v810 = vsel %vm808, %v781, %v578
        %v812 = vsel %vm808, %v783, %v580
        %v814 = vsel %vm808, %v785, %v582
        %v816 = vsel %vm808, %v787, %v584
        %v818 = vsel %vm808, %v789, %v586
        %v820 = vsel %vm808, %v791, %v588
        %v822 = vsel %vm808, %v793, %v590
        %v824 = vsel %vm808, %v795, %v592
        %v826 = vsel %vm808, %v797, %v594
        %v828 = vsel %vm808, %v799, %v596
        %v830 = vsel %vm808, %v801, %v598
        %v832 = vsel %vm808, %v803, %v600
        %v834 = vsel %vm808, %v805, %v602
        %v836 = vsel %vm808, %v807, %v604
        %vm837 = vcmask 261120
        %v839 = vsel %vm837, %v810, %v607
        %v841 = vsel %vm837, %v812, %v609
        %v843 = vsel %vm837, %v814, %v611
        %v845 = vsel %vm837, %v816, %v613
        %v847 = vsel %vm837, %v818, %v615
        %v849 = vsel %vm837, %v820, %v617
        %v851 = vsel %vm837, %v822, %v619
        %v853 = vsel %vm837, %v824, %v621
        %v855 = vsel %vm837, %v826, %v623
        %v857 = vsel %vm837, %v828, %v625
        %v859 = vsel %vm837, %v830, %v627
        %v861 = vsel %vm837, %v832, %v629
        %v863 = vsel %vm837, %v834, %v631
        %v865 = vsel %vm837, %v836, %v633
        %v880 = vcombine.high %v839, %v839
        %v882 = vunpack.c.l.s4 1966171168
        %v883 = vunpack.c.0.s8 %v882
        %v884 = vlaneseq
        %v885 = vshrl.u32 %v884, 7
        %v886 = vsub.s32 %v883, %v885
        %v887 = vrot.slane %v839, %v886
        %v889 = vunpack.c.l.s4 1966171168
        %v890 = vunpack.c.0.s8 %v889
        %v891 = vlaneseq
        %v892 = vshrl.u32 %v891, 7
        %v893 = vsub.s32 %v890, %v892
        %v894 = vrot.slane %v880, %v893
        %v895 = vcombine.high %v887, %v887
        %v896 = vcombine.high %v894, %v894
        %v898 = vunpack.c.l.s4 1966171168
        %v899 = vunpack.c.0.s8 %v898
        %v900 = vlaneseq
        %v901 = vshrl.u32 %v900, 7
        %v902 = vsub.s32 %v899, %v901
        %v903 = vrot.slane %v887, %v902
        %v905 = vunpack.c.l.s4 1966171168
        %v906 = vunpack.c.0.s8 %v905
        %v907 = vlaneseq
        %v908 = vshrl.u32 %v907, 7
        %v909 = vsub.s32 %v906, %v908
        %v910 = vrot.slane %v894, %v909
        %v912 = vunpack.c.l.s4 1966171168
        %v913 = vunpack.c.0.s8 %v912
        %v914 = vlaneseq
        %v915 = vshrl.u32 %v914, 7
        %v916 = vsub.s32 %v913, %v915
        %v917 = vrot.slane %v895, %v916
        %v919 = vunpack.c.l.s4 1966171168
        %v920 = vunpack.c.0.s8 %v919
        %v921 = vlaneseq
        %v922 = vshrl.u32 %v921, 7
        %v923 = vsub.s32 %v920, %v922
        %v924 = vrot.slane %v896, %v923
        %v925 = vcombine.high %v903, %v903
        %v926 = vcombine.high %v910, %v910
        %v927 = vcombine.high %v917, %v917
        %v928 = vcombine.high %v841, %v841
        %v930 = vunpack.c.l.s4 1966171168
        %v931 = vunpack.c.0.s8 %v930
        %v932 = vlaneseq
        %v933 = vshrl.u32 %v932, 7
        %v934 = vsub.s32 %v931, %v933
        %v935 = vrot.slane %v841, %v934
        %v937 = vunpack.c.l.s4 1966171168
        %v938 = vunpack.c.0.s8 %v937
        %v939 = vlaneseq
        %v940 = vshrl.u32 %v939, 7
        %v941 = vsub.s32 %v938, %v940
        %v942 = vrot.slane %v928, %v941
        %v943 = vcombine.high %v935, %v935
        %v944 = vcombine.high %v942, %v942
        %v946 = vunpack.c.l.s4 1966171168
        %v947 = vunpack.c.0.s8 %v946
        %v948 = vlaneseq
        %v949 = vshrl.u32 %v948, 7
        %v950 = vsub.s32 %v947, %v949
        %v951 = vrot.slane %v935, %v950
        %v953 = vunpack.c.l.s4 1966171168
        %v954 = vunpack.c.0.s8 %v953
        %v955 = vlaneseq
        %v956 = vshrl.u32 %v955, 7
        %v957 = vsub.s32 %v954, %v956
        %v958 = vrot.slane %v942, %v957
        %v960 = vunpack.c.l.s4 1966171168
        %v961 = vunpack.c.0.s8 %v960
        %v962 = vlaneseq
        %v963 = vshrl.u32 %v962, 7
        %v964 = vsub.s32 %v961, %v963
        %v965 = vrot.slane %v943, %v964
        %v967 = vunpack.c.l.s4 1966171168
        %v968 = vunpack.c.0.s8 %v967
        %v969 = vlaneseq
        %v970 = vshrl.u32 %v969, 7
        %v971 = vsub.s32 %v968, %v970
        %v972 = vrot.slane %v944, %v971
        %v973 = vcombine.high %v951, %v951
        %v974 = vcombine.high %v958, %v958
        %v975 = vcombine.high %v965, %v965
        %v976 = vcombine.high %v843, %v843
        %v978 = vunpack.c.l.s4 1966171168
        %v979 = vunpack.c.0.s8 %v978
        %v980 = vlaneseq
        %v981 = vshrl.u32 %v980, 7
        %v982 = vsub.s32 %v979, %v981
        %v983 = vrot.slane %v843, %v982
        %v985 = vunpack.c.l.s4 1966171168
        %v986 = vunpack.c.0.s8 %v985
        %v987 = vlaneseq
        %v988 = vshrl.u32 %v987, 7
        %v989 = vsub.s32 %v986, %v988
        %v990 = vrot.slane %v976, %v989
        %v991 = vcombine.high %v983, %v983
        %v992 = vcombine.high %v990, %v990
        %v994 = vunpack.c.l.s4 1966171168
        %v995 = vunpack.c.0.s8 %v994
        %v996 = vlaneseq
        %v997 = vshrl.u32 %v996, 7
        %v998 = vsub.s32 %v995, %v997
        %v999 = vrot.slane %v983, %v998
        %v1001 = vunpack.c.l.s4 1966171168
        %v1002 = vunpack.c.0.s8 %v1001
        %v1003 = vlaneseq
        %v1004 = vshrl.u32 %v1003, 7
        %v1005 = vsub.s32 %v1002, %v1004
        %v1006 = vrot.slane %v990, %v1005
        %v1008 = vunpack.c.l.s4 1966171168
        %v1009 = vunpack.c.0.s8 %v1008
        %v1010 = vlaneseq
        %v1011 = vshrl.u32 %v1010, 7
        %v1012 = vsub.s32 %v1009, %v1011
        %v1013 = vrot.slane %v991, %v1012
        %v1015 = vunpack.c.l.s4 1966171168
        %v1016 = vunpack.c.0.s8 %v1015
        %v1017 = vlaneseq
        %v1018 = vshrl.u32 %v1017, 7
        %v1019 = vsub.s32 %v1016, %v1018
        %v1020 = vrot.slane %v992, %v1019
        %v1021 = vcombine.high %v999, %v999
        %v1022 = vcombine.high %v1006, %v1006
        %v1023 = vcombine.high %v1013, %v1013
        %v1024 = vcombine.high %v845, %v845
        %v1026 = vunpack.c.l.s4 1966171168
        %v1027 = vunpack.c.0.s8 %v1026
        %v1028 = vlaneseq
        %v1029 = vshrl.u32 %v1028, 7
        %v1030 = vsub.s32 %v1027, %v1029
        %v1031 = vrot.slane %v845, %v1030
        %v1033 = vunpack.c.l.s4 1966171168
        %v1034 = vunpack.c.0.s8 %v1033
        %v1035 = vlaneseq
        %v1036 = vshrl.u32 %v1035, 7
        %v1037 = vsub.s32 %v1034, %v1036
        %v1038 = vrot.slane %v1024, %v1037
        %v1039 = vcombine.high %v1031, %v1031
        %v1040 = vcombine.high %v1038, %v1038
        %v1042 = vunpack.c.l.s4 1966171168
        %v1043 = vunpack.c.0.s8 %v1042
        %v1044 = vlaneseq
        %v1045 = vshrl.u32 %v1044, 7
        %v1046 = vsub.s32 %v1043, %v1045
        %v1047 = vrot.slane %v1031, %v1046
        %v1049 = vunpack.c.l.s4 1966171168
        %v1050 = vunpack.c.0.s8 %v1049
        %v1051 = vlaneseq
        %v1052 = vshrl.u32 %v1051, 7
        %v1053 = vsub.s32 %v1050, %v1052
        %v1054 = vrot.slane %v1038, %v1053
        %v1056 = vunpack.c.l.s4 1966171168
        %v1057 = vunpack.c.0.s8 %v1056
        %v1058 = vlaneseq
        %v1059 = vshrl.u32 %v1058, 7
        %v1060 = vsub.s32 %v1057, %v1059
        %v1061 = vrot.slane %v1039, %v1060
        %v1063 = vunpack.c.l.s4 1966171168
        %v1064 = vunpack.c.0.s8 %v1063
        %v1065 = vlaneseq
        %v1066 = vshrl.u32 %v1065, 7
        %v1067 = vsub.s32 %v1064, %v1066
        %v1068 = vrot.slane %v1040, %v1067
        %v1069 = vcombine.high %v1047, %v1047
        %v1070 = vcombine.high %v1054, %v1054
        %v1071 = vcombine.high %v1061, %v1061
        %v1072 = vcombine.high %v847, %v847
        %v1074 = vunpack.c.l.s4 1966171168
        %v1075 = vunpack.c.0.s8 %v1074
        %v1076 = vlaneseq
        %v1077 = vshrl.u32 %v1076, 7
        %v1078 = vsub.s32 %v1075, %v1077
        %v1079 = vrot.slane %v847, %v1078
        %v1081 = vunpack.c.l.s4 1966171168
        %v1082 = vunpack.c.0.s8 %v1081
        %v1083 = vlaneseq
        %v1084 = vshrl.u32 %v1083, 7
        %v1085 = vsub.s32 %v1082, %v1084
        %v1086 = vrot.slane %v1072, %v1085
        %v1087 = vcombine.high %v1079, %v1079
        %v1088 = vcombine.high %v1086, %v1086
        %v1090 = vunpack.c.l.s4 1966171168
        %v1091 = vunpack.c.0.s8 %v1090
        %v1092 = vlaneseq
        %v1093 = vshrl.u32 %v1092, 7
        %v1094 = vsub.s32 %v1091, %v1093
        %v1095 = vrot.slane %v1079, %v1094
        %v1097 = vunpack.c.l.s4 1966171168
        %v1098 = vunpack.c.0.s8 %v1097
        %v1099 = vlaneseq
        %v1100 = vshrl.u32 %v1099, 7
        %v1101 = vsub.s32 %v1098, %v1100
        %v1102 = vrot.slane %v1086, %v1101
        %v1104 = vunpack.c.l.s4 1966171168
        %v1105 = vunpack.c.0.s8 %v1104
        %v1106 = vlaneseq
        %v1107 = vshrl.u32 %v1106, 7
        %v1108 = vsub.s32 %v1105, %v1107
        %v1109 = vrot.slane %v1087, %v1108
        %v1111 = vunpack.c.l.s4 1966171168
        %v1112 = vunpack.c.0.s8 %v1111
        %v1113 = vlaneseq
        %v1114 = vshrl.u32 %v1113, 7
        %v1115 = vsub.s32 %v1112, %v1114
        %v1116 = vrot.slane %v1088, %v1115
        %v1117 = vcombine.high %v1095, %v1095
        %v1118 = vcombine.high %v1102, %v1102
        %v1119 = vcombine.high %v1109, %v1109
        %v1120 = vcombine.high %v849, %v849
        %v1122 = vunpack.c.l.s4 1966171168
        %v1123 = vunpack.c.0.s8 %v1122
        %v1124 = vlaneseq
        %v1125 = vshrl.u32 %v1124, 7
        %v1126 = vsub.s32 %v1123, %v1125
        %v1127 = vrot.slane %v849, %v1126
        %v1129 = vunpack.c.l.s4 1966171168
        %v1130 = vunpack.c.0.s8 %v1129
        %v1131 = vlaneseq
        %v1132 = vshrl.u32 %v1131, 7
        %v1133 = vsub.s32 %v1130, %v1132
        %v1134 = vrot.slane %v1120, %v1133
        %v1135 = vcombine.high %v1127, %v1127
        %v1136 = vcombine.high %v1134, %v1134
        %v1138 = vunpack.c.l.s4 1966171168
        %v1139 = vunpack.c.0.s8 %v1138
        %v1140 = vlaneseq
        %v1141 = vshrl.u32 %v1140, 7
        %v1142 = vsub.s32 %v1139, %v1141
        %v1143 = vrot.slane %v1127, %v1142
        %v1145 = vunpack.c.l.s4 1966171168
        %v1146 = vunpack.c.0.s8 %v1145
        %v1147 = vlaneseq
        %v1148 = vshrl.u32 %v1147, 7
        %v1149 = vsub.s32 %v1146, %v1148
        %v1150 = vrot.slane %v1134, %v1149
        %v1152 = vunpack.c.l.s4 1966171168
        %v1153 = vunpack.c.0.s8 %v1152
        %v1154 = vlaneseq
        %v1155 = vshrl.u32 %v1154, 7
        %v1156 = vsub.s32 %v1153, %v1155
        %v1157 = vrot.slane %v1135, %v1156
        %v1159 = vunpack.c.l.s4 1966171168
        %v1160 = vunpack.c.0.s8 %v1159
        %v1161 = vlaneseq
        %v1162 = vshrl.u32 %v1161, 7
        %v1163 = vsub.s32 %v1160, %v1162
        %v1164 = vrot.slane %v1136, %v1163
        %v1165 = vcombine.high %v1143, %v1143
        %v1166 = vcombine.high %v1150, %v1150
        %v1167 = vcombine.high %v1157, %v1157
        %v1168 = vcombine.high %v851, %v851
        %v1170 = vunpack.c.l.s4 1966171168
        %v1171 = vunpack.c.0.s8 %v1170
        %v1172 = vlaneseq
        %v1173 = vshrl.u32 %v1172, 7
        %v1174 = vsub.s32 %v1171, %v1173
        %v1175 = vrot.slane %v851, %v1174
        %v1177 = vunpack.c.l.s4 1966171168
        %v1178 = vunpack.c.0.s8 %v1177
        %v1179 = vlaneseq
        %v1180 = vshrl.u32 %v1179, 7
        %v1181 = vsub.s32 %v1178, %v1180
        %v1182 = vrot.slane %v1168, %v1181
        %v1183 = vcombine.high %v1175, %v1175
        %v1184 = vcombine.high %v1182, %v1182
        %v1186 = vunpack.c.l.s4 1966171168
        %v1187 = vunpack.c.0.s8 %v1186
        %v1188 = vlaneseq
        %v1189 = vshrl.u32 %v1188, 7
        %v1190 = vsub.s32 %v1187, %v1189
        %v1191 = vrot.slane %v1175, %v1190
        %v1193 = vunpack.c.l.s4 1966171168
        %v1194 = vunpack.c.0.s8 %v1193
        %v1195 = vlaneseq
        %v1196 = vshrl.u32 %v1195, 7
        %v1197 = vsub.s32 %v1194, %v1196
        %v1198 = vrot.slane %v1182, %v1197
        %v1200 = vunpack.c.l.s4 1966171168
        %v1201 = vunpack.c.0.s8 %v1200
        %v1202 = vlaneseq
        %v1203 = vshrl.u32 %v1202, 7
        %v1204 = vsub.s32 %v1201, %v1203
        %v1205 = vrot.slane %v1183, %v1204
        %v1207 = vunpack.c.l.s4 1966171168
        %v1208 = vunpack.c.0.s8 %v1207
        %v1209 = vlaneseq
        %v1210 = vshrl.u32 %v1209, 7
        %v1211 = vsub.s32 %v1208, %v1210
        %v1212 = vrot.slane %v1184, %v1211
        %v1213 = vcombine.high %v1191, %v1191
        %v1214 = vcombine.high %v1198, %v1198
        %v1215 = vcombine.high %v1205, %v1205
        %v1216 = vcombine.high %v853, %v853
        %v1218 = vunpack.c.l.s4 1966171168
        %v1219 = vunpack.c.0.s8 %v1218
        %v1220 = vlaneseq
        %v1221 = vshrl.u32 %v1220, 7
        %v1222 = vsub.s32 %v1219, %v1221
        %v1223 = vrot.slane %v853, %v1222
        %v1225 = vunpack.c.l.s4 1966171168
        %v1226 = vunpack.c.0.s8 %v1225
        %v1227 = vlaneseq
        %v1228 = vshrl.u32 %v1227, 7
        %v1229 = vsub.s32 %v1226, %v1228
        %v1230 = vrot.slane %v1216, %v1229
        %v1231 = vcombine.high %v1223, %v1223
        %v1232 = vcombine.high %v1230, %v1230
        %v1234 = vunpack.c.l.s4 1966171168
        %v1235 = vunpack.c.0.s8 %v1234
        %v1236 = vlaneseq
        %v1237 = vshrl.u32 %v1236, 7
        %v1238 = vsub.s32 %v1235, %v1237
        %v1239 = vrot.slane %v1223, %v1238
        %v1241 = vunpack.c.l.s4 1966171168
        %v1242 = vunpack.c.0.s8 %v1241
        %v1243 = vlaneseq
        %v1244 = vshrl.u32 %v1243, 7
        %v1245 = vsub.s32 %v1242, %v1244
        %v1246 = vrot.slane %v1230, %v1245
        %v1248 = vunpack.c.l.s4 1966171168
        %v1249 = vunpack.c.0.s8 %v1248
        %v1250 = vlaneseq
        %v1251 = vshrl.u32 %v1250, 7
        %v1252 = vsub.s32 %v1249, %v1251
        %v1253 = vrot.slane %v1231, %v1252
        %v1255 = vunpack.c.l.s4 1966171168
        %v1256 = vunpack.c.0.s8 %v1255
        %v1257 = vlaneseq
        %v1258 = vshrl.u32 %v1257, 7
        %v1259 = vsub.s32 %v1256, %v1258
        %v1260 = vrot.slane %v1232, %v1259
        %v1261 = vcombine.high %v1239, %v1239
        %v1262 = vcombine.high %v1246, %v1246
        %v1263 = vcombine.high %v1253, %v1253
        %v1264 = vcombine.high %v855, %v855
        %v1266 = vunpack.c.l.s4 1966171168
        %v1267 = vunpack.c.0.s8 %v1266
        %v1268 = vlaneseq
        %v1269 = vshrl.u32 %v1268, 7
        %v1270 = vsub.s32 %v1267, %v1269
        %v1271 = vrot.slane %v855, %v1270
        %v1273 = vunpack.c.l.s4 1966171168
        %v1274 = vunpack.c.0.s8 %v1273
        %v1275 = vlaneseq
        %v1276 = vshrl.u32 %v1275, 7
        %v1277 = vsub.s32 %v1274, %v1276
        %v1278 = vrot.slane %v1264, %v1277
        %v1279 = vcombine.high %v1271, %v1271
        %v1280 = vcombine.high %v1278, %v1278
        %v1282 = vunpack.c.l.s4 1966171168
        %v1283 = vunpack.c.0.s8 %v1282
        %v1284 = vlaneseq
        %v1285 = vshrl.u32 %v1284, 7
        %v1286 = vsub.s32 %v1283, %v1285
        %v1287 = vrot.slane %v1271, %v1286
        %v1289 = vunpack.c.l.s4 1966171168
        %v1290 = vunpack.c.0.s8 %v1289
        %v1291 = vlaneseq
        %v1292 = vshrl.u32 %v1291, 7
        %v1293 = vsub.s32 %v1290, %v1292
        %v1294 = vrot.slane %v1278, %v1293
        %v1296 = vunpack.c.l.s4 1966171168
        %v1297 = vunpack.c.0.s8 %v1296
        %v1298 = vlaneseq
        %v1299 = vshrl.u32 %v1298, 7
        %v1300 = vsub.s32 %v1297, %v1299
        %v1301 = vrot.slane %v1279, %v1300
        %v1303 = vunpack.c.l.s4 1966171168
        %v1304 = vunpack.c.0.s8 %v1303
        %v1305 = vlaneseq
        %v1306 = vshrl.u32 %v1305, 7
        %v1307 = vsub.s32 %v1304, %v1306
        %v1308 = vrot.slane %v1280, %v1307
        %v1309 = vcombine.high %v1287, %v1287
        %v1310 = vcombine.high %v1294, %v1294
        %v1311 = vcombine.high %v1301, %v1301
        %v1312 = vcombine.high %v857, %v857
        %v1314 = vunpack.c.l.s4 1966171168
        %v1315 = vunpack.c.0.s8 %v1314
        %v1316 = vlaneseq
        %v1317 = vshrl.u32 %v1316, 7
        %v1318 = vsub.s32 %v1315, %v1317
        %v1319 = vrot.slane %v857, %v1318
        %v1321 = vunpack.c.l.s4 1966171168
        %v1322 = vunpack.c.0.s8 %v1321
        %v1323 = vlaneseq
        %v1324 = vshrl.u32 %v1323, 7
        %v1325 = vsub.s32 %v1322, %v1324
        %v1326 = vrot.slane %v1312, %v1325
        %v1327 = vcombine.high %v1319, %v1319
        %v1328 = vcombine.high %v1326, %v1326
        %v1330 = vunpack.c.l.s4 1966171168
        %v1331 = vunpack.c.0.s8 %v1330
        %v1332 = vlaneseq
        %v1333 = vshrl.u32 %v1332, 7
        %v1334 = vsub.s32 %v1331, %v1333
        %v1335 = vrot.slane %v1319, %v1334
        %v1337 = vunpack.c.l.s4 1966171168
        %v1338 = vunpack.c.0.s8 %v1337
        %v1339 = vlaneseq
        %v1340 = vshrl.u32 %v1339, 7
        %v1341 = vsub.s32 %v1338, %v1340
        %v1342 = vrot.slane %v1326, %v1341
        %v1344 = vunpack.c.l.s4 1966171168
        %v1345 = vunpack.c.0.s8 %v1344
        %v1346 = vlaneseq
        %v1347 = vshrl.u32 %v1346, 7
        %v1348 = vsub.s32 %v1345, %v1347
        %v1349 = vrot.slane %v1327, %v1348
        %v1351 = vunpack.c.l.s4 1966171168
        %v1352 = vunpack.c.0.s8 %v1351
        %v1353 = vlaneseq
        %v1354 = vshrl.u32 %v1353, 7
        %v1355 = vsub.s32 %v1352, %v1354
        %v1356 = vrot.slane %v1328, %v1355
        %v1357 = vcombine.high %v1335, %v1335
        %v1358 = vcombine.high %v1342, %v1342
        %v1359 = vcombine.high %v1349, %v1349
        %v1360 = vcombine.high %v859, %v859
        %v1362 = vunpack.c.l.s4 1966171168
        %v1363 = vunpack.c.0.s8 %v1362
        %v1364 = vlaneseq
        %v1365 = vshrl.u32 %v1364, 7
        %v1366 = vsub.s32 %v1363, %v1365
        %v1367 = vrot.slane %v859, %v1366
        %v1369 = vunpack.c.l.s4 1966171168
        %v1370 = vunpack.c.0.s8 %v1369
        %v1371 = vlaneseq
        %v1372 = vshrl.u32 %v1371, 7
        %v1373 = vsub.s32 %v1370, %v1372
        %v1374 = vrot.slane %v1360, %v1373
        %v1375 = vcombine.high %v1367, %v1367
        %v1376 = vcombine.high %v1374, %v1374
        %v1378 = vunpack.c.l.s4 1966171168
        %v1379 = vunpack.c.0.s8 %v1378
        %v1380 = vlaneseq
        %v1381 = vshrl.u32 %v1380, 7
        %v1382 = vsub.s32 %v1379, %v1381
        %v1383 = vrot.slane %v1367, %v1382
        %v1385 = vunpack.c.l.s4 1966171168
        %v1386 = vunpack.c.0.s8 %v1385
        %v1387 = vlaneseq
        %v1388 = vshrl.u32 %v1387, 7
        %v1389 = vsub.s32 %v1386, %v1388
        %v1390 = vrot.slane %v1374, %v1389
        %v1392 = vunpack.c.l.s4 1966171168
        %v1393 = vunpack.c.0.s8 %v1392
        %v1394 = vlaneseq
        %v1395 = vshrl.u32 %v1394, 7
        %v1396 = vsub.s32 %v1393, %v1395
        %v1397 = vrot.slane %v1375, %v1396
        %v1399 = vunpack.c.l.s4 1966171168
        %v1400 = vunpack.c.0.s8 %v1399
        %v1401 = vlaneseq
        %v1402 = vshrl.u32 %v1401, 7
        %v1403 = vsub.s32 %v1400, %v1402
        %v1404 = vrot.slane %v1376, %v1403
        %v1405 = vcombine.high %v1383, %v1383
        %v1406 = vcombine.high %v1390, %v1390
        %v1407 = vcombine.high %v1397, %v1397
        %v1408 = vcombine.high %v861, %v861
        %v1410 = vunpack.c.l.s4 1966171168
        %v1411 = vunpack.c.0.s8 %v1410
        %v1412 = vlaneseq
        %v1413 = vshrl.u32 %v1412, 7
        %v1414 = vsub.s32 %v1411, %v1413
        %v1415 = vrot.slane %v861, %v1414
        %v1417 = vunpack.c.l.s4 1966171168
        %v1418 = vunpack.c.0.s8 %v1417
        %v1419 = vlaneseq
        %v1420 = vshrl.u32 %v1419, 7
        %v1421 = vsub.s32 %v1418, %v1420
        %v1422 = vrot.slane %v1408, %v1421
        %v1423 = vcombine.high %v1415, %v1415
        %v1424 = vcombine.high %v1422, %v1422
        %v1426 = vunpack.c.l.s4 1966171168
        %v1427 = vunpack.c.0.s8 %v1426
        %v1428 = vlaneseq
        %v1429 = vshrl.u32 %v1428, 7
        %v1430 = vsub.s32 %v1427, %v1429
        %v1431 = vrot.slane %v1415, %v1430
        %v1433 = vunpack.c.l.s4 1966171168
        %v1434 = vunpack.c.0.s8 %v1433
        %v1435 = vlaneseq
        %v1436 = vshrl.u32 %v1435, 7
        %v1437 = vsub.s32 %v1434, %v1436
        %v1438 = vrot.slane %v1422, %v1437
        %v1440 = vunpack.c.l.s4 1966171168
        %v1441 = vunpack.c.0.s8 %v1440
        %v1442 = vlaneseq
        %v1443 = vshrl.u32 %v1442, 7
        %v1444 = vsub.s32 %v1441, %v1443
        %v1445 = vrot.slane %v1423, %v1444
        %v1447 = vunpack.c.l.s4 1966171168
        %v1448 = vunpack.c.0.s8 %v1447
        %v1449 = vlaneseq
        %v1450 = vshrl.u32 %v1449, 7
        %v1451 = vsub.s32 %v1448, %v1450
        %v1452 = vrot.slane %v1424, %v1451
        %v1453 = vcombine.high %v1431, %v1431
        %v1454 = vcombine.high %v1438, %v1438
        %v1455 = vcombine.high %v1445, %v1445
        %v1456 = vcombine.high %v863, %v863
        %v1458 = vunpack.c.l.s4 1966171168
        %v1459 = vunpack.c.0.s8 %v1458
        %v1460 = vlaneseq
        %v1461 = vshrl.u32 %v1460, 7
        %v1462 = vsub.s32 %v1459, %v1461
        %v1463 = vrot.slane %v863, %v1462
        %v1465 = vunpack.c.l.s4 1966171168
        %v1466 = vunpack.c.0.s8 %v1465
        %v1467 = vlaneseq
        %v1468 = vshrl.u32 %v1467, 7
        %v1469 = vsub.s32 %v1466, %v1468
        %v1470 = vrot.slane %v1456, %v1469
        %v1471 = vcombine.high %v1463, %v1463
        %v1472 = vcombine.high %v1470, %v1470
        %v1474 = vunpack.c.l.s4 1966171168
        %v1475 = vunpack.c.0.s8 %v1474
        %v1476 = vlaneseq
        %v1477 = vshrl.u32 %v1476, 7
        %v1478 = vsub.s32 %v1475, %v1477
        %v1479 = vrot.slane %v1463, %v1478
        %v1481 = vunpack.c.l.s4 1966171168
        %v1482 = vunpack.c.0.s8 %v1481
        %v1483 = vlaneseq
        %v1484 = vshrl.u32 %v1483, 7
        %v1485 = vsub.s32 %v1482, %v1484
        %v1486 = vrot.slane %v1470, %v1485
        %v1488 = vunpack.c.l.s4 1966171168
        %v1489 = vunpack.c.0.s8 %v1488
        %v1490 = vlaneseq
        %v1491 = vshrl.u32 %v1490, 7
        %v1492 = vsub.s32 %v1489, %v1491
        %v1493 = vrot.slane %v1471, %v1492
        %v1495 = vunpack.c.l.s4 1966171168
        %v1496 = vunpack.c.0.s8 %v1495
        %v1497 = vlaneseq
        %v1498 = vshrl.u32 %v1497, 7
        %v1499 = vsub.s32 %v1496, %v1498
        %v1500 = vrot.slane %v1472, %v1499
        %v1501 = vcombine.high %v1479, %v1479
        %v1502 = vcombine.high %v1486, %v1486
        %v1503 = vcombine.high %v1493, %v1493
        %v1504 = vcombine.high %v865, %v865
        %v1506 = vunpack.c.l.s4 1966171168
        %v1507 = vunpack.c.0.s8 %v1506
        %v1508 = vlaneseq
        %v1509 = vshrl.u32 %v1508, 7
        %v1510 = vsub.s32 %v1507, %v1509
        %v1511 = vrot.slane %v865, %v1510
        %v1513 = vunpack.c.l.s4 1966171168
        %v1514 = vunpack.c.0.s8 %v1513
        %v1515 = vlaneseq
        %v1516 = vshrl.u32 %v1515, 7
        %v1517 = vsub.s32 %v1514, %v1516
        %v1518 = vrot.slane %v1504, %v1517
        %v1519 = vcombine.high %v1511, %v1511
        %v1520 = vcombine.high %v1518, %v1518
        %v1522 = vunpack.c.l.s4 1966171168
        %v1523 = vunpack.c.0.s8 %v1522
        %v1524 = vlaneseq
        %v1525 = vshrl.u32 %v1524, 7
        %v1526 = vsub.s32 %v1523, %v1525
        %v1527 = vrot.slane %v1511, %v1526
        %v1529 = vunpack.c.l.s4 1966171168
        %v1530 = vunpack.c.0.s8 %v1529
        %v1531 = vlaneseq
        %v1532 = vshrl.u32 %v1531, 7
        %v1533 = vsub.s32 %v1530, %v1532
        %v1534 = vrot.slane %v1518, %v1533
        %v1536 = vunpack.c.l.s4 1966171168
        %v1537 = vunpack.c.0.s8 %v1536
        %v1538 = vlaneseq
        %v1539 = vshrl.u32 %v1538, 7
        %v1540 = vsub.s32 %v1537, %v1539
        %v1541 = vrot.slane %v1519, %v1540
        %v1543 = vunpack.c.l.s4 1966171168
        %v1544 = vunpack.c.0.s8 %v1543
        %v1545 = vlaneseq
        %v1546 = vshrl.u32 %v1545, 7
        %v1547 = vsub.s32 %v1544, %v1546
        %v1548 = vrot.slane %v1520, %v1547
        %v1549 = vcombine.high %v1527, %v1527
        %v1550 = vcombine.high %v1534, %v1534
        %v1551 = vcombine.high %v1541, %v1541
        %v1552 = vld [vmem:[%s1] sm:$0xf]
        %v1553 = vld [vmem:[%s1 + $0x4] sm:$0xf]
        %v1554 = vld [vmem:[%s1 + $0x8] sm:$0xf]
        %v1555 = vld [vmem:[%s1 + $0xc] sm:$0xf]
        %v1556 = vld [vmem:[%s1 + $0x10] sm:$0x3]
        %v1557 = vld [vmem:[%s2] sm:$0x1]
        %v1559 = vlaneseq
        %v1560 = vshrl.u32 %v1559, 7
        %v1561 = vsub.s32 0, %v1560
        %v1562 = vrot.slane %v1557, %v1561
        %v1564 = vcombine.low %v903, %v917
        %v1565 = vcombine.low %v925, %v927
        %v1566 = vcombine.low %v910, %v924
        %v1567 = vcombine.low %v926, %v951
        %v1569 = vunpack.c.l.s4 1966171168
        %v1570 = vunpack.c.0.s8 %v1569
        %v1571 = vlaneseq
        %v1572 = vshrl.u32 %v1571, 7
        %v1573 = vsub.s32 %v1570, %v1572
        %v1574 = vrot.slane %v1564, %v1573
        %v1576 = vunpack.c.l.s4 1966171168
        %v1577 = vunpack.c.0.s8 %v1576
        %v1578 = vlaneseq
        %v1579 = vshrl.u32 %v1578, 7
        %v1580 = vsub.s32 %v1577, %v1579
        %v1581 = vrot.slane %v1565, %v1580
        %v1583 = vunpack.c.l.s4 1966171168
        %v1584 = vunpack.c.0.s8 %v1583
        %v1585 = vlaneseq
        %v1586 = vshrl.u32 %v1585, 7
        %v1587 = vsub.s32 %v1584, %v1586
        %v1588 = vrot.slane %v1566, %v1587
        %v1590 = vunpack.c.l.s4 1966171168
        %v1591 = vunpack.c.0.s8 %v1590
        %v1592 = vlaneseq
        %v1593 = vshrl.u32 %v1592, 7
        %v1594 = vsub.s32 %v1591, %v1593
        %v1595 = vrot.slane %v1567, %v1594
        %v1596 = vcombine.low %v1574, %v1581
        %v1597 = vcombine.low %v1588, %v1595
        %v1599 = vunpack.c.l.s4 1966171168
        %v1600 = vunpack.c.0.s8 %v1599
        %v1601 = vlaneseq
        %v1602 = vshrl.u32 %v1601, 7
        %v1603 = vsub.s32 %v1600, %v1602
        %v1604 = vrot.slane %v1596, %v1603
        %v1606 = vunpack.c.l.s4 1966171168
        %v1607 = vunpack.c.0.s8 %v1606
        %v1608 = vlaneseq
        %v1609 = vshrl.u32 %v1608, 7
        %v1610 = vsub.s32 %v1607, %v1609
        %v1611 = vrot.slane %v1597, %v1610
        %v1612 = vcombine.low %v1604, %v1611
        %v1613 = vcombine.low %v965, %v973
        %v1614 = vcombine.low %v975, %v958
        %v1615 = vcombine.low %v972, %v974
        %v1616 = vcombine.low %v999, %v1013
        %v1618 = vunpack.c.l.s4 1966171168
        %v1619 = vunpack.c.0.s8 %v1618
        %v1620 = vlaneseq
        %v1621 = vshrl.u32 %v1620, 7
        %v1622 = vsub.s32 %v1619, %v1621
        %v1623 = vrot.slane %v1613, %v1622
        %v1625 = vunpack.c.l.s4 1966171168
        %v1626 = vunpack.c.0.s8 %v1625
        %v1627 = vlaneseq
        %v1628 = vshrl.u32 %v1627, 7
        %v1629 = vsub.s32 %v1626, %v1628
        %v1630 = vrot.slane %v1614, %v1629
        %v1632 = vunpack.c.l.s4 1966171168
        %v1633 = vunpack.c.0.s8 %v1632
        %v1634 = vlaneseq
        %v1635 = vshrl.u32 %v1634, 7
        %v1636 = vsub.s32 %v1633, %v1635
        %v1637 = vrot.slane %v1615, %v1636
        %v1639 = vunpack.c.l.s4 1966171168
        %v1640 = vunpack.c.0.s8 %v1639
        %v1641 = vlaneseq
        %v1642 = vshrl.u32 %v1641, 7
        %v1643 = vsub.s32 %v1640, %v1642
        %v1644 = vrot.slane %v1616, %v1643
        %v1645 = vcombine.low %v1623, %v1630
        %v1646 = vcombine.low %v1637, %v1644
        %v1648 = vunpack.c.l.s4 1966171168
        %v1649 = vunpack.c.0.s8 %v1648
        %v1650 = vlaneseq
        %v1651 = vshrl.u32 %v1650, 7
        %v1652 = vsub.s32 %v1649, %v1651
        %v1653 = vrot.slane %v1645, %v1652
        %v1655 = vunpack.c.l.s4 1966171168
        %v1656 = vunpack.c.0.s8 %v1655
        %v1657 = vlaneseq
        %v1658 = vshrl.u32 %v1657, 7
        %v1659 = vsub.s32 %v1656, %v1658
        %v1660 = vrot.slane %v1646, %v1659
        %v1661 = vcombine.low %v1653, %v1660
        %v1662 = vcombine.low %v1021, %v1023
        %v1663 = vcombine.low %v1006, %v1020
        %v1664 = vcombine.low %v1022, %v1047
        %v1665 = vcombine.low %v1061, %v1069
        %v1667 = vunpack.c.l.s4 1966171168
        %v1668 = vunpack.c.0.s8 %v1667
        %v1669 = vlaneseq
        %v1670 = vshrl.u32 %v1669, 7
        %v1671 = vsub.s32 %v1668, %v1670
        %v1672 = vrot.slane %v1662, %v1671
        %v1674 = vunpack.c.l.s4 1966171168
        %v1675 = vunpack.c.0.s8 %v1674
        %v1676 = vlaneseq
        %v1677 = vshrl.u32 %v1676, 7
        %v1678 = vsub.s32 %v1675, %v1677
        %v1679 = vrot.slane %v1663, %v1678
        %v1681 = vunpack.c.l.s4 1966171168
        %v1682 = vunpack.c.0.s8 %v1681
        %v1683 = vlaneseq
        %v1684 = vshrl.u32 %v1683, 7
        %v1685 = vsub.s32 %v1682, %v1684
        %v1686 = vrot.slane %v1664, %v1685
        %v1688 = vunpack.c.l.s4 1966171168
        %v1689 = vunpack.c.0.s8 %v1688
        %v1690 = vlaneseq
        %v1691 = vshrl.u32 %v1690, 7
        %v1692 = vsub.s32 %v1689, %v1691
        %v1693 = vrot.slane %v1665, %v1692
        %v1694 = vcombine.low %v1672, %v1679
        %v1695 = vcombine.low %v1686, %v1693
        %v1697 = vunpack.c.l.s4 1966171168
        %v1698 = vunpack.c.0.s8 %v1697
        %v1699 = vlaneseq
        %v1700 = vshrl.u32 %v1699, 7
        %v1701 = vsub.s32 %v1698, %v1700
        %v1702 = vrot.slane %v1694, %v1701
        %v1704 = vunpack.c.l.s4 1966171168
        %v1705 = vunpack.c.0.s8 %v1704
        %v1706 = vlaneseq
        %v1707 = vshrl.u32 %v1706, 7
        %v1708 = vsub.s32 %v1705, %v1707
        %v1709 = vrot.slane %v1695, %v1708
        %v1710 = vcombine.low %v1702, %v1709
        %v1711 = vcombine.low %v1071, %v1054
        %v1712 = vcombine.low %v1068, %v1070
        %v1713 = vcombine.low %v1095, %v1109
        %v1714 = vcombine.low %v1117, %v1119
        %v1716 = vunpack.c.l.s4 1966171168
        %v1717 = vunpack.c.0.s8 %v1716
        %v1718 = vlaneseq
        %v1719 = vshrl.u32 %v1718, 7
        %v1720 = vsub.s32 %v1717, %v1719
        %v1721 = vrot.slane %v1711, %v1720
        %v1723 = vunpack.c.l.s4 1966171168
        %v1724 = vunpack.c.0.s8 %v1723
        %v1725 = vlaneseq
        %v1726 = vshrl.u32 %v1725, 7
        %v1727 = vsub.s32 %v1724, %v1726
        %v1728 = vrot.slane %v1712, %v1727
        %v1730 = vunpack.c.l.s4 1966171168
        %v1731 = vunpack.c.0.s8 %v1730
        %v1732 = vlaneseq
        %v1733 = vshrl.u32 %v1732, 7
        %v1734 = vsub.s32 %v1731, %v1733
        %v1735 = vrot.slane %v1713, %v1734
        %v1737 = vunpack.c.l.s4 1966171168
        %v1738 = vunpack.c.0.s8 %v1737
        %v1739 = vlaneseq
        %v1740 = vshrl.u32 %v1739, 7
        %v1741 = vsub.s32 %v1738, %v1740
        %v1742 = vrot.slane %v1714, %v1741
        %v1743 = vcombine.low %v1721, %v1728
        %v1744 = vcombine.low %v1735, %v1742
        %v1746 = vunpack.c.l.s4 1966171168
        %v1747 = vunpack.c.0.s8 %v1746
        %v1748 = vlaneseq
        %v1749 = vshrl.u32 %v1748, 7
        %v1750 = vsub.s32 %v1747, %v1749
        %v1751 = vrot.slane %v1743, %v1750
        %v1753 = vunpack.c.l.s4 1966171168
        %v1754 = vunpack.c.0.s8 %v1753
        %v1755 = vlaneseq
        %v1756 = vshrl.u32 %v1755, 7
        %v1757 = vsub.s32 %v1754, %v1756
        %v1758 = vrot.slane %v1744, %v1757
        %v1759 = vcombine.low %v1751, %v1758
        %v1760 = vcombine.low %v1102, %v1116
        %v1761 = vcombine.low %v1118, %v1143
        %v1762 = vcombine.low %v1157, %v1165
        %v1763 = vcombine.low %v1167, %v1150
        %v1765 = vunpack.c.l.s4 1966171168
        %v1766 = vunpack.c.0.s8 %v1765
        %v1767 = vlaneseq
        %v1768 = vshrl.u32 %v1767, 7
        %v1769 = vsub.s32 %v1766, %v1768
        %v1770 = vrot.slane %v1760, %v1769
        %v1772 = vunpack.c.l.s4 1966171168
        %v1773 = vunpack.c.0.s8 %v1772
        %v1774 = vlaneseq
        %v1775 = vshrl.u32 %v1774, 7
        %v1776 = vsub.s32 %v1773, %v1775
        %v1777 = vrot.slane %v1761, %v1776
        %v1779 = vunpack.c.l.s4 1966171168
        %v1780 = vunpack.c.0.s8 %v1779
        %v1781 = vlaneseq
        %v1782 = vshrl.u32 %v1781, 7
        %v1783 = vsub.s32 %v1780, %v1782
        %v1784 = vrot.slane %v1762, %v1783
        %v1786 = vunpack.c.l.s4 1966171168
        %v1787 = vunpack.c.0.s8 %v1786
        %v1788 = vlaneseq
        %v1789 = vshrl.u32 %v1788, 7
        %v1790 = vsub.s32 %v1787, %v1789
        %v1791 = vrot.slane %v1763, %v1790
        %v1792 = vcombine.low %v1770, %v1777
        %v1793 = vcombine.low %v1784, %v1791
        %v1795 = vunpack.c.l.s4 1966171168
        %v1796 = vunpack.c.0.s8 %v1795
        %v1797 = vlaneseq
        %v1798 = vshrl.u32 %v1797, 7
        %v1799 = vsub.s32 %v1796, %v1798
        %v1800 = vrot.slane %v1792, %v1799
        %v1802 = vunpack.c.l.s4 1966171168
        %v1803 = vunpack.c.0.s8 %v1802
        %v1804 = vlaneseq
        %v1805 = vshrl.u32 %v1804, 7
        %v1806 = vsub.s32 %v1803, %v1805
        %v1807 = vrot.slane %v1793, %v1806
        %v1808 = vcombine.low %v1800, %v1807
        %v1809 = vcombine.low %v1164, %v1166
        %v1810 = vcombine.low %v1191, %v1205
        %v1811 = vcombine.low %v1213, %v1215
        %v1812 = vcombine.low %v1198, %v1212
        %v1814 = vunpack.c.l.s4 1966171168
        %v1815 = vunpack.c.0.s8 %v1814
        %v1816 = vlaneseq
        %v1817 = vshrl.u32 %v1816, 7
        %v1818 = vsub.s32 %v1815, %v1817
        %v1819 = vrot.slane %v1809, %v1818
        %v1821 = vunpack.c.l.s4 1966171168
        %v1822 = vunpack.c.0.s8 %v1821
        %v1823 = vlaneseq
        %v1824 = vshrl.u32 %v1823, 7
        %v1825 = vsub.s32 %v1822, %v1824
        %v1826 = vrot.slane %v1810, %v1825
        %v1828 = vunpack.c.l.s4 1966171168
        %v1829 = vunpack.c.0.s8 %v1828
        %v1830 = vlaneseq
        %v1831 = vshrl.u32 %v1830, 7
        %v1832 = vsub.s32 %v1829, %v1831
        %v1833 = vrot.slane %v1811, %v1832
        %v1835 = vunpack.c.l.s4 1966171168
        %v1836 = vunpack.c.0.s8 %v1835
        %v1837 = vlaneseq
        %v1838 = vshrl.u32 %v1837, 7
        %v1839 = vsub.s32 %v1836, %v1838
        %v1840 = vrot.slane %v1812, %v1839
        %v1841 = vcombine.low %v1819, %v1826
        %v1842 = vcombine.low %v1833, %v1840
        %v1844 = vunpack.c.l.s4 1966171168
        %v1845 = vunpack.c.0.s8 %v1844
        %v1846 = vlaneseq
        %v1847 = vshrl.u32 %v1846, 7
        %v1848 = vsub.s32 %v1845, %v1847
        %v1849 = vrot.slane %v1841, %v1848
        %v1851 = vunpack.c.l.s4 1966171168
        %v1852 = vunpack.c.0.s8 %v1851
        %v1853 = vlaneseq
        %v1854 = vshrl.u32 %v1853, 7
        %v1855 = vsub.s32 %v1852, %v1854
        %v1856 = vrot.slane %v1842, %v1855
        %v1857 = vcombine.low %v1849, %v1856
        %v1858 = vcombine.low %v1214, %v1239
        %v1859 = vcombine.low %v1253, %v1261
        %v1860 = vcombine.low %v1263, %v1246
        %v1861 = vcombine.low %v1260, %v1262
        %v1863 = vunpack.c.l.s4 1966171168
        %v1864 = vunpack.c.0.s8 %v1863
        %v1865 = vlaneseq
        %v1866 = vshrl.u32 %v1865, 7
        %v1867 = vsub.s32 %v1864, %v1866
        %v1868 = vrot.slane %v1858, %v1867
        %v1870 = vunpack.c.l.s4 1966171168
        %v1871 = vunpack.c.0.s8 %v1870
        %v1872 = vlaneseq
        %v1873 = vshrl.u32 %v1872, 7
        %v1874 = vsub.s32 %v1871, %v1873
        %v1875 = vrot.slane %v1859, %v1874
        %v1877 = vunpack.c.l.s4 1966171168
        %v1878 = vunpack.c.0.s8 %v1877
        %v1879 = vlaneseq
        %v1880 = vshrl.u32 %v1879, 7
        %v1881 = vsub.s32 %v1878, %v1880
        %v1882 = vrot.slane %v1860, %v1881
        %v1884 = vunpack.c.l.s4 1966171168
        %v1885 = vunpack.c.0.s8 %v1884
        %v1886 = vlaneseq
        %v1887 = vshrl.u32 %v1886, 7
        %v1888 = vsub.s32 %v1885, %v1887
        %v1889 = vrot.slane %v1861, %v1888
        %v1890 = vcombine.low %v1868, %v1875
        %v1891 = vcombine.low %v1882, %v1889
        %v1893 = vunpack.c.l.s4 1966171168
        %v1894 = vunpack.c.0.s8 %v1893
        %v1895 = vlaneseq
        %v1896 = vshrl.u32 %v1895, 7
        %v1897 = vsub.s32 %v1894, %v1896
        %v1898 = vrot.slane %v1890, %v1897
        %v1900 = vunpack.c.l.s4 1966171168
        %v1901 = vunpack.c.0.s8 %v1900
        %v1902 = vlaneseq
        %v1903 = vshrl.u32 %v1902, 7
        %v1904 = vsub.s32 %v1901, %v1903
        %v1905 = vrot.slane %v1891, %v1904
        %v1906 = vcombine.low %v1898, %v1905
        %v1907 = vcombine.low %v1287, %v1301
        %v1908 = vcombine.low %v1309, %v1311
        %v1909 = vcombine.low %v1294, %v1308
        %v1910 = vcombine.low %v1310, %v1335
        %v1912 = vunpack.c.l.s4 1966171168
        %v1913 = vunpack.c.0.s8 %v1912
        %v1914 = vlaneseq
        %v1915 = vshrl.u32 %v1914, 7
        %v1916 = vsub.s32 %v1913, %v1915
        %v1917 = vrot.slane %v1907, %v1916
        %v1919 = vunpack.c.l.s4 1966171168
        %v1920 = vunpack.c.0.s8 %v1919
        %v1921 = vlaneseq
        %v1922 = vshrl.u32 %v1921, 7
        %v1923 = vsub.s32 %v1920, %v1922
        %v1924 = vrot.slane %v1908, %v1923
        %v1926 = vunpack.c.l.s4 1966171168
        %v1927 = vunpack.c.0.s8 %v1926
        %v1928 = vlaneseq
        %v1929 = vshrl.u32 %v1928, 7
        %v1930 = vsub.s32 %v1927, %v1929
        %v1931 = vrot.slane %v1909, %v1930
        %v1933 = vunpack.c.l.s4 1966171168
        %v1934 = vunpack.c.0.s8 %v1933
        %v1935 = vlaneseq
        %v1936 = vshrl.u32 %v1935, 7
        %v1937 = vsub.s32 %v1934, %v1936
        %v1938 = vrot.slane %v1910, %v1937
        %v1939 = vcombine.low %v1917, %v1924
        %v1940 = vcombine.low %v1931, %v1938
        %v1942 = vunpack.c.l.s4 1966171168
        %v1943 = vunpack.c.0.s8 %v1942
        %v1944 = vlaneseq
        %v1945 = vshrl.u32 %v1944, 7
        %v1946 = vsub.s32 %v1943, %v1945
        %v1947 = vrot.slane %v1939, %v1946
        %v1949 = vunpack.c.l.s4 1966171168
        %v1950 = vunpack.c.0.s8 %v1949
        %v1951 = vlaneseq
        %v1952 = vshrl.u32 %v1951, 7
        %v1953 = vsub.s32 %v1950, %v1952
        %v1954 = vrot.slane %v1940, %v1953
        %v1955 = vcombine.low %v1947, %v1954
        %v1956 = vcombine.low %v1349, %v1357
        %v1957 = vcombine.low %v1359, %v1342
        %v1958 = vcombine.low %v1356, %v1358
        %v1959 = vcombine.low %v1383, %v1397
        %v1961 = vunpack.c.l.s4 1966171168
        %v1962 = vunpack.c.0.s8 %v1961
        %v1963 = vlaneseq
        %v1964 = vshrl.u32 %v1963, 7
        %v1965 = vsub.s32 %v1962, %v1964
        %v1966 = vrot.slane %v1956, %v1965
        %v1968 = vunpack.c.l.s4 1966171168
        %v1969 = vunpack.c.0.s8 %v1968
        %v1970 = vlaneseq
        %v1971 = vshrl.u32 %v1970, 7
        %v1972 = vsub.s32 %v1969, %v1971
        %v1973 = vrot.slane %v1957, %v1972
        %v1975 = vunpack.c.l.s4 1966171168
        %v1976 = vunpack.c.0.s8 %v1975
        %v1977 = vlaneseq
        %v1978 = vshrl.u32 %v1977, 7
        %v1979 = vsub.s32 %v1976, %v1978
        %v1980 = vrot.slane %v1958, %v1979
        %v1982 = vunpack.c.l.s4 1966171168
        %v1983 = vunpack.c.0.s8 %v1982
        %v1984 = vlaneseq
        %v1985 = vshrl.u32 %v1984, 7
        %v1986 = vsub.s32 %v1983, %v1985
        %v1987 = vrot.slane %v1959, %v1986
        %v1988 = vcombine.low %v1966, %v1973
        %v1989 = vcombine.low %v1980, %v1987
        %v1991 = vunpack.c.l.s4 1966171168
        %v1992 = vunpack.c.0.s8 %v1991
        %v1993 = vlaneseq
        %v1994 = vshrl.u32 %v1993, 7
        %v1995 = vsub.s32 %v1992, %v1994
        %v1996 = vrot.slane %v1988, %v1995
        %v1998 = vunpack.c.l.s4 1966171168
        %v1999 = vunpack.c.0.s8 %v1998
        %v2000 = vlaneseq
        %v2001 = vshrl.u32 %v2000, 7
        %v2002 = vsub.s32 %v1999, %v2001
        %v2003 = vrot.slane %v1989, %v2002
        %v2004 = vcombine.low %v1996, %v2003
        %v2005 = vcombine.low %v1405, %v1407
        %v2006 = vcombine.low %v1390, %v1404
        %v2007 = vcombine.low %v1406, %v1431
        %v2008 = vcombine.low %v1445, %v1453
        %v2010 = vunpack.c.l.s4 1966171168
        %v2011 = vunpack.c.0.s8 %v2010
        %v2012 = vlaneseq
        %v2013 = vshrl.u32 %v2012, 7
        %v2014 = vsub.s32 %v2011, %v2013
        %v2015 = vrot.slane %v2005, %v2014
        %v2017 = vunpack.c.l.s4 1966171168
        %v2018 = vunpack.c.0.s8 %v2017
        %v2019 = vlaneseq
        %v2020 = vshrl.u32 %v2019, 7
        %v2021 = vsub.s32 %v2018, %v2020
        %v2022 = vrot.slane %v2006, %v2021
        %v2024 = vunpack.c.l.s4 1966171168
        %v2025 = vunpack.c.0.s8 %v2024
        %v2026 = vlaneseq
        %v2027 = vshrl.u32 %v2026, 7
        %v2028 = vsub.s32 %v2025, %v2027
        %v2029 = vrot.slane %v2007, %v2028
        %v2031 = vunpack.c.l.s4 1966171168
        %v2032 = vunpack.c.0.s8 %v2031
        %v2033 = vlaneseq
        %v2034 = vshrl.u32 %v2033, 7
        %v2035 = vsub.s32 %v2032, %v2034
        %v2036 = vrot.slane %v2008, %v2035
        %v2037 = vcombine.low %v2015, %v2022
        %v2038 = vcombine.low %v2029, %v2036
        %v2040 = vunpack.c.l.s4 1966171168
        %v2041 = vunpack.c.0.s8 %v2040
        %v2042 = vlaneseq
        %v2043 = vshrl.u32 %v2042, 7
        %v2044 = vsub.s32 %v2041, %v2043
        %v2045 = vrot.slane %v2037, %v2044
        %v2047 = vunpack.c.l.s4 1966171168
        %v2048 = vunpack.c.0.s8 %v2047
        %v2049 = vlaneseq
        %v2050 = vshrl.u32 %v2049, 7
        %v2051 = vsub.s32 %v2048, %v2050
        %v2052 = vrot.slane %v2038, %v2051
        %v2053 = vcombine.low %v2045, %v2052
        %v2054 = vcombine.low %v1455, %v1438
        %v2055 = vcombine.low %v1452, %v1454
        %v2056 = vcombine.low %v1479, %v1493
        %v2057 = vcombine.low %v1501, %v1503
        %v2059 = vunpack.c.l.s4 1966171168
        %v2060 = vunpack.c.0.s8 %v2059
        %v2061 = vlaneseq
        %v2062 = vshrl.u32 %v2061, 7
        %v2063 = vsub.s32 %v2060, %v2062
        %v2064 = vrot.slane %v2054, %v2063
        %v2066 = vunpack.c.l.s4 1966171168
        %v2067 = vunpack.c.0.s8 %v2066
        %v2068 = vlaneseq
        %v2069 = vshrl.u32 %v2068, 7
        %v2070 = vsub.s32 %v2067, %v2069
        %v2071 = vrot.slane %v2055, %v2070
        %v2073 = vunpack.c.l.s4 1966171168
        %v2074 = vunpack.c.0.s8 %v2073
        %v2075 = vlaneseq
        %v2076 = vshrl.u32 %v2075, 7
        %v2077 = vsub.s32 %v2074, %v2076
        %v2078 = vrot.slane %v2056, %v2077
        %v2080 = vunpack.c.l.s4 1966171168
        %v2081 = vunpack.c.0.s8 %v2080
        %v2082 = vlaneseq
        %v2083 = vshrl.u32 %v2082, 7
        %v2084 = vsub.s32 %v2081, %v2083
        %v2085 = vrot.slane %v2057, %v2084
        %v2086 = vcombine.low %v2064, %v2071
        %v2087 = vcombine.low %v2078, %v2085
        %v2089 = vunpack.c.l.s4 1966171168
        %v2090 = vunpack.c.0.s8 %v2089
        %v2091 = vlaneseq
        %v2092 = vshrl.u32 %v2091, 7
        %v2093 = vsub.s32 %v2090, %v2092
        %v2094 = vrot.slane %v2086, %v2093
        %v2096 = vunpack.c.l.s4 1966171168
        %v2097 = vunpack.c.0.s8 %v2096
        %v2098 = vlaneseq
        %v2099 = vshrl.u32 %v2098, 7
        %v2100 = vsub.s32 %v2097, %v2099
        %v2101 = vrot.slane %v2087, %v2100
        %v2102 = vcombine.low %v2094, %v2101
        %v2103 = vcombine.low %v1486, %v1500
        %v2104 = vcombine.low %v1502, %v1527
        %v2105 = vcombine.low %v1541, %v1549
        %v2106 = vcombine.low %v1551, %v1534
        %v2108 = vunpack.c.l.s4 1966171168
        %v2109 = vunpack.c.0.s8 %v2108
        %v2110 = vlaneseq
        %v2111 = vshrl.u32 %v2110, 7
        %v2112 = vsub.s32 %v2109, %v2111
        %v2113 = vrot.slane %v2103, %v2112
        %v2115 = vunpack.c.l.s4 1966171168
        %v2116 = vunpack.c.0.s8 %v2115
        %v2117 = vlaneseq
        %v2118 = vshrl.u32 %v2117, 7
        %v2119 = vsub.s32 %v2116, %v2118
        %v2120 = vrot.slane %v2104, %v2119
        %v2122 = vunpack.c.l.s4 1966171168
        %v2123 = vunpack.c.0.s8 %v2122
        %v2124 = vlaneseq
        %v2125 = vshrl.u32 %v2124, 7
        %v2126 = vsub.s32 %v2123, %v2125
        %v2127 = vrot.slane %v2105, %v2126
        %v2129 = vunpack.c.l.s4 1966171168
        %v2130 = vunpack.c.0.s8 %v2129
        %v2131 = vlaneseq
        %v2132 = vshrl.u32 %v2131, 7
        %v2133 = vsub.s32 %v2130, %v2132
        %v2134 = vrot.slane %v2106, %v2133
        %v2135 = vcombine.low %v2113, %v2120
        %v2136 = vcombine.low %v2127, %v2134
        %v2138 = vunpack.c.l.s4 1966171168
        %v2139 = vunpack.c.0.s8 %v2138
        %v2140 = vlaneseq
        %v2141 = vshrl.u32 %v2140, 7
        %v2142 = vsub.s32 %v2139, %v2141
        %v2143 = vrot.slane %v2135, %v2142
        %v2145 = vunpack.c.l.s4 1966171168
        %v2146 = vunpack.c.0.s8 %v2145
        %v2147 = vlaneseq
        %v2148 = vshrl.u32 %v2147, 7
        %v2149 = vsub.s32 %v2146, %v2148
        %v2150 = vrot.slane %v2136, %v2149
        %v2151 = vcombine.low %v2143, %v2150
        %v2152 = vcombine.low %v1548, %v1550
        %v2154 = vunpack.c.l.s4 1966171168
        %v2155 = vunpack.c.0.s8 %v2154
        %v2156 = vlaneseq
        %v2157 = vshrl.u32 %v2156, 7
        %v2158 = vsub.s32 %v2155, %v2157
        %v2159 = vrot.slane %v2152, %v2158
        %v2161 = vunpack.c.l.s4 1966171168
        %v2162 = vunpack.c.0.s8 %v2161
        %v2163 = vlaneseq
        %v2164 = vshrl.u32 %v2163, 7
        %v2165 = vsub.s32 %v2162, %v2164
        %v2166 = vrot.slane %v2159, %v2165
        %v2172 = vunpack.c.l.b16 %v1552
        %v2173 = vunpack.c.l.b16 %v1553
        %v2174 = vunpack.c.l.b16 %v1554
        %v2175 = vunpack.c.l.b16 %v1555
        %v2176 = vunpack.c.l.b16 %v1556
        %v2177 = vpack.c.b16 %v2173, %v2172
        %v2178 = vpack.c.b16 %v2175, %v2174
        %v2179 = vpack.c.b16 %v2176, %v2176
        %vm2182 = vcmask 293888
        %v2184 = vsel %vm2182, %v1612, 0
        %v2187 = vsel %vm2182, %v1661, 0
        %v2190 = vsel %vm2182, %v1710, 0
        %v2193 = vsel %vm2182, %v1759, 0
        %v2196 = vsel %vm2182, %v1808, 0
        %v2199 = vsel %vm2182, %v1857, 0
        %v2202 = vsel %vm2182, %v1906, 0
        %v2205 = vsel %vm2182, %v1955, 0
        %v2208 = vsel %vm2182, %v2004, 0
        %v2211 = vsel %vm2182, %v2053, 0
        %v2214 = vsel %vm2182, %v2102, 0
        %v2217 = vsel %vm2182, %v2151, 0
        %v2220 = vsel %vm2182, %v2166, 0
        %vm2222 = vcmask 1041408
        %v2224 = vsel %vm2222, %v2179, 0
        %2226 = vmatprep.subr.bf16.mxu0 0
        %2227 = vmatpush1.bf16.msra.mxu0 0
        %2228 = vmatprep.subr.bf16.mxu0 0
        %2229 = vmatpush1.bf16.msra.mxu0 0
        %2230 = vmatprep.subr.bf16.mxu0 0
        %2231 = vmatpush1.bf16.msra.mxu0 0
        %2232 = vmatprep.subr.bf16.mxu0 0
        %2233 = vmatpush1.bf16.msra.mxu0 0
        %2234 = vmatprep.subr.bf16.mxu0 0
        %2235 = vmatpush1.bf16.msra.mxu0 0
        %2236 = vmatprep.subr.bf16.mxu0 0
        %2237 = vmatpush1.bf16.msra.mxu0 %v2224
        %2238 = vmatprep.subr.bf16.mxu0 0
        %2239 = vmatpush1.bf16.msra.mxu0 %v2178
        %2240 = vmatprep.subr.bf16.mxu0 0
        %2241 = vmatpush1.bf16.msra.mxu0 %v2177
        %2242 = vmatprep.subr.bf16.mxu0 0
        %2243 = vmatpush2.bf16.msra.mxu0 0
        %2244 = vmatprep.subr.bf16.mxu0 0
        %2245 = vmatpush2.bf16.msra.mxu0 0
        %2246 = vmatprep.subr.bf16.mxu0 0
        %2247 = vmatpush2.bf16.msra.mxu0 0
        %2248 = vmatprep.subr.bf16.mxu0 0
        %2249 = vmatpush2.bf16.msra.mxu0 0
        %2250 = vmatprep.subr.bf16.mxu0 0
        %2251 = vmatpush2.bf16.msra.mxu0 0
        %2252 = vmatprep.subr.bf16.mxu0 0
        %2253 = vmatpush2.bf16.msra.mxu0 0
        %2254 = vmatprep.subr.bf16.mxu0 0
        %2255 = vmatpush2.bf16.msra.mxu0 0
        %2256 = vmatprep.subr.bf16.mxu0 0
        %2257 = vmatpush2.bf16.msra.mxu0 0
        %2258 = vmatprep.mubr.bf16.mxu0 0
        %2259 = vmatmul.mubr.bf16.gmra.mxu0 %v2184
        %v2260 = vpop.f32.mrf.mxu0
        %v2261 = vadd.f32 %v1562, %v2260
        %v2262 = vpop.f32.mrf.mxu0
        %v2263 = vpop.f32.mrf.mxu0
        %v2264 = vadd.f32 %v1562, %v2263
        %v2265 = vpop.f32.mrf.mxu0
        %2266 = vmatprep.mubr.bf16.mxu0 0
        %2267 = vmatmul.mubr.bf16.gmra.mxu0 %v2187
        %v2268 = vpop.f32.mrf.mxu0
        %v2269 = vadd.f32 %v1562, %v2268
        %v2270 = vpop.f32.mrf.mxu0
        %v2271 = vpop.f32.mrf.mxu0
        %v2272 = vadd.f32 %v1562, %v2271
        %v2273 = vpop.f32.mrf.mxu0
        %2274 = vmatprep.mubr.bf16.mxu0 0
        %2275 = vmatmul.mubr.bf16.gmra.mxu0 %v2190
        %v2276 = vpop.f32.mrf.mxu0
        %v2277 = vadd.f32 %v1562, %v2276
        %v2278 = vpop.f32.mrf.mxu0
        %v2279 = vpop.f32.mrf.mxu0
        %v2280 = vadd.f32 %v1562, %v2279
        %v2281 = vpop.f32.mrf.mxu0
        %2282 = vmatprep.mubr.bf16.mxu0 0
        %2283 = vmatmul.mubr.bf16.gmra.mxu0 %v2193
        %v2284 = vpop.f32.mrf.mxu0
        %v2285 = vadd.f32 %v1562, %v2284
        %v2286 = vpop.f32.mrf.mxu0
        %v2287 = vpop.f32.mrf.mxu0
        %v2288 = vadd.f32 %v1562, %v2287
        %v2289 = vpop.f32.mrf.mxu0
        %2290 = vmatprep.mubr.bf16.mxu0 0
        %2291 = vmatmul.mubr.bf16.gmra.mxu0 %v2196
        %v2292 = vpop.f32.mrf.mxu0
        %v2293 = vadd.f32 %v1562, %v2292
        %v2294 = vpop.f32.mrf.mxu0
        %v2295 = vpop.f32.mrf.mxu0
        %v2296 = vadd.f32 %v1562, %v2295
        %v2297 = vpop.f32.mrf.mxu0
        %2298 = vmatprep.mubr.bf16.mxu0 0
        %2299 = vmatmul.mubr.bf16.gmra.mxu0 %v2199
        %v2300 = vpop.f32.mrf.mxu0
        %v2301 = vadd.f32 %v1562, %v2300
        %v2302 = vpop.f32.mrf.mxu0
        %v2303 = vpop.f32.mrf.mxu0
        %v2304 = vadd.f32 %v1562, %v2303
        %v2305 = vpop.f32.mrf.mxu0
        %2306 = vmatprep.mubr.bf16.mxu0 0
        %2307 = vmatmul.mubr.bf16.gmra.mxu0 %v2202
        %v2308 = vpop.f32.mrf.mxu0
        %v2309 = vadd.f32 %v1562, %v2308
        %v2310 = vpop.f32.mrf.mxu0
        %v2311 = vpop.f32.mrf.mxu0
        %v2312 = vadd.f32 %v1562, %v2311
        %v2313 = vpop.f32.mrf.mxu0
        %2314 = vmatprep.mubr.bf16.mxu0 0
        %2315 = vmatmul.mubr.bf16.gmra.mxu0 %v2205
        %v2316 = vpop.f32.mrf.mxu0
        %v2317 = vadd.f32 %v1562, %v2316
        %v2318 = vpop.f32.mrf.mxu0
        %v2319 = vpop.f32.mrf.mxu0
        %v2320 = vadd.f32 %v1562, %v2319
        %v2321 = vpop.f32.mrf.mxu0
        %2322 = vmatprep.mubr.bf16.mxu0 0
        %2323 = vmatmul.mubr.bf16.gmra.mxu0 %v2208
        %v2324 = vpop.f32.mrf.mxu0
        %v2325 = vadd.f32 %v1562, %v2324
        %v2326 = vpop.f32.mrf.mxu0
        %v2327 = vpop.f32.mrf.mxu0
        %v2328 = vadd.f32 %v1562, %v2327
        %v2329 = vpop.f32.mrf.mxu0
        %2330 = vmatprep.mubr.bf16.mxu0 0
        %2331 = vmatmul.mubr.bf16.gmra.mxu0 %v2211
        %v2332 = vpop.f32.mrf.mxu0
        %v2333 = vadd.f32 %v1562, %v2332
        %v2334 = vpop.f32.mrf.mxu0
        %v2335 = vpop.f32.mrf.mxu0
        %v2336 = vadd.f32 %v1562, %v2335
        %v2337 = vpop.f32.mrf.mxu0
        %2338 = vmatprep.mubr.bf16.mxu0 0
        %2339 = vmatmul.mubr.bf16.gmra.mxu0 %v2214
        %v2340 = vpop.f32.mrf.mxu0
        %v2341 = vadd.f32 %v1562, %v2340
        %v2342 = vpop.f32.mrf.mxu0
        %v2343 = vpop.f32.mrf.mxu0
        %v2344 = vadd.f32 %v1562, %v2343
        %v2345 = vpop.f32.mrf.mxu0
        %2346 = vmatprep.mubr.bf16.mxu0 0
        %2347 = vmatmul.mubr.bf16.gmra.mxu0 %v2217
        %v2348 = vpop.f32.mrf.mxu0
        %v2349 = vadd.f32 %v1562, %v2348
        %v2350 = vpop.f32.mrf.mxu0
        %v2351 = vpop.f32.mrf.mxu0
        %v2352 = vadd.f32 %v1562, %v2351
        %v2353 = vpop.f32.mrf.mxu0
        %2354 = vmatprep.mubr.bf16.mxu0 0
        %2355 = vmatmul.mubr.bf16.gmra.mxu0 %v2220
        %v2356 = vpop.f32.mrf.mxu0
        %v2357 = vadd.f32 %v1562, %v2356
        %v2358 = vpop.f32.mrf.mxu0
        %v2359 = vpop.f32.mrf.mxu0
        %v2360 = vpop.f32.mrf.mxu0
        %2361 = vdwg.mxu0
        %v2362 = vmax.f32 %v2261, 0.0
        %v2363 = vmax.f32 %v2264, 0.0
        %v2364 = vmax.f32 %v2269, 0.0
        %v2365 = vmax.f32 %v2272, 0.0
        %v2366 = vmax.f32 %v2277, 0.0
        %v2367 = vmax.f32 %v2280, 0.0
        %v2368 = vmax.f32 %v2285, 0.0
        %v2369 = vmax.f32 %v2288, 0.0
        %v2370 = vmax.f32 %v2293, 0.0
        %v2371 = vmax.f32 %v2296, 0.0
        %v2372 = vmax.f32 %v2301, 0.0
        %v2373 = vmax.f32 %v2304, 0.0
        %v2374 = vmax.f32 %v2309, 0.0
        %v2375 = vmax.f32 %v2312, 0.0
        %v2376 = vmax.f32 %v2317, 0.0
        %v2377 = vmax.f32 %v2320, 0.0
        %v2378 = vmax.f32 %v2325, 0.0
        %v2379 = vmax.f32 %v2328, 0.0
        %v2380 = vmax.f32 %v2333, 0.0
        %v2381 = vmax.f32 %v2336, 0.0
        %v2382 = vmax.f32 %v2341, 0.0
        %v2383 = vmax.f32 %v2344, 0.0
        %v2384 = vmax.f32 %v2349, 0.0
        %v2385 = vmax.f32 %v2352, 0.0
        %v2386 = vmax.f32 %v2357, 0.0
        %v2412 = vcombine.high %v2362, %v2362
        %v2414 = vunpack.c.l.s4 1983009808
        %v2415 = vunpack.c.0.s8 %v2414
        %v2416 = vlaneseq
        %v2417 = vshrl.u32 %v2416, 7
        %v2418 = vsub.s32 %v2415, %v2417
        %v2419 = vrot.slane %v2362, %v2418
        %v2421 = vunpack.c.l.s4 1983009808
        %v2422 = vunpack.c.0.s8 %v2421
        %v2423 = vlaneseq
        %v2424 = vshrl.u32 %v2423, 7
        %v2425 = vsub.s32 %v2422, %v2424
        %v2426 = vrot.slane %v2412, %v2425
        %v2427 = vcombine.high %v2419, %v2419
        %v2428 = vcombine.high %v2426, %v2426
        %v2429 = vcombine.high %v2363, %v2363
        %v2431 = vunpack.c.l.s4 1983009808
        %v2432 = vunpack.c.0.s8 %v2431
        %v2433 = vlaneseq
        %v2434 = vshrl.u32 %v2433, 7
        %v2435 = vsub.s32 %v2432, %v2434
        %v2436 = vrot.slane %v2363, %v2435
        %v2438 = vunpack.c.l.s4 1983009808
        %v2439 = vunpack.c.0.s8 %v2438
        %v2440 = vlaneseq
        %v2441 = vshrl.u32 %v2440, 7
        %v2442 = vsub.s32 %v2439, %v2441
        %v2443 = vrot.slane %v2429, %v2442
        %v2444 = vcombine.high %v2436, %v2436
        %v2445 = vcombine.high %v2443, %v2443
        %v2446 = vcombine.high %v2364, %v2364
        %v2448 = vunpack.c.l.s4 1983009808
        %v2449 = vunpack.c.0.s8 %v2448
        %v2450 = vlaneseq
        %v2451 = vshrl.u32 %v2450, 7
        %v2452 = vsub.s32 %v2449, %v2451
        %v2453 = vrot.slane %v2364, %v2452
        %v2455 = vunpack.c.l.s4 1983009808
        %v2456 = vunpack.c.0.s8 %v2455
        %v2457 = vlaneseq
        %v2458 = vshrl.u32 %v2457, 7
        %v2459 = vsub.s32 %v2456, %v2458
        %v2460 = vrot.slane %v2446, %v2459
        %v2461 = vcombine.high %v2453, %v2453
        %v2462 = vcombine.high %v2460, %v2460
        %v2463 = vcombine.high %v2365, %v2365
        %v2465 = vunpack.c.l.s4 1983009808
        %v2466 = vunpack.c.0.s8 %v2465
        %v2467 = vlaneseq
        %v2468 = vshrl.u32 %v2467, 7
        %v2469 = vsub.s32 %v2466, %v2468
        %v2470 = vrot.slane %v2365, %v2469
        %v2472 = vunpack.c.l.s4 1983009808
        %v2473 = vunpack.c.0.s8 %v2472
        %v2474 = vlaneseq
        %v2475 = vshrl.u32 %v2474, 7
        %v2476 = vsub.s32 %v2473, %v2475
        %v2477 = vrot.slane %v2463, %v2476
        %v2478 = vcombine.high %v2470, %v2470
        %v2479 = vcombine.high %v2477, %v2477
        %v2480 = vcombine.high %v2366, %v2366
        %v2482 = vunpack.c.l.s4 1983009808
        %v2483 = vunpack.c.0.s8 %v2482
        %v2484 = vlaneseq
        %v2485 = vshrl.u32 %v2484, 7
        %v2486 = vsub.s32 %v2483, %v2485
        %v2487 = vrot.slane %v2366, %v2486
        %v2489 = vunpack.c.l.s4 1983009808
        %v2490 = vunpack.c.0.s8 %v2489
        %v2491 = vlaneseq
        %v2492 = vshrl.u32 %v2491, 7
        %v2493 = vsub.s32 %v2490, %v2492
        %v2494 = vrot.slane %v2480, %v2493
        %v2495 = vcombine.high %v2487, %v2487
        %v2496 = vcombine.high %v2494, %v2494
        %v2497 = vcombine.high %v2367, %v2367
        %v2499 = vunpack.c.l.s4 1983009808
        %v2500 = vunpack.c.0.s8 %v2499
        %v2501 = vlaneseq
        %v2502 = vshrl.u32 %v2501, 7
        %v2503 = vsub.s32 %v2500, %v2502
        %v2504 = vrot.slane %v2367, %v2503
        %v2506 = vunpack.c.l.s4 1983009808
        %v2507 = vunpack.c.0.s8 %v2506
        %v2508 = vlaneseq
        %v2509 = vshrl.u32 %v2508, 7
        %v2510 = vsub.s32 %v2507, %v2509
        %v2511 = vrot.slane %v2497, %v2510
        %v2512 = vcombine.high %v2504, %v2504
        %v2513 = vcombine.high %v2511, %v2511
        %v2514 = vcombine.high %v2368, %v2368
        %v2516 = vunpack.c.l.s4 1983009808
        %v2517 = vunpack.c.0.s8 %v2516
        %v2518 = vlaneseq
        %v2519 = vshrl.u32 %v2518, 7
        %v2520 = vsub.s32 %v2517, %v2519
        %v2521 = vrot.slane %v2368, %v2520
        %v2523 = vunpack.c.l.s4 1983009808
        %v2524 = vunpack.c.0.s8 %v2523
        %v2525 = vlaneseq
        %v2526 = vshrl.u32 %v2525, 7
        %v2527 = vsub.s32 %v2524, %v2526
        %v2528 = vrot.slane %v2514, %v2527
        %v2529 = vcombine.high %v2521, %v2521
        %v2530 = vcombine.high %v2528, %v2528
        %v2531 = vcombine.high %v2369, %v2369
        %v2533 = vunpack.c.l.s4 1983009808
        %v2534 = vunpack.c.0.s8 %v2533
        %v2535 = vlaneseq
        %v2536 = vshrl.u32 %v2535, 7
        %v2537 = vsub.s32 %v2534, %v2536
        %v2538 = vrot.slane %v2369, %v2537
        %v2540 = vunpack.c.l.s4 1983009808
        %v2541 = vunpack.c.0.s8 %v2540
        %v2542 = vlaneseq
        %v2543 = vshrl.u32 %v2542, 7
        %v2544 = vsub.s32 %v2541, %v2543
        %v2545 = vrot.slane %v2531, %v2544
        %v2546 = vcombine.high %v2538, %v2538
        %v2547 = vcombine.high %v2545, %v2545
        %v2548 = vcombine.high %v2370, %v2370
        %v2550 = vunpack.c.l.s4 1983009808
        %v2551 = vunpack.c.0.s8 %v2550
        %v2552 = vlaneseq
        %v2553 = vshrl.u32 %v2552, 7
        %v2554 = vsub.s32 %v2551, %v2553
        %v2555 = vrot.slane %v2370, %v2554
        %v2557 = vunpack.c.l.s4 1983009808
        %v2558 = vunpack.c.0.s8 %v2557
        %v2559 = vlaneseq
        %v2560 = vshrl.u32 %v2559, 7
        %v2561 = vsub.s32 %v2558, %v2560
        %v2562 = vrot.slane %v2548, %v2561
        %v2563 = vcombine.high %v2555, %v2555
        %v2564 = vcombine.high %v2562, %v2562
        %v2565 = vcombine.high %v2371, %v2371
        %v2567 = vunpack.c.l.s4 1983009808
        %v2568 = vunpack.c.0.s8 %v2567
        %v2569 = vlaneseq
        %v2570 = vshrl.u32 %v2569, 7
        %v2571 = vsub.s32 %v2568, %v2570
        %v2572 = vrot.slane %v2371, %v2571
        %v2574 = vunpack.c.l.s4 1983009808
        %v2575 = vunpack.c.0.s8 %v2574
        %v2576 = vlaneseq
        %v2577 = vshrl.u32 %v2576, 7
        %v2578 = vsub.s32 %v2575, %v2577
        %v2579 = vrot.slane %v2565, %v2578
        %v2580 = vcombine.high %v2572, %v2572
        %v2581 = vcombine.high %v2579, %v2579
        %v2582 = vcombine.high %v2372, %v2372
        %v2584 = vunpack.c.l.s4 1983009808
        %v2585 = vunpack.c.0.s8 %v2584
        %v2586 = vlaneseq
        %v2587 = vshrl.u32 %v2586, 7
        %v2588 = vsub.s32 %v2585, %v2587
        %v2589 = vrot.slane %v2372, %v2588
        %v2591 = vunpack.c.l.s4 1983009808
        %v2592 = vunpack.c.0.s8 %v2591
        %v2593 = vlaneseq
        %v2594 = vshrl.u32 %v2593, 7
        %v2595 = vsub.s32 %v2592, %v2594
        %v2596 = vrot.slane %v2582, %v2595
        %v2597 = vcombine.high %v2589, %v2589
        %v2598 = vcombine.high %v2596, %v2596
        %v2599 = vcombine.high %v2373, %v2373
        %v2601 = vunpack.c.l.s4 1983009808
        %v2602 = vunpack.c.0.s8 %v2601
        %v2603 = vlaneseq
        %v2604 = vshrl.u32 %v2603, 7
        %v2605 = vsub.s32 %v2602, %v2604
        %v2606 = vrot.slane %v2373, %v2605
        %v2608 = vunpack.c.l.s4 1983009808
        %v2609 = vunpack.c.0.s8 %v2608
        %v2610 = vlaneseq
        %v2611 = vshrl.u32 %v2610, 7
        %v2612 = vsub.s32 %v2609, %v2611
        %v2613 = vrot.slane %v2599, %v2612
        %v2614 = vcombine.high %v2606, %v2606
        %v2615 = vcombine.high %v2613, %v2613
        %v2616 = vcombine.high %v2374, %v2374
        %v2618 = vunpack.c.l.s4 1983009808
        %v2619 = vunpack.c.0.s8 %v2618
        %v2620 = vlaneseq
        %v2621 = vshrl.u32 %v2620, 7
        %v2622 = vsub.s32 %v2619, %v2621
        %v2623 = vrot.slane %v2374, %v2622
        %v2625 = vunpack.c.l.s4 1983009808
        %v2626 = vunpack.c.0.s8 %v2625
        %v2627 = vlaneseq
        %v2628 = vshrl.u32 %v2627, 7
        %v2629 = vsub.s32 %v2626, %v2628
        %v2630 = vrot.slane %v2616, %v2629
        %v2631 = vcombine.high %v2623, %v2623
        %v2632 = vcombine.high %v2630, %v2630
        %v2633 = vcombine.high %v2375, %v2375
        %v2635 = vunpack.c.l.s4 1983009808
        %v2636 = vunpack.c.0.s8 %v2635
        %v2637 = vlaneseq
        %v2638 = vshrl.u32 %v2637, 7
        %v2639 = vsub.s32 %v2636, %v2638
        %v2640 = vrot.slane %v2375, %v2639
        %v2642 = vunpack.c.l.s4 1983009808
        %v2643 = vunpack.c.0.s8 %v2642
        %v2644 = vlaneseq
        %v2645 = vshrl.u32 %v2644, 7
        %v2646 = vsub.s32 %v2643, %v2645
        %v2647 = vrot.slane %v2633, %v2646
        %v2648 = vcombine.high %v2640, %v2640
        %v2649 = vcombine.high %v2647, %v2647
        %v2650 = vcombine.high %v2376, %v2376
        %v2652 = vunpack.c.l.s4 1983009808
        %v2653 = vunpack.c.0.s8 %v2652
        %v2654 = vlaneseq
        %v2655 = vshrl.u32 %v2654, 7
        %v2656 = vsub.s32 %v2653, %v2655
        %v2657 = vrot.slane %v2376, %v2656
        %v2659 = vunpack.c.l.s4 1983009808
        %v2660 = vunpack.c.0.s8 %v2659
        %v2661 = vlaneseq
        %v2662 = vshrl.u32 %v2661, 7
        %v2663 = vsub.s32 %v2660, %v2662
        %v2664 = vrot.slane %v2650, %v2663
        %v2665 = vcombine.high %v2657, %v2657
        %v2666 = vcombine.high %v2664, %v2664
        %v2667 = vcombine.high %v2377, %v2377
        %v2669 = vunpack.c.l.s4 1983009808
        %v2670 = vunpack.c.0.s8 %v2669
        %v2671 = vlaneseq
        %v2672 = vshrl.u32 %v2671, 7
        %v2673 = vsub.s32 %v2670, %v2672
        %v2674 = vrot.slane %v2377, %v2673
        %v2676 = vunpack.c.l.s4 1983009808
        %v2677 = vunpack.c.0.s8 %v2676
        %v2678 = vlaneseq
        %v2679 = vshrl.u32 %v2678, 7
        %v2680 = vsub.s32 %v2677, %v2679
        %v2681 = vrot.slane %v2667, %v2680
        %v2682 = vcombine.high %v2674, %v2674
        %v2683 = vcombine.high %v2681, %v2681
        %v2684 = vcombine.high %v2378, %v2378
        %v2686 = vunpack.c.l.s4 1983009808
        %v2687 = vunpack.c.0.s8 %v2686
        %v2688 = vlaneseq
        %v2689 = vshrl.u32 %v2688, 7
        %v2690 = vsub.s32 %v2687, %v2689
        %v2691 = vrot.slane %v2378, %v2690
        %v2693 = vunpack.c.l.s4 1983009808
        %v2694 = vunpack.c.0.s8 %v2693
        %v2695 = vlaneseq
        %v2696 = vshrl.u32 %v2695, 7
        %v2697 = vsub.s32 %v2694, %v2696
        %v2698 = vrot.slane %v2684, %v2697
        %v2699 = vcombine.high %v2691, %v2691
        %v2700 = vcombine.high %v2698, %v2698
        %v2701 = vcombine.high %v2379, %v2379
        %v2703 = vunpack.c.l.s4 1983009808
        %v2704 = vunpack.c.0.s8 %v2703
        %v2705 = vlaneseq
        %v2706 = vshrl.u32 %v2705, 7
        %v2707 = vsub.s32 %v2704, %v2706
        %v2708 = vrot.slane %v2379, %v2707
        %v2710 = vunpack.c.l.s4 1983009808
        %v2711 = vunpack.c.0.s8 %v2710
        %v2712 = vlaneseq
        %v2713 = vshrl.u32 %v2712, 7
        %v2714 = vsub.s32 %v2711, %v2713
        %v2715 = vrot.slane %v2701, %v2714
        %v2716 = vcombine.high %v2708, %v2708
        %v2717 = vcombine.high %v2715, %v2715
        %v2718 = vcombine.high %v2380, %v2380
        %v2720 = vunpack.c.l.s4 1983009808
        %v2721 = vunpack.c.0.s8 %v2720
        %v2722 = vlaneseq
        %v2723 = vshrl.u32 %v2722, 7
        %v2724 = vsub.s32 %v2721, %v2723
        %v2725 = vrot.slane %v2380, %v2724
        %v2727 = vunpack.c.l.s4 1983009808
        %v2728 = vunpack.c.0.s8 %v2727
        %v2729 = vlaneseq
        %v2730 = vshrl.u32 %v2729, 7
        %v2731 = vsub.s32 %v2728, %v2730
        %v2732 = vrot.slane %v2718, %v2731
        %v2733 = vcombine.high %v2725, %v2725
        %v2734 = vcombine.high %v2732, %v2732
        %v2735 = vcombine.high %v2381, %v2381
        %v2737 = vunpack.c.l.s4 1983009808
        %v2738 = vunpack.c.0.s8 %v2737
        %v2739 = vlaneseq
        %v2740 = vshrl.u32 %v2739, 7
        %v2741 = vsub.s32 %v2738, %v2740
        %v2742 = vrot.slane %v2381, %v2741
        %v2744 = vunpack.c.l.s4 1983009808
        %v2745 = vunpack.c.0.s8 %v2744
        %v2746 = vlaneseq
        %v2747 = vshrl.u32 %v2746, 7
        %v2748 = vsub.s32 %v2745, %v2747
        %v2749 = vrot.slane %v2735, %v2748
        %v2750 = vcombine.high %v2742, %v2742
        %v2751 = vcombine.high %v2749, %v2749
        %v2752 = vcombine.high %v2382, %v2382
        %v2754 = vunpack.c.l.s4 1983009808
        %v2755 = vunpack.c.0.s8 %v2754
        %v2756 = vlaneseq
        %v2757 = vshrl.u32 %v2756, 7
        %v2758 = vsub.s32 %v2755, %v2757
        %v2759 = vrot.slane %v2382, %v2758
        %v2761 = vunpack.c.l.s4 1983009808
        %v2762 = vunpack.c.0.s8 %v2761
        %v2763 = vlaneseq
        %v2764 = vshrl.u32 %v2763, 7
        %v2765 = vsub.s32 %v2762, %v2764
        %v2766 = vrot.slane %v2752, %v2765
        %v2767 = vcombine.high %v2759, %v2759
        %v2768 = vcombine.high %v2766, %v2766
        %v2769 = vcombine.high %v2383, %v2383
        %v2771 = vunpack.c.l.s4 1983009808
        %v2772 = vunpack.c.0.s8 %v2771
        %v2773 = vlaneseq
        %v2774 = vshrl.u32 %v2773, 7
        %v2775 = vsub.s32 %v2772, %v2774
        %v2776 = vrot.slane %v2383, %v2775
        %v2778 = vunpack.c.l.s4 1983009808
        %v2779 = vunpack.c.0.s8 %v2778
        %v2780 = vlaneseq
        %v2781 = vshrl.u32 %v2780, 7
        %v2782 = vsub.s32 %v2779, %v2781
        %v2783 = vrot.slane %v2769, %v2782
        %v2784 = vcombine.high %v2776, %v2776
        %v2785 = vcombine.high %v2783, %v2783
        %v2786 = vcombine.high %v2384, %v2384
        %v2788 = vunpack.c.l.s4 1983009808
        %v2789 = vunpack.c.0.s8 %v2788
        %v2790 = vlaneseq
        %v2791 = vshrl.u32 %v2790, 7
        %v2792 = vsub.s32 %v2789, %v2791
        %v2793 = vrot.slane %v2384, %v2792
        %v2795 = vunpack.c.l.s4 1983009808
        %v2796 = vunpack.c.0.s8 %v2795
        %v2797 = vlaneseq
        %v2798 = vshrl.u32 %v2797, 7
        %v2799 = vsub.s32 %v2796, %v2798
        %v2800 = vrot.slane %v2786, %v2799
        %v2801 = vcombine.high %v2793, %v2793
        %v2802 = vcombine.high %v2800, %v2800
        %v2803 = vcombine.high %v2385, %v2385
        %v2805 = vunpack.c.l.s4 1983009808
        %v2806 = vunpack.c.0.s8 %v2805
        %v2807 = vlaneseq
        %v2808 = vshrl.u32 %v2807, 7
        %v2809 = vsub.s32 %v2806, %v2808
        %v2810 = vrot.slane %v2385, %v2809
        %v2812 = vunpack.c.l.s4 1983009808
        %v2813 = vunpack.c.0.s8 %v2812
        %v2814 = vlaneseq
        %v2815 = vshrl.u32 %v2814, 7
        %v2816 = vsub.s32 %v2813, %v2815
        %v2817 = vrot.slane %v2803, %v2816
        %v2818 = vcombine.high %v2810, %v2810
        %v2819 = vcombine.high %v2817, %v2817
        %v2821 = vunpack.c.l.s4 1983009808
        %v2822 = vunpack.c.0.s8 %v2821
        %v2823 = vlaneseq
        %v2824 = vshrl.u32 %v2823, 7
        %v2825 = vsub.s32 %v2822, %v2824
        %v2826 = vrot.slane %v2386, %v2825
        %v2827 = vcombine.high %v2826, %v2826
        %v2828 = vcombine.low %v2419, %v2427
        %v2829 = vcombine.low %v2426, %v2428
        %v2831 = vunpack.c.l.s4 1983009808
        %v2832 = vunpack.c.0.s8 %v2831
        %v2833 = vlaneseq
        %v2834 = vshrl.u32 %v2833, 7
        %v2835 = vsub.s32 %v2832, %v2834
        %v2836 = vrot.slane %v2828, %v2835
        %v2838 = vunpack.c.l.s4 1983009808
        %v2839 = vunpack.c.0.s8 %v2838
        %v2840 = vlaneseq
        %v2841 = vshrl.u32 %v2840, 7
        %v2842 = vsub.s32 %v2839, %v2841
        %v2843 = vrot.slane %v2829, %v2842
        %v2844 = vcombine.low %v2836, %v2843
        %v2845 = vcombine.low %v2436, %v2444
        %v2847 = vunpack.c.l.s4 1983009808
        %v2848 = vunpack.c.0.s8 %v2847
        %v2849 = vlaneseq
        %v2850 = vshrl.u32 %v2849, 7
        %v2851 = vsub.s32 %v2848, %v2850
        %v2852 = vrot.slane %v2845, %v2851
        %v2854 = vunpack.c.l.s4 1983009808
        %v2855 = vunpack.c.0.s8 %v2854
        %v2856 = vlaneseq
        %v2857 = vshrl.u32 %v2856, 7
        %v2858 = vsub.s32 %v2855, %v2857
        %v2859 = vrot.slane %v2443, %v2858
        %v2860 = vcombine.low %v2852, %v2859
        %v2861 = vcombine.low %v2445, %v2453
        %v2862 = vcombine.low %v2461, %v2460
        %v2864 = vunpack.c.l.s4 1983009808
        %v2865 = vunpack.c.0.s8 %v2864
        %v2866 = vlaneseq
        %v2867 = vshrl.u32 %v2866, 7
        %v2868 = vsub.s32 %v2865, %v2867
        %v2869 = vrot.slane %v2861, %v2868
        %v2871 = vunpack.c.l.s4 1983009808
        %v2872 = vunpack.c.0.s8 %v2871
        %v2873 = vlaneseq
        %v2874 = vshrl.u32 %v2873, 7
        %v2875 = vsub.s32 %v2872, %v2874
        %v2876 = vrot.slane %v2862, %v2875
        %v2877 = vcombine.low %v2869, %v2876
        %v2878 = vcombine.low %v2462, %v2470
        %v2880 = vunpack.c.l.s4 1983009808
        %v2881 = vunpack.c.0.s8 %v2880
        %v2882 = vlaneseq
        %v2883 = vshrl.u32 %v2882, 7
        %v2884 = vsub.s32 %v2881, %v2883
        %v2885 = vrot.slane %v2878, %v2884
        %v2887 = vunpack.c.l.s4 1983009808
        %v2888 = vunpack.c.0.s8 %v2887
        %v2889 = vlaneseq
        %v2890 = vshrl.u32 %v2889, 7
        %v2891 = vsub.s32 %v2888, %v2890
        %v2892 = vrot.slane %v2478, %v2891
        %v2893 = vcombine.low %v2885, %v2892
        %v2894 = vcombine.low %v2477, %v2479
        %v2895 = vcombine.low %v2487, %v2495
        %v2897 = vunpack.c.l.s4 1983009808
        %v2898 = vunpack.c.0.s8 %v2897
        %v2899 = vlaneseq
        %v2900 = vshrl.u32 %v2899, 7
        %v2901 = vsub.s32 %v2898, %v2900
        %v2902 = vrot.slane %v2894, %v2901
        %v2904 = vunpack.c.l.s4 1983009808
        %v2905 = vunpack.c.0.s8 %v2904
        %v2906 = vlaneseq
        %v2907 = vshrl.u32 %v2906, 7
        %v2908 = vsub.s32 %v2905, %v2907
        %v2909 = vrot.slane %v2895, %v2908
        %v2910 = vcombine.low %v2902, %v2909
        %v2911 = vcombine.low %v2494, %v2496
        %v2913 = vunpack.c.l.s4 1983009808
        %v2914 = vunpack.c.0.s8 %v2913
        %v2915 = vlaneseq
        %v2916 = vshrl.u32 %v2915, 7
        %v2917 = vsub.s32 %v2914, %v2916
        %v2918 = vrot.slane %v2911, %v2917
        %v2920 = vunpack.c.l.s4 1983009808
        %v2921 = vunpack.c.0.s8 %v2920
        %v2922 = vlaneseq
        %v2923 = vshrl.u32 %v2922, 7
        %v2924 = vsub.s32 %v2921, %v2923
        %v2925 = vrot.slane %v2504, %v2924
        %v2926 = vcombine.low %v2918, %v2925
        %v2927 = vcombine.low %v2512, %v2511
        %v2928 = vcombine.low %v2513, %v2521
        %v2930 = vunpack.c.l.s4 1983009808
        %v2931 = vunpack.c.0.s8 %v2930
        %v2932 = vlaneseq
        %v2933 = vshrl.u32 %v2932, 7
        %v2934 = vsub.s32 %v2931, %v2933
        %v2935 = vrot.slane %v2927, %v2934
        %v2937 = vunpack.c.l.s4 1983009808
        %v2938 = vunpack.c.0.s8 %v2937
        %v2939 = vlaneseq
        %v2940 = vshrl.u32 %v2939, 7
        %v2941 = vsub.s32 %v2938, %v2940
        %v2942 = vrot.slane %v2928, %v2941
        %v2943 = vcombine.low %v2935, %v2942
        %v2944 = vcombine.low %v2529, %v2528
        %v2946 = vunpack.c.l.s4 1983009808
        %v2947 = vunpack.c.0.s8 %v2946
        %v2948 = vlaneseq
        %v2949 = vshrl.u32 %v2948, 7
        %v2950 = vsub.s32 %v2947, %v2949
        %v2951 = vrot.slane %v2944, %v2950
        %v2953 = vunpack.c.l.s4 1983009808
        %v2954 = vunpack.c.0.s8 %v2953
        %v2955 = vlaneseq
        %v2956 = vshrl.u32 %v2955, 7
        %v2957 = vsub.s32 %v2954, %v2956
        %v2958 = vrot.slane %v2530, %v2957
        %v2959 = vcombine.low %v2951, %v2958
        %v2960 = vcombine.low %v2538, %v2546
        %v2961 = vcombine.low %v2545, %v2547
        %v2963 = vunpack.c.l.s4 1983009808
        %v2964 = vunpack.c.0.s8 %v2963
        %v2965 = vlaneseq
        %v2966 = vshrl.u32 %v2965, 7
        %v2967 = vsub.s32 %v2964, %v2966
        %v2968 = vrot.slane %v2960, %v2967
        %v2970 = vunpack.c.l.s4 1983009808
        %v2971 = vunpack.c.0.s8 %v2970
        %v2972 = vlaneseq
        %v2973 = vshrl.u32 %v2972, 7
        %v2974 = vsub.s32 %v2971, %v2973
        %v2975 = vrot.slane %v2961, %v2974
        %v2976 = vcombine.low %v2968, %v2975
        %v2977 = vcombine.low %v2555, %v2563
        %v2979 = vunpack.c.l.s4 1983009808
        %v2980 = vunpack.c.0.s8 %v2979
        %v2981 = vlaneseq
        %v2982 = vshrl.u32 %v2981, 7
        %v2983 = vsub.s32 %v2980, %v2982
        %v2984 = vrot.slane %v2977, %v2983
        %v2986 = vunpack.c.l.s4 1983009808
        %v2987 = vunpack.c.0.s8 %v2986
        %v2988 = vlaneseq
        %v2989 = vshrl.u32 %v2988, 7
        %v2990 = vsub.s32 %v2987, %v2989
        %v2991 = vrot.slane %v2562, %v2990
        %v2992 = vcombine.low %v2984, %v2991
        %v2993 = vcombine.low %v2564, %v2572
        %v2994 = vcombine.low %v2580, %v2579
        %v2996 = vunpack.c.l.s4 1983009808
        %v2997 = vunpack.c.0.s8 %v2996
        %v2998 = vlaneseq
        %v2999 = vshrl.u32 %v2998, 7
        %v3000 = vsub.s32 %v2997, %v2999
        %v3001 = vrot.slane %v2993, %v3000
        %v3003 = vunpack.c.l.s4 1983009808
        %v3004 = vunpack.c.0.s8 %v3003
        %v3005 = vlaneseq
        %v3006 = vshrl.u32 %v3005, 7
        %v3007 = vsub.s32 %v3004, %v3006
        %v3008 = vrot.slane %v2994, %v3007
        %v3009 = vcombine.low %v3001, %v3008
        %v3010 = vcombine.low %v2581, %v2589
        %v3012 = vunpack.c.l.s4 1983009808
        %v3013 = vunpack.c.0.s8 %v3012
        %v3014 = vlaneseq
        %v3015 = vshrl.u32 %v3014, 7
        %v3016 = vsub.s32 %v3013, %v3015
        %v3017 = vrot.slane %v3010, %v3016
        %v3019 = vunpack.c.l.s4 1983009808
        %v3020 = vunpack.c.0.s8 %v3019
        %v3021 = vlaneseq
        %v3022 = vshrl.u32 %v3021, 7
        %v3023 = vsub.s32 %v3020, %v3022
        %v3024 = vrot.slane %v2597, %v3023
        %v3025 = vcombine.low %v3017, %v3024
        %v3026 = vcombine.low %v2596, %v2598
        %v3027 = vcombine.low %v2606, %v2614
        %v3029 = vunpack.c.l.s4 1983009808
        %v3030 = vunpack.c.0.s8 %v3029
        %v3031 = vlaneseq
        %v3032 = vshrl.u32 %v3031, 7
        %v3033 = vsub.s32 %v3030, %v3032
        %v3034 = vrot.slane %v3026, %v3033
        %v3036 = vunpack.c.l.s4 1983009808
        %v3037 = vunpack.c.0.s8 %v3036
        %v3038 = vlaneseq
        %v3039 = vshrl.u32 %v3038, 7
        %v3040 = vsub.s32 %v3037, %v3039
        %v3041 = vrot.slane %v3027, %v3040
        %v3042 = vcombine.low %v3034, %v3041
        %v3043 = vcombine.low %v2613, %v2615
        %v3045 = vunpack.c.l.s4 1983009808
        %v3046 = vunpack.c.0.s8 %v3045
        %v3047 = vlaneseq
        %v3048 = vshrl.u32 %v3047, 7
        %v3049 = vsub.s32 %v3046, %v3048
        %v3050 = vrot.slane %v3043, %v3049
        %v3052 = vunpack.c.l.s4 1983009808
        %v3053 = vunpack.c.0.s8 %v3052
        %v3054 = vlaneseq
        %v3055 = vshrl.u32 %v3054, 7
        %v3056 = vsub.s32 %v3053, %v3055
        %v3057 = vrot.slane %v2623, %v3056
        %v3058 = vcombine.low %v3050, %v3057
        %v3059 = vcombine.low %v2631, %v2630
        %v3060 = vcombine.low %v2632, %v2640
        %v3062 = vunpack.c.l.s4 1983009808
        %v3063 = vunpack.c.0.s8 %v3062
        %v3064 = vlaneseq
        %v3065 = vshrl.u32 %v3064, 7
        %v3066 = vsub.s32 %v3063, %v3065
        %v3067 = vrot.slane %v3059, %v3066
        %v3069 = vunpack.c.l.s4 1983009808
        %v3070 = vunpack.c.0.s8 %v3069
        %v3071 = vlaneseq
        %v3072 = vshrl.u32 %v3071, 7
        %v3073 = vsub.s32 %v3070, %v3072
        %v3074 = vrot.slane %v3060, %v3073
        %v3075 = vcombine.low %v3067, %v3074
        %v3076 = vcombine.low %v2648, %v2647
        %v3078 = vunpack.c.l.s4 1983009808
        %v3079 = vunpack.c.0.s8 %v3078
        %v3080 = vlaneseq
        %v3081 = vshrl.u32 %v3080, 7
        %v3082 = vsub.s32 %v3079, %v3081
        %v3083 = vrot.slane %v3076, %v3082
        %v3085 = vunpack.c.l.s4 1983009808
        %v3086 = vunpack.c.0.s8 %v3085
        %v3087 = vlaneseq
        %v3088 = vshrl.u32 %v3087, 7
        %v3089 = vsub.s32 %v3086, %v3088
        %v3090 = vrot.slane %v2649, %v3089
        %v3091 = vcombine.low %v3083, %v3090
        %v3092 = vcombine.low %v2657, %v2665
        %v3093 = vcombine.low %v2664, %v2666
        %v3095 = vunpack.c.l.s4 1983009808
        %v3096 = vunpack.c.0.s8 %v3095
        %v3097 = vlaneseq
        %v3098 = vshrl.u32 %v3097, 7
        %v3099 = vsub.s32 %v3096, %v3098
        %v3100 = vrot.slane %v3092, %v3099
        %v3102 = vunpack.c.l.s4 1983009808
        %v3103 = vunpack.c.0.s8 %v3102
        %v3104 = vlaneseq
        %v3105 = vshrl.u32 %v3104, 7
        %v3106 = vsub.s32 %v3103, %v3105
        %v3107 = vrot.slane %v3093, %v3106
        %v3108 = vcombine.low %v3100, %v3107
        %v3109 = vcombine.low %v2674, %v2682
        %v3111 = vunpack.c.l.s4 1983009808
        %v3112 = vunpack.c.0.s8 %v3111
        %v3113 = vlaneseq
        %v3114 = vshrl.u32 %v3113, 7
        %v3115 = vsub.s32 %v3112, %v3114
        %v3116 = vrot.slane %v3109, %v3115
        %v3118 = vunpack.c.l.s4 1983009808
        %v3119 = vunpack.c.0.s8 %v3118
        %v3120 = vlaneseq
        %v3121 = vshrl.u32 %v3120, 7
        %v3122 = vsub.s32 %v3119, %v3121
        %v3123 = vrot.slane %v2681, %v3122
        %v3124 = vcombine.low %v3116, %v3123
        %v3125 = vcombine.low %v2683, %v2691
        %v3126 = vcombine.low %v2699, %v2698
        %v3128 = vunpack.c.l.s4 1983009808
        %v3129 = vunpack.c.0.s8 %v3128
        %v3130 = vlaneseq
        %v3131 = vshrl.u32 %v3130, 7
        %v3132 = vsub.s32 %v3129, %v3131
        %v3133 = vrot.slane %v3125, %v3132
        %v3135 = vunpack.c.l.s4 1983009808
        %v3136 = vunpack.c.0.s8 %v3135
        %v3137 = vlaneseq
        %v3138 = vshrl.u32 %v3137, 7
        %v3139 = vsub.s32 %v3136, %v3138
        %v3140 = vrot.slane %v3126, %v3139
        %v3141 = vcombine.low %v3133, %v3140
        %v3142 = vcombine.low %v2700, %v2708
        %v3144 = vunpack.c.l.s4 1983009808
        %v3145 = vunpack.c.0.s8 %v3144
        %v3146 = vlaneseq
        %v3147 = vshrl.u32 %v3146, 7
        %v3148 = vsub.s32 %v3145, %v3147
        %v3149 = vrot.slane %v3142, %v3148
        %v3151 = vunpack.c.l.s4 1983009808
        %v3152 = vunpack.c.0.s8 %v3151
        %v3153 = vlaneseq
        %v3154 = vshrl.u32 %v3153, 7
        %v3155 = vsub.s32 %v3152, %v3154
        %v3156 = vrot.slane %v2716, %v3155
        %v3157 = vcombine.low %v3149, %v3156
        %v3158 = vcombine.low %v2715, %v2717
        %v3159 = vcombine.low %v2725, %v2733
        %v3161 = vunpack.c.l.s4 1983009808
        %v3162 = vunpack.c.0.s8 %v3161
        %v3163 = vlaneseq
        %v3164 = vshrl.u32 %v3163, 7
        %v3165 = vsub.s32 %v3162, %v3164
        %v3166 = vrot.slane %v3158, %v3165
        %v3168 = vunpack.c.l.s4 1983009808
        %v3169 = vunpack.c.0.s8 %v3168
        %v3170 = vlaneseq
        %v3171 = vshrl.u32 %v3170, 7
        %v3172 = vsub.s32 %v3169, %v3171
        %v3173 = vrot.slane %v3159, %v3172
        %v3174 = vcombine.low %v3166, %v3173
        %v3175 = vcombine.low %v2732, %v2734
        %v3177 = vunpack.c.l.s4 1983009808
        %v3178 = vunpack.c.0.s8 %v3177
        %v3179 = vlaneseq
        %v3180 = vshrl.u32 %v3179, 7
        %v3181 = vsub.s32 %v3178, %v3180
        %v3182 = vrot.slane %v3175, %v3181
        %v3184 = vunpack.c.l.s4 1983009808
        %v3185 = vunpack.c.0.s8 %v3184
        %v3186 = vlaneseq
        %v3187 = vshrl.u32 %v3186, 7
        %v3188 = vsub.s32 %v3185, %v3187
        %v3189 = vrot.slane %v2742, %v3188
        %v3190 = vcombine.low %v3182, %v3189
        %v3191 = vcombine.low %v2750, %v2749
        %v3192 = vcombine.low %v2751, %v2759
        %v3194 = vunpack.c.l.s4 1983009808
        %v3195 = vunpack.c.0.s8 %v3194
        %v3196 = vlaneseq
        %v3197 = vshrl.u32 %v3196, 7
        %v3198 = vsub.s32 %v3195, %v3197
        %v3199 = vrot.slane %v3191, %v3198
        %v3201 = vunpack.c.l.s4 1983009808
        %v3202 = vunpack.c.0.s8 %v3201
        %v3203 = vlaneseq
        %v3204 = vshrl.u32 %v3203, 7
        %v3205 = vsub.s32 %v3202, %v3204
        %v3206 = vrot.slane %v3192, %v3205
        %v3207 = vcombine.low %v3199, %v3206
        %v3208 = vcombine.low %v2767, %v2766
        %v3210 = vunpack.c.l.s4 1983009808
        %v3211 = vunpack.c.0.s8 %v3210
        %v3212 = vlaneseq
        %v3213 = vshrl.u32 %v3212, 7
        %v3214 = vsub.s32 %v3211, %v3213
        %v3215 = vrot.slane %v3208, %v3214
        %v3217 = vunpack.c.l.s4 1983009808
        %v3218 = vunpack.c.0.s8 %v3217
        %v3219 = vlaneseq
        %v3220 = vshrl.u32 %v3219, 7
        %v3221 = vsub.s32 %v3218, %v3220
        %v3222 = vrot.slane %v2768, %v3221
        %v3223 = vcombine.low %v3215, %v3222
        %v3224 = vcombine.low %v2776, %v2784
        %v3225 = vcombine.low %v2783, %v2785
        %v3227 = vunpack.c.l.s4 1983009808
        %v3228 = vunpack.c.0.s8 %v3227
        %v3229 = vlaneseq
        %v3230 = vshrl.u32 %v3229, 7
        %v3231 = vsub.s32 %v3228, %v3230
        %v3232 = vrot.slane %v3224, %v3231
        %v3234 = vunpack.c.l.s4 1983009808
        %v3235 = vunpack.c.0.s8 %v3234
        %v3236 = vlaneseq
        %v3237 = vshrl.u32 %v3236, 7
        %v3238 = vsub.s32 %v3235, %v3237
        %v3239 = vrot.slane %v3225, %v3238
        %v3240 = vcombine.low %v3232, %v3239
        %v3241 = vcombine.low %v2793, %v2801
        %v3243 = vunpack.c.l.s4 1983009808
        %v3244 = vunpack.c.0.s8 %v3243
        %v3245 = vlaneseq
        %v3246 = vshrl.u32 %v3245, 7
        %v3247 = vsub.s32 %v3244, %v3246
        %v3248 = vrot.slane %v3241, %v3247
        %v3250 = vunpack.c.l.s4 1983009808
        %v3251 = vunpack.c.0.s8 %v3250
        %v3252 = vlaneseq
        %v3253 = vshrl.u32 %v3252, 7
        %v3254 = vsub.s32 %v3251, %v3253
        %v3255 = vrot.slane %v2800, %v3254
        %v3256 = vcombine.low %v3248, %v3255
        %v3257 = vcombine.low %v2802, %v2810
        %v3258 = vcombine.low %v2818, %v2817
        %v3260 = vunpack.c.l.s4 1983009808
        %v3261 = vunpack.c.0.s8 %v3260
        %v3262 = vlaneseq
        %v3263 = vshrl.u32 %v3262, 7
        %v3264 = vsub.s32 %v3261, %v3263
        %v3265 = vrot.slane %v3257, %v3264
        %v3267 = vunpack.c.l.s4 1983009808
        %v3268 = vunpack.c.0.s8 %v3267
        %v3269 = vlaneseq
        %v3270 = vshrl.u32 %v3269, 7
        %v3271 = vsub.s32 %v3268, %v3270
        %v3272 = vrot.slane %v3258, %v3271
        %v3273 = vcombine.low %v3265, %v3272
        %v3274 = vcombine.low %v2819, %v2826
        %v3276 = vunpack.c.l.s4 1983009808
        %v3277 = vunpack.c.0.s8 %v3276
        %v3278 = vlaneseq
        %v3279 = vshrl.u32 %v3278, 7
        %v3280 = vsub.s32 %v3277, %v3279
        %v3281 = vrot.slane %v3274, %v3280
        %v3283 = vunpack.c.l.s4 1983009808
        %v3284 = vunpack.c.0.s8 %v3283
        %v3285 = vlaneseq
        %v3286 = vshrl.u32 %v3285, 7
        %v3287 = vsub.s32 %v3284, %v3286
        %v3288 = vrot.slane %v2827, %v3287
        %v3289 = vcombine.low %v3281, %v3288
        %vm3290 = vcmask 1040384
        %v3291 = vrot.slane %v2844, 7
        %v3292 = vrot.slane %v2860, 7
        %v3293 = vsel %vm3290, %v3291, %v3292
        %v3294 = vrot.slane %v2877, 7
        %v3295 = vrot.slane %v2893, 7
        %v3296 = vsel %vm3290, %v3294, %v3295
        %v3297 = vrot.slane %v2910, 7
        %v3298 = vrot.slane %v2926, 7
        %v3299 = vsel %vm3290, %v3297, %v3298
        %v3300 = vrot.slane %v2943, 7
        %v3301 = vrot.slane %v2959, 7
        %v3302 = vsel %vm3290, %v3300, %v3301
        %v3303 = vrot.slane %v2976, 7
        %v3304 = vrot.slane %v2992, 7
        %v3305 = vsel %vm3290, %v3303, %v3304
        %v3306 = vrot.slane %v3009, 7
        %v3307 = vrot.slane %v3025, 7
        %v3308 = vsel %vm3290, %v3306, %v3307
        %v3309 = vrot.slane %v3042, 7
        %v3310 = vrot.slane %v3058, 7
        %v3311 = vsel %vm3290, %v3309, %v3310
        %v3312 = vrot.slane %v3075, 7
        %v3313 = vrot.slane %v3091, 7
        %v3314 = vsel %vm3290, %v3312, %v3313
        %v3315 = vrot.slane %v3108, 7
        %v3316 = vrot.slane %v3124, 7
        %v3317 = vsel %vm3290, %v3315, %v3316
        %v3318 = vrot.slane %v3141, 7
        %v3319 = vrot.slane %v3157, 7
        %v3320 = vsel %vm3290, %v3318, %v3319
        %v3321 = vrot.slane %v3174, 7
        %v3322 = vrot.slane %v3190, 7
        %v3323 = vsel %vm3290, %v3321, %v3322
        %v3324 = vrot.slane %v3207, 7
        %v3325 = vrot.slane %v3223, 7
        %v3326 = vsel %vm3290, %v3324, %v3325
        %v3327 = vrot.slane %v3240, 7
        %v3328 = vrot.slane %v3256, 7
        %v3329 = vsel %vm3290, %v3327, %v3328
        %v3330 = vrot.slane %v3273, 7
        %v3331 = vrot.slane %v3289, 7
        %v3332 = vsel %vm3290, %v3330, %v3331
        %v3361 = vsel %vm3290, 0.0, %v3291
        %v3362 = vsel %vm3290, 0.0, %v3294
        %v3363 = vsel %vm3290, 0.0, %v3297
        %v3364 = vsel %vm3290, 0.0, %v3300
        %v3365 = vsel %vm3290, 0.0, %v3303
        %v3366 = vsel %vm3290, 0.0, %v3306
        %v3367 = vsel %vm3290, 0.0, %v3309
        %v3368 = vsel %vm3290, 0.0, %v3312
        %v3369 = vsel %vm3290, 0.0, %v3315
        %v3370 = vsel %vm3290, 0.0, %v3318
        %v3371 = vsel %vm3290, 0.0, %v3321
        %v3372 = vsel %vm3290, 0.0, %v3324
        %v3373 = vsel %vm3290, 0.0, %v3327
        %v3374 = vsel %vm3290, 0.0, %v3330
        %vm3375 = vcmask 1046528
        %v3376 = vsel %vm3375, %v3293, 0.0
        %v3377 = vsel %vm3375, %v3296, 0.0
        %v3378 = vsel %vm3375, %v3299, 0.0
        %v3379 = vsel %vm3375, %v3302, 0.0
        %v3380 = vsel %vm3375, %v3305, 0.0
        %v3381 = vsel %vm3375, %v3308, 0.0
        %v3382 = vsel %vm3375, %v3311, 0.0
        %v3383 = vsel %vm3375, %v3314, 0.0
        %v3384 = vsel %vm3375, %v3317, 0.0
        %v3385 = vsel %vm3375, %v3320, 0.0
        %v3386 = vsel %vm3375, %v3323, 0.0
        %v3387 = vsel %vm3375, %v3326, 0.0
        %v3388 = vsel %vm3375, %v3329, 0.0
        %v3389 = vsel %vm3375, %v3332, 0.0
        %v3390 = vsel %vm663, 0.0, -inf
        %v3391 = vsel %vm663, %v3361, -inf
        %v3392 = vmax.f32 %v3390, %v3391
        %v3393 = vsel %vm663, %v3376, -inf
        %v3394 = vmax.f32 %v3390, %v3393
        %v3395 = vsel %vm663, %v3362, -inf
        %v3396 = vsel %vm663, %v3363, -inf
        %v3397 = vmax.f32 %v3395, %v3396
        %v3398 = vsel %vm663, %v3377, -inf
        %v3399 = vsel %vm663, %v3378, -inf
        %v3400 = vmax.f32 %v3398, %v3399
        %v3401 = vsel %vm663, %v3364, -inf
        %v3402 = vsel %vm663, %v3365, -inf
        %v3403 = vmax.f32 %v3401, %v3402
        %v3404 = vsel %vm663, %v3379, -inf
        %v3405 = vsel %vm663, %v3380, -inf
        %v3406 = vmax.f32 %v3404, %v3405
        %v3407 = vsel %vm663, %v3366, -inf
        %v3408 = vsel %vm663, %v3367, -inf
        %v3409 = vmax.f32 %v3407, %v3408
        %v3410 = vsel %vm663, %v3381, -inf
        %v3411 = vsel %vm663, %v3382, -inf
        %v3412 = vmax.f32 %v3410, %v3411
        %v3413 = vsel %vm663, %v3368, -inf
        %v3414 = vsel %vm663, %v3369, -inf
        %v3415 = vmax.f32 %v3413, %v3414
        %v3416 = vsel %vm663, %v3383, -inf
        %v3417 = vsel %vm663, %v3384, -inf
        %v3418 = vmax.f32 %v3416, %v3417
        %v3419 = vsel %vm663, %v3370, -inf
        %v3420 = vsel %vm663, %v3371, -inf
        %v3421 = vmax.f32 %v3419, %v3420
        %v3422 = vsel %vm663, %v3385, -inf
        %v3423 = vsel %vm663, %v3386, -inf
        %v3424 = vmax.f32 %v3422, %v3423
        %v3425 = vsel %vm663, %v3372, -inf
        %v3426 = vsel %vm663, %v3373, -inf
        %v3427 = vmax.f32 %v3425, %v3426
        %v3428 = vsel %vm663, %v3387, -inf
        %v3429 = vsel %vm663, %v3388, -inf
        %v3430 = vmax.f32 %v3428, %v3429
        %v3431 = vsel %vm663, %v3374, -inf
        %v3432 = vmax.f32 %v3431, %v3390
        %v3433 = vsel %vm663, %v3389, -inf
        %v3434 = vmax.f32 %v3433, %v3390
        %v3451 = vcombine.high %v3392, %v3392
        %v3453 = vunpack.c.l.s4 1983009808
        %v3454 = vunpack.c.0.s8 %v3453
        %v3455 = vlaneseq
        %v3456 = vshrl.u32 %v3455, 7
        %v3457 = vsub.s32 %v3454, %v3456
        %v3458 = vrot.slane %v3392, %v3457
        %v3460 = vunpack.c.l.s4 1983009808
        %v3461 = vunpack.c.0.s8 %v3460
        %v3462 = vlaneseq
        %v3463 = vshrl.u32 %v3462, 7
        %v3464 = vsub.s32 %v3461, %v3463
        %v3465 = vrot.slane %v3451, %v3464
        %v3466 = vcombine.high %v3458, %v3458
        %v3467 = vcombine.high %v3465, %v3465
        %v3468 = vcombine.high %v3394, %v3394
        %v3470 = vunpack.c.l.s4 1983009808
        %v3471 = vunpack.c.0.s8 %v3470
        %v3472 = vlaneseq
        %v3473 = vshrl.u32 %v3472, 7
        %v3474 = vsub.s32 %v3471, %v3473
        %v3475 = vrot.slane %v3394, %v3474
        %v3477 = vunpack.c.l.s4 1983009808
        %v3478 = vunpack.c.0.s8 %v3477
        %v3479 = vlaneseq
        %v3480 = vshrl.u32 %v3479, 7
        %v3481 = vsub.s32 %v3478, %v3480
        %v3482 = vrot.slane %v3468, %v3481
        %v3483 = vcombine.high %v3475, %v3475
        %v3484 = vcombine.high %v3482, %v3482
        %v3485 = vcombine.high %v3397, %v3397
        %v3487 = vunpack.c.l.s4 1983009808
        %v3488 = vunpack.c.0.s8 %v3487
        %v3489 = vlaneseq
        %v3490 = vshrl.u32 %v3489, 7
        %v3491 = vsub.s32 %v3488, %v3490
        %v3492 = vrot.slane %v3397, %v3491
        %v3494 = vunpack.c.l.s4 1983009808
        %v3495 = vunpack.c.0.s8 %v3494
        %v3496 = vlaneseq
        %v3497 = vshrl.u32 %v3496, 7
        %v3498 = vsub.s32 %v3495, %v3497
        %v3499 = vrot.slane %v3485, %v3498
        %v3500 = vcombine.high %v3492, %v3492
        %v3501 = vcombine.high %v3499, %v3499
        %v3502 = vcombine.high %v3400, %v3400
        %v3504 = vunpack.c.l.s4 1983009808
        %v3505 = vunpack.c.0.s8 %v3504
        %v3506 = vlaneseq
        %v3507 = vshrl.u32 %v3506, 7
        %v3508 = vsub.s32 %v3505, %v3507
        %v3509 = vrot.slane %v3400, %v3508
        %v3511 = vunpack.c.l.s4 1983009808
        %v3512 = vunpack.c.0.s8 %v3511
        %v3513 = vlaneseq
        %v3514 = vshrl.u32 %v3513, 7
        %v3515 = vsub.s32 %v3512, %v3514
        %v3516 = vrot.slane %v3502, %v3515
        %v3517 = vcombine.high %v3509, %v3509
        %v3518 = vcombine.high %v3516, %v3516
        %v3519 = vcombine.high %v3403, %v3403
        %v3521 = vunpack.c.l.s4 1983009808
        %v3522 = vunpack.c.0.s8 %v3521
        %v3523 = vlaneseq
        %v3524 = vshrl.u32 %v3523, 7
        %v3525 = vsub.s32 %v3522, %v3524
        %v3526 = vrot.slane %v3403, %v3525
        %v3528 = vunpack.c.l.s4 1983009808
        %v3529 = vunpack.c.0.s8 %v3528
        %v3530 = vlaneseq
        %v3531 = vshrl.u32 %v3530, 7
        %v3532 = vsub.s32 %v3529, %v3531
        %v3533 = vrot.slane %v3519, %v3532
        %v3534 = vcombine.high %v3526, %v3526
        %v3535 = vcombine.high %v3533, %v3533
        %v3536 = vcombine.high %v3406, %v3406
        %v3538 = vunpack.c.l.s4 1983009808
        %v3539 = vunpack.c.0.s8 %v3538
        %v3540 = vlaneseq
        %v3541 = vshrl.u32 %v3540, 7
        %v3542 = vsub.s32 %v3539, %v3541
        %v3543 = vrot.slane %v3406, %v3542
        %v3545 = vunpack.c.l.s4 1983009808
        %v3546 = vunpack.c.0.s8 %v3545
        %v3547 = vlaneseq
        %v3548 = vshrl.u32 %v3547, 7
        %v3549 = vsub.s32 %v3546, %v3548
        %v3550 = vrot.slane %v3536, %v3549
        %v3551 = vcombine.high %v3543, %v3543
        %v3552 = vcombine.high %v3550, %v3550
        %v3553 = vcombine.high %v3409, %v3409
        %v3555 = vunpack.c.l.s4 1983009808
        %v3556 = vunpack.c.0.s8 %v3555
        %v3557 = vlaneseq
        %v3558 = vshrl.u32 %v3557, 7
        %v3559 = vsub.s32 %v3556, %v3558
        %v3560 = vrot.slane %v3409, %v3559
        %v3562 = vunpack.c.l.s4 1983009808
        %v3563 = vunpack.c.0.s8 %v3562
        %v3564 = vlaneseq
        %v3565 = vshrl.u32 %v3564, 7
        %v3566 = vsub.s32 %v3563, %v3565
        %v3567 = vrot.slane %v3553, %v3566
        %v3568 = vcombine.high %v3560, %v3560
        %v3569 = vcombine.high %v3567, %v3567
        %v3570 = vcombine.high %v3412, %v3412
        %v3572 = vunpack.c.l.s4 1983009808
        %v3573 = vunpack.c.0.s8 %v3572
        %v3574 = vlaneseq
        %v3575 = vshrl.u32 %v3574, 7
        %v3576 = vsub.s32 %v3573, %v3575
        %v3577 = vrot.slane %v3412, %v3576
        %v3579 = vunpack.c.l.s4 1983009808
        %v3580 = vunpack.c.0.s8 %v3579
        %v3581 = vlaneseq
        %v3582 = vshrl.u32 %v3581, 7
        %v3583 = vsub.s32 %v3580, %v3582
        %v3584 = vrot.slane %v3570, %v3583
        %v3585 = vcombine.high %v3577, %v3577
        %v3586 = vcombine.high %v3584, %v3584
        %v3587 = vcombine.high %v3415, %v3415
        %v3589 = vunpack.c.l.s4 1983009808
        %v3590 = vunpack.c.0.s8 %v3589
        %v3591 = vlaneseq
        %v3592 = vshrl.u32 %v3591, 7
        %v3593 = vsub.s32 %v3590, %v3592
        %v3594 = vrot.slane %v3415, %v3593
        %v3596 = vunpack.c.l.s4 1983009808
        %v3597 = vunpack.c.0.s8 %v3596
        %v3598 = vlaneseq
        %v3599 = vshrl.u32 %v3598, 7
        %v3600 = vsub.s32 %v3597, %v3599
        %v3601 = vrot.slane %v3587, %v3600
        %v3602 = vcombine.high %v3594, %v3594
        %v3603 = vcombine.high %v3601, %v3601
        %v3604 = vcombine.high %v3418, %v3418
        %v3606 = vunpack.c.l.s4 1983009808
        %v3607 = vunpack.c.0.s8 %v3606
        %v3608 = vlaneseq
        %v3609 = vshrl.u32 %v3608, 7
        %v3610 = vsub.s32 %v3607, %v3609
        %v3611 = vrot.slane %v3418, %v3610
        %v3613 = vunpack.c.l.s4 1983009808
        %v3614 = vunpack.c.0.s8 %v3613
        %v3615 = vlaneseq
        %v3616 = vshrl.u32 %v3615, 7
        %v3617 = vsub.s32 %v3614, %v3616
        %v3618 = vrot.slane %v3604, %v3617
        %v3619 = vcombine.high %v3611, %v3611
        %v3620 = vcombine.high %v3618, %v3618
        %v3621 = vcombine.high %v3421, %v3421
        %v3623 = vunpack.c.l.s4 1983009808
        %v3624 = vunpack.c.0.s8 %v3623
        %v3625 = vlaneseq
        %v3626 = vshrl.u32 %v3625, 7
        %v3627 = vsub.s32 %v3624, %v3626
        %v3628 = vrot.slane %v3421, %v3627
        %v3630 = vunpack.c.l.s4 1983009808
        %v3631 = vunpack.c.0.s8 %v3630
        %v3632 = vlaneseq
        %v3633 = vshrl.u32 %v3632, 7
        %v3634 = vsub.s32 %v3631, %v3633
        %v3635 = vrot.slane %v3621, %v3634
        %v3636 = vcombine.high %v3628, %v3628
        %v3637 = vcombine.high %v3635, %v3635
        %v3638 = vcombine.high %v3424, %v3424
        %v3640 = vunpack.c.l.s4 1983009808
        %v3641 = vunpack.c.0.s8 %v3640
        %v3642 = vlaneseq
        %v3643 = vshrl.u32 %v3642, 7
        %v3644 = vsub.s32 %v3641, %v3643
        %v3645 = vrot.slane %v3424, %v3644
        %v3647 = vunpack.c.l.s4 1983009808
        %v3648 = vunpack.c.0.s8 %v3647
        %v3649 = vlaneseq
        %v3650 = vshrl.u32 %v3649, 7
        %v3651 = vsub.s32 %v3648, %v3650
        %v3652 = vrot.slane %v3638, %v3651
        %v3653 = vcombine.high %v3645, %v3645
        %v3654 = vcombine.high %v3652, %v3652
        %v3655 = vcombine.high %v3427, %v3427
        %v3657 = vunpack.c.l.s4 1983009808
        %v3658 = vunpack.c.0.s8 %v3657
        %v3659 = vlaneseq
        %v3660 = vshrl.u32 %v3659, 7
        %v3661 = vsub.s32 %v3658, %v3660
        %v3662 = vrot.slane %v3427, %v3661
        %v3664 = vunpack.c.l.s4 1983009808
        %v3665 = vunpack.c.0.s8 %v3664
        %v3666 = vlaneseq
        %v3667 = vshrl.u32 %v3666, 7
        %v3668 = vsub.s32 %v3665, %v3667
        %v3669 = vrot.slane %v3655, %v3668
        %v3670 = vcombine.high %v3662, %v3662
        %v3671 = vcombine.high %v3669, %v3669
        %v3672 = vcombine.high %v3430, %v3430
        %v3674 = vunpack.c.l.s4 1983009808
        %v3675 = vunpack.c.0.s8 %v3674
        %v3676 = vlaneseq
        %v3677 = vshrl.u32 %v3676, 7
        %v3678 = vsub.s32 %v3675, %v3677
        %v3679 = vrot.slane %v3430, %v3678
        %v3681 = vunpack.c.l.s4 1983009808
        %v3682 = vunpack.c.0.s8 %v3681
        %v3683 = vlaneseq
        %v3684 = vshrl.u32 %v3683, 7
        %v3685 = vsub.s32 %v3682, %v3684
        %v3686 = vrot.slane %v3672, %v3685
        %v3687 = vcombine.high %v3679, %v3679
        %v3688 = vcombine.high %v3686, %v3686
        %v3689 = vcombine.high %v3432, %v3432
        %v3691 = vunpack.c.l.s4 1983009808
        %v3692 = vunpack.c.0.s8 %v3691
        %v3693 = vlaneseq
        %v3694 = vshrl.u32 %v3693, 7
        %v3695 = vsub.s32 %v3692, %v3694
        %v3696 = vrot.slane %v3432, %v3695
        %v3698 = vunpack.c.l.s4 1983009808
        %v3699 = vunpack.c.0.s8 %v3698
        %v3700 = vlaneseq
        %v3701 = vshrl.u32 %v3700, 7
        %v3702 = vsub.s32 %v3699, %v3701
        %v3703 = vrot.slane %v3689, %v3702
        %v3704 = vcombine.high %v3696, %v3696
        %v3705 = vcombine.high %v3703, %v3703
        %v3706 = vcombine.high %v3434, %v3434
        %v3708 = vunpack.c.l.s4 1983009808
        %v3709 = vunpack.c.0.s8 %v3708
        %v3710 = vlaneseq
        %v3711 = vshrl.u32 %v3710, 7
        %v3712 = vsub.s32 %v3709, %v3711
        %v3713 = vrot.slane %v3434, %v3712
        %v3715 = vunpack.c.l.s4 1983009808
        %v3716 = vunpack.c.0.s8 %v3715
        %v3717 = vlaneseq
        %v3718 = vshrl.u32 %v3717, 7
        %v3719 = vsub.s32 %v3716, %v3718
        %v3720 = vrot.slane %v3706, %v3719
        %v3721 = vcombine.high %v3713, %v3713
        %v3722 = vcombine.high %v3720, %v3720
        %vm3787 = vcmask 58368
        %v3788 = vsel %vm3787, %v3458, -inf
        %v3789 = vrot.slane %v3788, 4
        %v3790 = vmax.f32 %v3788, %v3789
        %v3791 = vrot.slane %v3790, 2
        %v3792 = vmax.f32 %v3790, %v3791
        %v3793 = vrot.slane %v3792, 1
        %v3794 = vmax.f32 %v3792, %v3793
        %v3795 = vsel %vm3787, %v3466, -inf
        %v3796 = vrot.slane %v3795, 4
        %v3797 = vmax.f32 %v3795, %v3796
        %v3798 = vrot.slane %v3797, 2
        %v3799 = vmax.f32 %v3797, %v3798
        %v3800 = vrot.slane %v3799, 1
        %v3801 = vmax.f32 %v3799, %v3800
        %v3802 = vsel %vm3787, %v3465, -inf
        %v3803 = vrot.slane %v3802, 4
        %v3804 = vmax.f32 %v3802, %v3803
        %v3805 = vrot.slane %v3804, 2
        %v3806 = vmax.f32 %v3804, %v3805
        %v3807 = vrot.slane %v3806, 1
        %v3808 = vmax.f32 %v3806, %v3807
        %v3809 = vsel %vm3787, %v3467, -inf
        %v3810 = vrot.slane %v3809, 4
        %v3811 = vmax.f32 %v3809, %v3810
        %v3812 = vrot.slane %v3811, 2
        %v3813 = vmax.f32 %v3811, %v3812
        %v3814 = vrot.slane %v3813, 1
        %v3815 = vmax.f32 %v3813, %v3814
        %v3816 = vsel %vm3787, %v3475, -inf
        %v3817 = vrot.slane %v3816, 4
        %v3818 = vmax.f32 %v3816, %v3817
        %v3819 = vrot.slane %v3818, 2
        %v3820 = vmax.f32 %v3818, %v3819
        %v3821 = vrot.slane %v3820, 1
        %v3822 = vmax.f32 %v3820, %v3821
        %v3823 = vsel %vm3787, %v3483, -inf
        %v3824 = vrot.slane %v3823, 4
        %v3825 = vmax.f32 %v3823, %v3824
        %v3826 = vrot.slane %v3825, 2
        %v3827 = vmax.f32 %v3825, %v3826
        %v3828 = vrot.slane %v3827, 1
        %v3829 = vmax.f32 %v3827, %v3828
        %v3830 = vsel %vm3787, %v3482, -inf
        %v3831 = vrot.slane %v3830, 4
        %v3832 = vmax.f32 %v3830, %v3831
        %v3833 = vrot.slane %v3832, 2
        %v3834 = vmax.f32 %v3832, %v3833
        %v3835 = vrot.slane %v3834, 1
        %v3836 = vmax.f32 %v3834, %v3835
        %v3837 = vsel %vm3787, %v3484, -inf
        %v3838 = vrot.slane %v3837, 4
        %v3839 = vmax.f32 %v3837, %v3838
        %v3840 = vrot.slane %v3839, 2
        %v3841 = vmax.f32 %v3839, %v3840
        %v3842 = vrot.slane %v3841, 1
        %v3843 = vmax.f32 %v3841, %v3842
        %v3844 = vsel %vm3787, %v3492, -inf
        %v3845 = vrot.slane %v3844, 4
        %v3846 = vmax.f32 %v3844, %v3845
        %v3847 = vrot.slane %v3846, 2
        %v3848 = vmax.f32 %v3846, %v3847
        %v3849 = vrot.slane %v3848, 1
        %v3850 = vmax.f32 %v3848, %v3849
        %v3851 = vsel %vm3787, %v3500, -inf
        %v3852 = vrot.slane %v3851, 4
        %v3853 = vmax.f32 %v3851, %v3852
        %v3854 = vrot.slane %v3853, 2
        %v3855 = vmax.f32 %v3853, %v3854
        %v3856 = vrot.slane %v3855, 1
        %v3857 = vmax.f32 %v3855, %v3856
        %v3858 = vsel %vm3787, %v3499, -inf
        %v3859 = vrot.slane %v3858, 4
        %v3860 = vmax.f32 %v3858, %v3859
        %v3861 = vrot.slane %v3860, 2
        %v3862 = vmax.f32 %v3860, %v3861
        %v3863 = vrot.slane %v3862, 1
        %v3864 = vmax.f32 %v3862, %v3863
        %v3865 = vsel %vm3787, %v3501, -inf
        %v3866 = vrot.slane %v3865, 4
        %v3867 = vmax.f32 %v3865, %v3866
        %v3868 = vrot.slane %v3867, 2
        %v3869 = vmax.f32 %v3867, %v3868
        %v3870 = vrot.slane %v3869, 1
        %v3871 = vmax.f32 %v3869, %v3870
        %v3872 = vsel %vm3787, %v3509, -inf
        %v3873 = vrot.slane %v3872, 4
        %v3874 = vmax.f32 %v3872, %v3873
        %v3875 = vrot.slane %v3874, 2
        %v3876 = vmax.f32 %v3874, %v3875
        %v3877 = vrot.slane %v3876, 1
        %v3878 = vmax.f32 %v3876, %v3877
        %v3879 = vsel %vm3787, %v3517, -inf
        %v3880 = vrot.slane %v3879, 4
        %v3881 = vmax.f32 %v3879, %v3880
        %v3882 = vrot.slane %v3881, 2
        %v3883 = vmax.f32 %v3881, %v3882
        %v3884 = vrot.slane %v3883, 1
        %v3885 = vmax.f32 %v3883, %v3884
        %v3886 = vsel %vm3787, %v3516, -inf
        %v3887 = vrot.slane %v3886, 4
        %v3888 = vmax.f32 %v3886, %v3887
        %v3889 = vrot.slane %v3888, 2
        %v3890 = vmax.f32 %v3888, %v3889
        %v3891 = vrot.slane %v3890, 1
        %v3892 = vmax.f32 %v3890, %v3891
        %v3893 = vsel %vm3787, %v3518, -inf
        %v3894 = vrot.slane %v3893, 4
        %v3895 = vmax.f32 %v3893, %v3894
        %v3896 = vrot.slane %v3895, 2
        %v3897 = vmax.f32 %v3895, %v3896
        %v3898 = vrot.slane %v3897, 1
        %v3899 = vmax.f32 %v3897, %v3898
        %v3900 = vsel %vm3787, %v3526, -inf
        %v3901 = vrot.slane %v3900, 4
        %v3902 = vmax.f32 %v3900, %v3901
        %v3903 = vrot.slane %v3902, 2
        %v3904 = vmax.f32 %v3902, %v3903
        %v3905 = vrot.slane %v3904, 1
        %v3906 = vmax.f32 %v3904, %v3905
        %v3907 = vsel %vm3787, %v3534, -inf
        %v3908 = vrot.slane %v3907, 4
        %v3909 = vmax.f32 %v3907, %v3908
        %v3910 = vrot.slane %v3909, 2
        %v3911 = vmax.f32 %v3909, %v3910
        %v3912 = vrot.slane %v3911, 1
        %v3913 = vmax.f32 %v3911, %v3912
        %v3914 = vsel %vm3787, %v3533, -inf
        %v3915 = vrot.slane %v3914, 4
        %v3916 = vmax.f32 %v3914, %v3915
        %v3917 = vrot.slane %v3916, 2
        %v3918 = vmax.f32 %v3916, %v3917
        %v3919 = vrot.slane %v3918, 1
        %v3920 = vmax.f32 %v3918, %v3919
        %v3921 = vsel %vm3787, %v3535, -inf
        %v3922 = vrot.slane %v3921, 4
        %v3923 = vmax.f32 %v3921, %v3922
        %v3924 = vrot.slane %v3923, 2
        %v3925 = vmax.f32 %v3923, %v3924
        %v3926 = vrot.slane %v3925, 1
        %v3927 = vmax.f32 %v3925, %v3926
        %v3928 = vsel %vm3787, %v3543, -inf
        %v3929 = vrot.slane %v3928, 4
        %v3930 = vmax.f32 %v3928, %v3929
        %v3931 = vrot.slane %v3930, 2
        %v3932 = vmax.f32 %v3930, %v3931
        %v3933 = vrot.slane %v3932, 1
        %v3934 = vmax.f32 %v3932, %v3933
        %v3935 = vsel %vm3787, %v3551, -inf
        %v3936 = vrot.slane %v3935, 4
        %v3937 = vmax.f32 %v3935, %v3936
        %v3938 = vrot.slane %v3937, 2
        %v3939 = vmax.f32 %v3937, %v3938
        %v3940 = vrot.slane %v3939, 1
        %v3941 = vmax.f32 %v3939, %v3940
        %v3942 = vsel %vm3787, %v3550, -inf
        %v3943 = vrot.slane %v3942, 4
        %v3944 = vmax.f32 %v3942, %v3943
        %v3945 = vrot.slane %v3944, 2
        %v3946 = vmax.f32 %v3944, %v3945
        %v3947 = vrot.slane %v3946, 1
        %v3948 = vmax.f32 %v3946, %v3947
        %v3949 = vsel %vm3787, %v3552, -inf
        %v3950 = vrot.slane %v3949, 4
        %v3951 = vmax.f32 %v3949, %v3950
        %v3952 = vrot.slane %v3951, 2
        %v3953 = vmax.f32 %v3951, %v3952
        %v3954 = vrot.slane %v3953, 1
        %v3955 = vmax.f32 %v3953, %v3954
        %v3956 = vsel %vm3787, %v3560, -inf
        %v3957 = vrot.slane %v3956, 4
        %v3958 = vmax.f32 %v3956, %v3957
        %v3959 = vrot.slane %v3958, 2
        %v3960 = vmax.f32 %v3958, %v3959
        %v3961 = vrot.slane %v3960, 1
        %v3962 = vmax.f32 %v3960, %v3961
        %v3963 = vsel %vm3787, %v3568, -inf
        %v3964 = vrot.slane %v3963, 4
        %v3965 = vmax.f32 %v3963, %v3964
        %v3966 = vrot.slane %v3965, 2
        %v3967 = vmax.f32 %v3965, %v3966
        %v3968 = vrot.slane %v3967, 1
        %v3969 = vmax.f32 %v3967, %v3968
        %v3970 = vsel %vm3787, %v3567, -inf
        %v3971 = vrot.slane %v3970, 4
        %v3972 = vmax.f32 %v3970, %v3971
        %v3973 = vrot.slane %v3972, 2
        %v3974 = vmax.f32 %v3972, %v3973
        %v3975 = vrot.slane %v3974, 1
        %v3976 = vmax.f32 %v3974, %v3975
        %v3977 = vsel %vm3787, %v3569, -inf
        %v3978 = vrot.slane %v3977, 4
        %v3979 = vmax.f32 %v3977, %v3978
        %v3980 = vrot.slane %v3979, 2
        %v3981 = vmax.f32 %v3979, %v3980
        %v3982 = vrot.slane %v3981, 1
        %v3983 = vmax.f32 %v3981, %v3982
        %v3984 = vsel %vm3787, %v3577, -inf
        %v3985 = vrot.slane %v3984, 4
        %v3986 = vmax.f32 %v3984, %v3985
        %v3987 = vrot.slane %v3986, 2
        %v3988 = vmax.f32 %v3986, %v3987
        %v3989 = vrot.slane %v3988, 1
        %v3990 = vmax.f32 %v3988, %v3989
        %v3991 = vsel %vm3787, %v3585, -inf
        %v3992 = vrot.slane %v3991, 4
        %v3993 = vmax.f32 %v3991, %v3992
        %v3994 = vrot.slane %v3993, 2
        %v3995 = vmax.f32 %v3993, %v3994
        %v3996 = vrot.slane %v3995, 1
        %v3997 = vmax.f32 %v3995, %v3996
        %v3998 = vsel %vm3787, %v3584, -inf
        %v3999 = vrot.slane %v3998, 4
        %v4000 = vmax.f32 %v3998, %v3999
        %v4001 = vrot.slane %v4000, 2
        %v4002 = vmax.f32 %v4000, %v4001
        %v4003 = vrot.slane %v4002, 1
        %v4004 = vmax.f32 %v4002, %v4003
        %v4005 = vsel %vm3787, %v3586, -inf
        %v4006 = vrot.slane %v4005, 4
        %v4007 = vmax.f32 %v4005, %v4006
        %v4008 = vrot.slane %v4007, 2
        %v4009 = vmax.f32 %v4007, %v4008
        %v4010 = vrot.slane %v4009, 1
        %v4011 = vmax.f32 %v4009, %v4010
        %v4012 = vsel %vm3787, %v3594, -inf
        %v4013 = vrot.slane %v4012, 4
        %v4014 = vmax.f32 %v4012, %v4013
        %v4015 = vrot.slane %v4014, 2
        %v4016 = vmax.f32 %v4014, %v4015
        %v4017 = vrot.slane %v4016, 1
        %v4018 = vmax.f32 %v4016, %v4017
        %v4019 = vsel %vm3787, %v3602, -inf
        %v4020 = vrot.slane %v4019, 4
        %v4021 = vmax.f32 %v4019, %v4020
        %v4022 = vrot.slane %v4021, 2
        %v4023 = vmax.f32 %v4021, %v4022
        %v4024 = vrot.slane %v4023, 1
        %v4025 = vmax.f32 %v4023, %v4024
        %v4026 = vsel %vm3787, %v3601, -inf
        %v4027 = vrot.slane %v4026, 4
        %v4028 = vmax.f32 %v4026, %v4027
        %v4029 = vrot.slane %v4028, 2
        %v4030 = vmax.f32 %v4028, %v4029
        %v4031 = vrot.slane %v4030, 1
        %v4032 = vmax.f32 %v4030, %v4031
        %v4033 = vsel %vm3787, %v3603, -inf
        %v4034 = vrot.slane %v4033, 4
        %v4035 = vmax.f32 %v4033, %v4034
        %v4036 = vrot.slane %v4035, 2
        %v4037 = vmax.f32 %v4035, %v4036
        %v4038 = vrot.slane %v4037, 1
        %v4039 = vmax.f32 %v4037, %v4038
        %v4040 = vsel %vm3787, %v3611, -inf
        %v4041 = vrot.slane %v4040, 4
        %v4042 = vmax.f32 %v4040, %v4041
        %v4043 = vrot.slane %v4042, 2
        %v4044 = vmax.f32 %v4042, %v4043
        %v4045 = vrot.slane %v4044, 1
        %v4046 = vmax.f32 %v4044, %v4045
        %v4047 = vsel %vm3787, %v3619, -inf
        %v4048 = vrot.slane %v4047, 4
        %v4049 = vmax.f32 %v4047, %v4048
        %v4050 = vrot.slane %v4049, 2
        %v4051 = vmax.f32 %v4049, %v4050
        %v4052 = vrot.slane %v4051, 1
        %v4053 = vmax.f32 %v4051, %v4052
        %v4054 = vsel %vm3787, %v3618, -inf
        %v4055 = vrot.slane %v4054, 4
        %v4056 = vmax.f32 %v4054, %v4055
        %v4057 = vrot.slane %v4056, 2
        %v4058 = vmax.f32 %v4056, %v4057
        %v4059 = vrot.slane %v4058, 1
        %v4060 = vmax.f32 %v4058, %v4059
        %v4061 = vsel %vm3787, %v3620, -inf
        %v4062 = vrot.slane %v4061, 4
        %v4063 = vmax.f32 %v4061, %v4062
        %v4064 = vrot.slane %v4063, 2
        %v4065 = vmax.f32 %v4063, %v4064
        %v4066 = vrot.slane %v4065, 1
        %v4067 = vmax.f32 %v4065, %v4066
        %v4068 = vsel %vm3787, %v3628, -inf
        %v4069 = vrot.slane %v4068, 4
        %v4070 = vmax.f32 %v4068, %v4069
        %v4071 = vrot.slane %v4070, 2
        %v4072 = vmax.f32 %v4070, %v4071
        %v4073 = vrot.slane %v4072, 1
        %v4074 = vmax.f32 %v4072, %v4073
        %v4075 = vsel %vm3787, %v3636, -inf
        %v4076 = vrot.slane %v4075, 4
        %v4077 = vmax.f32 %v4075, %v4076
        %v4078 = vrot.slane %v4077, 2
        %v4079 = vmax.f32 %v4077, %v4078
        %v4080 = vrot.slane %v4079, 1
        %v4081 = vmax.f32 %v4079, %v4080
        %v4082 = vsel %vm3787, %v3635, -inf
        %v4083 = vrot.slane %v4082, 4
        %v4084 = vmax.f32 %v4082, %v4083
        %v4085 = vrot.slane %v4084, 2
        %v4086 = vmax.f32 %v4084, %v4085
        %v4087 = vrot.slane %v4086, 1
        %v4088 = vmax.f32 %v4086, %v4087
        %v4089 = vsel %vm3787, %v3637, -inf
        %v4090 = vrot.slane %v4089, 4
        %v4091 = vmax.f32 %v4089, %v4090
        %v4092 = vrot.slane %v4091, 2
        %v4093 = vmax.f32 %v4091, %v4092
        %v4094 = vrot.slane %v4093, 1
        %v4095 = vmax.f32 %v4093, %v4094
        %v4096 = vsel %vm3787, %v3645, -inf
        %v4097 = vrot.slane %v4096, 4
        %v4098 = vmax.f32 %v4096, %v4097
        %v4099 = vrot.slane %v4098, 2
        %v4100 = vmax.f32 %v4098, %v4099
        %v4101 = vrot.slane %v4100, 1
        %v4102 = vmax.f32 %v4100, %v4101
        %v4103 = vsel %vm3787, %v3653, -inf
        %v4104 = vrot.slane %v4103, 4
        %v4105 = vmax.f32 %v4103, %v4104
        %v4106 = vrot.slane %v4105, 2
        %v4107 = vmax.f32 %v4105, %v4106
        %v4108 = vrot.slane %v4107, 1
        %v4109 = vmax.f32 %v4107, %v4108
        %v4110 = vsel %vm3787, %v3652, -inf
        %v4111 = vrot.slane %v4110, 4
        %v4112 = vmax.f32 %v4110, %v4111
        %v4113 = vrot.slane %v4112, 2
        %v4114 = vmax.f32 %v4112, %v4113
        %v4115 = vrot.slane %v4114, 1
        %v4116 = vmax.f32 %v4114, %v4115
        %v4117 = vsel %vm3787, %v3654, -inf
        %v4118 = vrot.slane %v4117, 4
        %v4119 = vmax.f32 %v4117, %v4118
        %v4120 = vrot.slane %v4119, 2
        %v4121 = vmax.f32 %v4119, %v4120
        %v4122 = vrot.slane %v4121, 1
        %v4123 = vmax.f32 %v4121, %v4122
        %v4124 = vsel %vm3787, %v3662, -inf
        %v4125 = vrot.slane %v4124, 4
        %v4126 = vmax.f32 %v4124, %v4125
        %v4127 = vrot.slane %v4126, 2
        %v4128 = vmax.f32 %v4126, %v4127
        %v4129 = vrot.slane %v4128, 1
        %v4130 = vmax.f32 %v4128, %v4129
        %v4131 = vsel %vm3787, %v3670, -inf
        %v4132 = vrot.slane %v4131, 4
        %v4133 = vmax.f32 %v4131, %v4132
        %v4134 = vrot.slane %v4133, 2
        %v4135 = vmax.f32 %v4133, %v4134
        %v4136 = vrot.slane %v4135, 1
        %v4137 = vmax.f32 %v4135, %v4136
        %v4138 = vsel %vm3787, %v3669, -inf
        %v4139 = vrot.slane %v4138, 4
        %v4140 = vmax.f32 %v4138, %v4139
        %v4141 = vrot.slane %v4140, 2
        %v4142 = vmax.f32 %v4140, %v4141
        %v4143 = vrot.slane %v4142, 1
        %v4144 = vmax.f32 %v4142, %v4143
        %v4145 = vsel %vm3787, %v3671, -inf
        %v4146 = vrot.slane %v4145, 4
        %v4147 = vmax.f32 %v4145, %v4146
        %v4148 = vrot.slane %v4147, 2
        %v4149 = vmax.f32 %v4147, %v4148
        %v4150 = vrot.slane %v4149, 1
        %v4151 = vmax.f32 %v4149, %v4150
        %v4152 = vsel %vm3787, %v3679, -inf
        %v4153 = vrot.slane %v4152, 4
        %v4154 = vmax.f32 %v4152, %v4153
        %v4155 = vrot.slane %v4154, 2
        %v4156 = vmax.f32 %v4154, %v4155
        %v4157 = vrot.slane %v4156, 1
        %v4158 = vmax.f32 %v4156, %v4157
        %v4159 = vsel %vm3787, %v3687, -inf
        %v4160 = vrot.slane %v4159, 4
        %v4161 = vmax.f32 %v4159, %v4160
        %v4162 = vrot.slane %v4161, 2
        %v4163 = vmax.f32 %v4161, %v4162
        %v4164 = vrot.slane %v4163, 1
        %v4165 = vmax.f32 %v4163, %v4164
        %v4166 = vsel %vm3787, %v3686, -inf
        %v4167 = vrot.slane %v4166, 4
        %v4168 = vmax.f32 %v4166, %v4167
        %v4169 = vrot.slane %v4168, 2
        %v4170 = vmax.f32 %v4168, %v4169
        %v4171 = vrot.slane %v4170, 1
        %v4172 = vmax.f32 %v4170, %v4171
        %v4173 = vsel %vm3787, %v3688, -inf
        %v4174 = vrot.slane %v4173, 4
        %v4175 = vmax.f32 %v4173, %v4174
        %v4176 = vrot.slane %v4175, 2
        %v4177 = vmax.f32 %v4175, %v4176
        %v4178 = vrot.slane %v4177, 1
        %v4179 = vmax.f32 %v4177, %v4178
        %v4180 = vsel %vm3787, %v3696, -inf
        %v4181 = vrot.slane %v4180, 4
        %v4182 = vmax.f32 %v4180, %v4181
        %v4183 = vrot.slane %v4182, 2
        %v4184 = vmax.f32 %v4182, %v4183
        %v4185 = vrot.slane %v4184, 1
        %v4186 = vmax.f32 %v4184, %v4185
        %v4187 = vsel %vm3787, %v3704, -inf
        %v4188 = vrot.slane %v4187, 4
        %v4189 = vmax.f32 %v4187, %v4188
        %v4190 = vrot.slane %v4189, 2
        %v4191 = vmax.f32 %v4189, %v4190
        %v4192 = vrot.slane %v4191, 1
        %v4193 = vmax.f32 %v4191, %v4192
        %v4194 = vsel %vm3787, %v3703, -inf
        %v4195 = vrot.slane %v4194, 4
        %v4196 = vmax.f32 %v4194, %v4195
        %v4197 = vrot.slane %v4196, 2
        %v4198 = vmax.f32 %v4196, %v4197
        %v4199 = vrot.slane %v4198, 1
        %v4200 = vmax.f32 %v4198, %v4199
        %v4201 = vsel %vm3787, %v3705, -inf
        %v4202 = vrot.slane %v4201, 4
        %v4203 = vmax.f32 %v4201, %v4202
        %v4204 = vrot.slane %v4203, 2
        %v4205 = vmax.f32 %v4203, %v4204
        %v4206 = vrot.slane %v4205, 1
        %v4207 = vmax.f32 %v4205, %v4206
        %v4208 = vsel %vm3787, %v3713, -inf
        %v4209 = vrot.slane %v4208, 4
        %v4210 = vmax.f32 %v4208, %v4209
        %v4211 = vrot.slane %v4210, 2
        %v4212 = vmax.f32 %v4210, %v4211
        %v4213 = vrot.slane %v4212, 1
        %v4214 = vmax.f32 %v4212, %v4213
        %v4215 = vsel %vm3787, %v3721, -inf
        %v4216 = vrot.slane %v4215, 4
        %v4217 = vmax.f32 %v4215, %v4216
        %v4218 = vrot.slane %v4217, 2
        %v4219 = vmax.f32 %v4217, %v4218
        %v4220 = vrot.slane %v4219, 1
        %v4221 = vmax.f32 %v4219, %v4220
        %v4222 = vsel %vm3787, %v3720, -inf
        %v4223 = vrot.slane %v4222, 4
        %v4224 = vmax.f32 %v4222, %v4223
        %v4225 = vrot.slane %v4224, 2
        %v4226 = vmax.f32 %v4224, %v4225
        %v4227 = vrot.slane %v4226, 1
        %v4228 = vmax.f32 %v4226, %v4227
        %v4229 = vsel %vm3787, %v3722, -inf
        %v4230 = vrot.slane %v4229, 4
        %v4231 = vmax.f32 %v4229, %v4230
        %v4232 = vrot.slane %v4231, 2
        %v4233 = vmax.f32 %v4231, %v4232
        %v4234 = vrot.slane %v4233, 1
        %v4235 = vmax.f32 %v4233, %v4234
        %v4236 = vpack.c.bf16 %v3794, %v3794
        %v4237 = vpack.c.bf16 %v3801, %v3801
        %v4238 = vpack.c.bf16 %v3808, %v3808
        %v4239 = vpack.c.bf16 %v3815, %v3815
        %v4240 = vpack.c.bf16 %v3822, %v3822
        %v4241 = vpack.c.bf16 %v3829, %v3829
        %v4242 = vpack.c.bf16 %v3836, %v3836
        %v4243 = vpack.c.bf16 %v3843, %v3843
        %v4244 = vpack.c.bf16 %v3850, %v3850
        %v4245 = vpack.c.bf16 %v3857, %v3857
        %v4246 = vpack.c.bf16 %v3864, %v3864
        %v4247 = vpack.c.bf16 %v3871, %v3871
        %v4248 = vpack.c.bf16 %v3878, %v3878
        %v4249 = vpack.c.bf16 %v3885, %v3885
        %v4250 = vpack.c.bf16 %v3892, %v3892
        %v4251 = vpack.c.bf16 %v3899, %v3899
        %v4252 = vpack.c.bf16 %v3906, %v3906
        %v4253 = vpack.c.bf16 %v3913, %v3913
        %v4254 = vpack.c.bf16 %v3920, %v3920
        %v4255 = vpack.c.bf16 %v3927, %v3927
        %v4256 = vpack.c.bf16 %v3934, %v3934
        %v4257 = vpack.c.bf16 %v3941, %v3941
        %v4258 = vpack.c.bf16 %v3948, %v3948
        %v4259 = vpack.c.bf16 %v3955, %v3955
        %v4260 = vpack.c.bf16 %v3962, %v3962
        %v4261 = vpack.c.bf16 %v3969, %v3969
        %v4262 = vpack.c.bf16 %v3976, %v3976
        %v4263 = vpack.c.bf16 %v3983, %v3983
        %v4264 = vpack.c.bf16 %v3990, %v3990
        %v4265 = vpack.c.bf16 %v3997, %v3997
        %v4266 = vpack.c.bf16 %v4004, %v4004
        %v4267 = vpack.c.bf16 %v4011, %v4011
        %v4268 = vpack.c.bf16 %v4018, %v4018
        %v4269 = vpack.c.bf16 %v4025, %v4025
        %v4270 = vpack.c.bf16 %v4032, %v4032
        %v4271 = vpack.c.bf16 %v4039, %v4039
        %v4272 = vpack.c.bf16 %v4046, %v4046
        %v4273 = vpack.c.bf16 %v4053, %v4053
        %v4274 = vpack.c.bf16 %v4060, %v4060
        %v4275 = vpack.c.bf16 %v4067, %v4067
        %v4276 = vpack.c.bf16 %v4074, %v4074
        %v4277 = vpack.c.bf16 %v4081, %v4081
        %v4278 = vpack.c.bf16 %v4088, %v4088
        %v4279 = vpack.c.bf16 %v4095, %v4095
        %v4280 = vpack.c.bf16 %v4102, %v4102
        %v4281 = vpack.c.bf16 %v4109, %v4109
        %v4282 = vpack.c.bf16 %v4116, %v4116
        %v4283 = vpack.c.bf16 %v4123, %v4123
        %v4284 = vpack.c.bf16 %v4130, %v4130
        %v4285 = vpack.c.bf16 %v4137, %v4137
        %v4286 = vpack.c.bf16 %v4144, %v4144
        %v4287 = vpack.c.bf16 %v4151, %v4151
        %v4288 = vpack.c.bf16 %v4158, %v4158
        %v4289 = vpack.c.bf16 %v4165, %v4165
        %v4290 = vpack.c.bf16 %v4172, %v4172
        %v4291 = vpack.c.bf16 %v4179, %v4179
        %v4292 = vpack.c.bf16 %v4186, %v4186
        %v4293 = vpack.c.bf16 %v4193, %v4193
        %v4294 = vpack.c.bf16 %v4200, %v4200
        %v4295 = vpack.c.bf16 %v4207, %v4207
        %v4296 = vpack.c.bf16 %v4214, %v4214
        %v4297 = vpack.c.bf16 %v4221, %v4221
        %v4298 = vpack.c.bf16 %v4228, %v4228
        %v4299 = vpack.c.bf16 %v4235, %v4235
        %v4364 = vunpack.c.l.b16 %v4236
        %v4365 = vunpack.c.l.b16 %v4237
        %v4366 = vunpack.c.l.b16 %v4238
        %v4367 = vunpack.c.l.b16 %v4239
        %v4368 = vunpack.c.l.b16 %v4240
        %v4369 = vunpack.c.l.b16 %v4241
        %v4370 = vunpack.c.l.b16 %v4242
        %v4371 = vunpack.c.l.b16 %v4243
        %v4372 = vunpack.c.l.b16 %v4244
        %v4373 = vunpack.c.l.b16 %v4245
        %v4374 = vunpack.c.l.b16 %v4246
        %v4375 = vunpack.c.l.b16 %v4247
        %v4376 = vunpack.c.l.b16 %v4248
        %v4377 = vunpack.c.l.b16 %v4249
        %v4378 = vunpack.c.l.b16 %v4250
        %v4379 = vunpack.c.l.b16 %v4251
        %v4380 = vunpack.c.l.b16 %v4252
        %v4381 = vunpack.c.l.b16 %v4253
        %v4382 = vunpack.c.l.b16 %v4254
        %v4383 = vunpack.c.l.b16 %v4255
        %v4384 = vunpack.c.l.b16 %v4256
        %v4385 = vunpack.c.l.b16 %v4257
        %v4386 = vunpack.c.l.b16 %v4258
        %v4387 = vunpack.c.l.b16 %v4259
        %v4388 = vunpack.c.l.b16 %v4260
        %v4389 = vunpack.c.l.b16 %v4261
        %v4390 = vunpack.c.l.b16 %v4262
        %v4391 = vunpack.c.l.b16 %v4263
        %v4392 = vunpack.c.l.b16 %v4264
        %v4393 = vunpack.c.l.b16 %v4265
        %v4394 = vunpack.c.l.b16 %v4266
        %v4395 = vunpack.c.l.b16 %v4267
        %v4396 = vunpack.c.l.b16 %v4268
        %v4397 = vunpack.c.l.b16 %v4269
        %v4398 = vunpack.c.l.b16 %v4270
        %v4399 = vunpack.c.l.b16 %v4271
        %v4400 = vunpack.c.l.b16 %v4272
        %v4401 = vunpack.c.l.b16 %v4273
        %v4402 = vunpack.c.l.b16 %v4274
        %v4403 = vunpack.c.l.b16 %v4275
        %v4404 = vunpack.c.l.b16 %v4276
        %v4405 = vunpack.c.l.b16 %v4277
        %v4406 = vunpack.c.l.b16 %v4278
        %v4407 = vunpack.c.l.b16 %v4279
        %v4408 = vunpack.c.l.b16 %v4280
        %v4409 = vunpack.c.l.b16 %v4281
        %v4410 = vunpack.c.l.b16 %v4282
        %v4411 = vunpack.c.l.b16 %v4283
        %v4412 = vunpack.c.l.b16 %v4284
        %v4413 = vunpack.c.l.b16 %v4285
        %v4414 = vunpack.c.l.b16 %v4286
        %v4415 = vunpack.c.l.b16 %v4287
        %v4416 = vunpack.c.l.b16 %v4288
        %v4417 = vunpack.c.l.b16 %v4289
        %v4418 = vunpack.c.l.b16 %v4290
        %v4419 = vunpack.c.l.b16 %v4291
        %v4420 = vunpack.c.l.b16 %v4292
        %v4421 = vunpack.c.l.b16 %v4293
        %v4422 = vunpack.c.l.b16 %v4294
        %v4423 = vunpack.c.l.b16 %v4295
        %v4424 = vunpack.c.l.b16 %v4296
        %v4425 = vunpack.c.l.b16 %v4297
        %v4426 = vunpack.c.l.b16 %v4298
        %v4427 = vunpack.c.l.b16 %v4299
        %v4428 = vpack.c.b16 %v4364, %v4364
        %v4429 = vpack.c.b16 %v4365, %v4365
        %v4430 = vpack.c.b16 %v4366, %v4366
        %v4431 = vpack.c.b16 %v4367, %v4367
        %v4432 = vpack.c.b16 %v4368, %v4368
        %v4433 = vpack.c.b16 %v4369, %v4369
        %v4434 = vpack.c.b16 %v4370, %v4370
        %v4435 = vpack.c.b16 %v4371, %v4371
        %v4436 = vpack.c.b16 %v4372, %v4372
        %v4437 = vpack.c.b16 %v4373, %v4373
        %v4438 = vpack.c.b16 %v4374, %v4374
        %v4439 = vpack.c.b16 %v4375, %v4375
        %v4440 = vpack.c.b16 %v4376, %v4376
        %v4441 = vpack.c.b16 %v4377, %v4377
        %v4442 = vpack.c.b16 %v4378, %v4378
        %v4443 = vpack.c.b16 %v4379, %v4379
        %v4444 = vpack.c.b16 %v4380, %v4380
        %v4445 = vpack.c.b16 %v4381, %v4381
        %v4446 = vpack.c.b16 %v4382, %v4382
        %v4447 = vpack.c.b16 %v4383, %v4383
        %v4448 = vpack.c.b16 %v4384, %v4384
        %v4449 = vpack.c.b16 %v4385, %v4385
        %v4450 = vpack.c.b16 %v4386, %v4386
        %v4451 = vpack.c.b16 %v4387, %v4387
        %v4452 = vpack.c.b16 %v4388, %v4388
        %v4453 = vpack.c.b16 %v4389, %v4389
        %v4454 = vpack.c.b16 %v4390, %v4390
        %v4455 = vpack.c.b16 %v4391, %v4391
        %v4456 = vpack.c.b16 %v4392, %v4392
        %v4457 = vpack.c.b16 %v4393, %v4393
        %v4458 = vpack.c.b16 %v4394, %v4394
        %v4459 = vpack.c.b16 %v4395, %v4395
        %v4460 = vpack.c.b16 %v4396, %v4396
        %v4461 = vpack.c.b16 %v4397, %v4397
        %v4462 = vpack.c.b16 %v4398, %v4398
        %v4463 = vpack.c.b16 %v4399, %v4399
        %v4464 = vpack.c.b16 %v4400, %v4400
        %v4465 = vpack.c.b16 %v4401, %v4401
        %v4466 = vpack.c.b16 %v4402, %v4402
        %v4467 = vpack.c.b16 %v4403, %v4403
        %v4468 = vpack.c.b16 %v4404, %v4404
        %v4469 = vpack.c.b16 %v4405, %v4405
        %v4470 = vpack.c.b16 %v4406, %v4406
        %v4471 = vpack.c.b16 %v4407, %v4407
        %v4472 = vpack.c.b16 %v4408, %v4408
        %v4473 = vpack.c.b16 %v4409, %v4409
        %v4474 = vpack.c.b16 %v4410, %v4410
        %v4475 = vpack.c.b16 %v4411, %v4411
        %v4476 = vpack.c.b16 %v4412, %v4412
        %v4477 = vpack.c.b16 %v4413, %v4413
        %v4478 = vpack.c.b16 %v4414, %v4414
        %v4479 = vpack.c.b16 %v4415, %v4415
        %v4480 = vpack.c.b16 %v4416, %v4416
        %v4481 = vpack.c.b16 %v4417, %v4417
        %v4482 = vpack.c.b16 %v4418, %v4418
        %v4483 = vpack.c.b16 %v4419, %v4419
        %v4484 = vpack.c.b16 %v4420, %v4420
        %v4485 = vpack.c.b16 %v4421, %v4421
        %v4486 = vpack.c.b16 %v4422, %v4422
        %v4487 = vpack.c.b16 %v4423, %v4423
        %v4488 = vpack.c.b16 %v4424, %v4424
        %v4489 = vpack.c.b16 %v4425, %v4425
        %v4490 = vpack.c.b16 %v4426, %v4426
        %v4491 = vpack.c.b16 %v4427, %v4427
        %v4492 = vunpack.c.l.b16 %v4428
        %v4493 = vunpack.c.l.b16 %v4429
        %v4494 = vunpack.c.l.b16 %v4430
        %v4495 = vunpack.c.l.b16 %v4431
        %v4496 = vunpack.c.l.b16 %v4432
        %v4497 = vunpack.c.l.b16 %v4433
        %v4498 = vunpack.c.l.b16 %v4434
        %v4499 = vunpack.c.l.b16 %v4435
        %v4500 = vunpack.c.l.b16 %v4436
        %v4501 = vunpack.c.l.b16 %v4437
        %v4502 = vunpack.c.l.b16 %v4438
        %v4503 = vunpack.c.l.b16 %v4439
        %v4504 = vunpack.c.l.b16 %v4440
        %v4505 = vunpack.c.l.b16 %v4441
        %v4506 = vunpack.c.l.b16 %v4442
        %v4507 = vunpack.c.l.b16 %v4443
        %v4508 = vunpack.c.l.b16 %v4444
        %v4509 = vunpack.c.l.b16 %v4445
        %v4510 = vunpack.c.l.b16 %v4446
        %v4511 = vunpack.c.l.b16 %v4447
        %v4512 = vunpack.c.l.b16 %v4448
        %v4513 = vunpack.c.l.b16 %v4449
        %v4514 = vunpack.c.l.b16 %v4450
        %v4515 = vunpack.c.l.b16 %v4451
        %v4516 = vunpack.c.l.b16 %v4452
        %v4517 = vunpack.c.l.b16 %v4453
        %v4518 = vunpack.c.l.b16 %v4454
        %v4519 = vunpack.c.l.b16 %v4455
        %v4520 = vunpack.c.l.b16 %v4456
        %v4521 = vunpack.c.l.b16 %v4457
        %v4522 = vunpack.c.l.b16 %v4458
        %v4523 = vunpack.c.l.b16 %v4459
        %v4524 = vunpack.c.l.b16 %v4460
        %v4525 = vunpack.c.l.b16 %v4461
        %v4526 = vunpack.c.l.b16 %v4462
        %v4527 = vunpack.c.l.b16 %v4463
        %v4528 = vunpack.c.l.b16 %v4464
        %v4529 = vunpack.c.l.b16 %v4465
        %v4530 = vunpack.c.l.b16 %v4466
        %v4531 = vunpack.c.l.b16 %v4467
        %v4532 = vunpack.c.l.b16 %v4468
        %v4533 = vunpack.c.l.b16 %v4469
        %v4534 = vunpack.c.l.b16 %v4470
        %v4535 = vunpack.c.l.b16 %v4471
        %v4536 = vunpack.c.l.b16 %v4472
        %v4537 = vunpack.c.l.b16 %v4473
        %v4538 = vunpack.c.l.b16 %v4474
        %v4539 = vunpack.c.l.b16 %v4475
        %v4540 = vunpack.c.l.b16 %v4476
        %v4541 = vunpack.c.l.b16 %v4477
        %v4542 = vunpack.c.l.b16 %v4478
        %v4543 = vunpack.c.l.b16 %v4479
        %v4544 = vunpack.c.l.b16 %v4480
        %v4545 = vunpack.c.l.b16 %v4481
        %v4546 = vunpack.c.l.b16 %v4482
        %v4547 = vunpack.c.l.b16 %v4483
        %v4548 = vunpack.c.l.b16 %v4484
        %v4549 = vunpack.c.l.b16 %v4485
        %v4550 = vunpack.c.l.b16 %v4486
        %v4551 = vunpack.c.l.b16 %v4487
        %v4552 = vunpack.c.l.b16 %v4488
        %v4553 = vunpack.c.l.b16 %v4489
        %v4554 = vunpack.c.l.b16 %v4490
        %v4555 = vunpack.c.l.b16 %v4491
        %vm4556 = vcmask 1041409
        %v4557 = vsel %vm4556, %v4493, %v4492
        %vm4558 = vcmask 1042434
        %v4559 = vsel %vm4558, %v4494, %v4557
        %vm4560 = vcmask 1043459
        %v4561 = vsel %vm4560, %v4495, %v4559
        %vm4562 = vcmask 1044484
        %v4563 = vsel %vm4562, %v4496, %v4561
        %vm4564 = vcmask 1045509
        %v4565 = vsel %vm4564, %v4497, %v4563
        %vm4566 = vcmask 1046534
        %v4567 = vsel %vm4566, %v4498, %v4565
        %vm4568 = vcmask 1047559
        %v4569 = vsel %vm4568, %v4499, %v4567
        %v4570 = vsel %vm4556, %v4501, %v4500
        %v4571 = vsel %vm4558, %v4502, %v4570
        %v4572 = vsel %vm4560, %v4503, %v4571
        %v4573 = vsel %vm4562, %v4504, %v4572
        %v4574 = vsel %vm4564, %v4505, %v4573
        %v4575 = vsel %vm4566, %v4506, %v4574
        %v4576 = vsel %vm4568, %v4507, %v4575
        %v4577 = vsel %vm4556, %v4509, %v4508
        %v4578 = vsel %vm4558, %v4510, %v4577
        %v4579 = vsel %vm4560, %v4511, %v4578
        %v4580 = vsel %vm4562, %v4512, %v4579
        %v4581 = vsel %vm4564, %v4513, %v4580
        %v4582 = vsel %vm4566, %v4514, %v4581
        %v4583 = vsel %vm4568, %v4515, %v4582
        %v4584 = vsel %vm4556, %v4517, %v4516
        %v4585 = vsel %vm4558, %v4518, %v4584
        %v4586 = vsel %vm4560, %v4519, %v4585
        %v4587 = vsel %vm4562, %v4520, %v4586
        %v4588 = vsel %vm4564, %v4521, %v4587
        %v4589 = vsel %vm4566, %v4522, %v4588
        %v4590 = vsel %vm4568, %v4523, %v4589
        %v4591 = vsel %vm4556, %v4525, %v4524
        %v4592 = vsel %vm4558, %v4526, %v4591
        %v4593 = vsel %vm4560, %v4527, %v4592
        %v4594 = vsel %vm4562, %v4528, %v4593
        %v4595 = vsel %vm4564, %v4529, %v4594
        %v4596 = vsel %vm4566, %v4530, %v4595
        %v4597 = vsel %vm4568, %v4531, %v4596
        %v4598 = vsel %vm4556, %v4533, %v4532
        %v4599 = vsel %vm4558, %v4534, %v4598
        %v4600 = vsel %vm4560, %v4535, %v4599
        %v4601 = vsel %vm4562, %v4536, %v4600
        %v4602 = vsel %vm4564, %v4537, %v4601
        %v4603 = vsel %vm4566, %v4538, %v4602
        %v4604 = vsel %vm4568, %v4539, %v4603
        %v4605 = vsel %vm4556, %v4541, %v4540
        %v4606 = vsel %vm4558, %v4542, %v4605
        %v4607 = vsel %vm4560, %v4543, %v4606
        %v4608 = vsel %vm4562, %v4544, %v4607
        %v4609 = vsel %vm4564, %v4545, %v4608
        %v4610 = vsel %vm4566, %v4546, %v4609
        %v4611 = vsel %vm4568, %v4547, %v4610
        %v4612 = vsel %vm4556, %v4549, %v4548
        %v4613 = vsel %vm4558, %v4550, %v4612
        %v4614 = vsel %vm4560, %v4551, %v4613
        %v4615 = vsel %vm4562, %v4552, %v4614
        %v4616 = vsel %vm4564, %v4553, %v4615
        %v4617 = vsel %vm4566, %v4554, %v4616
        %v4618 = vsel %vm4568, %v4555, %v4617
        %v4619 = vpack.c.b16 %v4569, %v4569
        %v4620 = vpack.c.b16 %v4576, %v4576
        %v4621 = vpack.c.b16 %v4583, %v4583
        %v4622 = vpack.c.b16 %v4590, %v4590
        %v4623 = vpack.c.b16 %v4597, %v4597
        %v4624 = vpack.c.b16 %v4604, %v4604
        %v4625 = vpack.c.b16 %v4611, %v4611
        %v4626 = vpack.c.b16 %v4618, %v4618
        %vm4635 = vcmask 60416
        %4636 = vst.msk [vmem:[%s163] sm:$0xf] %vm4635, %v4619
        %4637 = vst.msk [vmem:[%s163 + $0x4] sm:$0xf] %vm4635, %v4620
        %4638 = vst.msk [vmem:[%s163 + $0x8] sm:$0xf] %vm4635, %v4621
        %4639 = vst.msk [vmem:[%s163 + $0xc] sm:$0xf] %vm4635, %v4622
        %4640 = vst.msk [vmem:[%s163 + $0x10] sm:$0xf] %vm4635, %v4623
        %4641 = vst.msk [vmem:[%s163 + $0x14] sm:$0xf] %vm4635, %v4624
        %4642 = vst.msk [vmem:[%s163 + $0x18] sm:$0xf] %vm4635, %v4625
        %4643 = vst.msk [vmem:[%s163 + $0x1c] sm:$0xf] %vm4635, %v4626
        %s4644 = sand.u32 %s93, 1
        %s4645 = scalar_lea.sflag [#allocation3], %s4644
        %s4646 = sand.u32 %s93, 1
        %s4647 = smul.addr %s4646, 32
        %s4648 = scalar_lea.vmem [#allocation2], %s4647
        // Predicated region
        $region33: #{tpu_custom_call.1} parent=31 // pred_check
          %p4649 = pneg %p103
        $region34: #{tpu_custom_call.1} parent=31 // pred_check_branch
          %4651 = sbr.rel (%p4649) target = $region36
        $region35: #{tpu_custom_call.1} parent=31 // pred_region
          %s4653 = ssub.s32 512, 512
          %4654 = vsyncadd %s4645, %s4653
          %s4655 = smul.addr %s17, 8
          %s4656 = smul.addr %s4655, 64
          %s4657 = scalar_lea.hbm %s3, %s4656
          %s4658 = sshll.u32 %s4648, 4
          %s4659 = int_to_ptr.vmem [resolvable:$true] %s4658
          %4664 = dma.vmem_to_hbm [thread:$0]  %s4659, 512, %s4657, %s4645, 64, 64, 4
        $region36: #{tpu_custom_call.1} parent=31 // pred_fallthru
          _
      $region32: #{tpu_custom_call.1} parent=5 // pred_fallthru
        _
      %p4665 = scmp.le.s32.totalorder 2, %s12
      // Predicated region
      $region37: #{tpu_custom_call.1} parent=5 // pred_check
        %p4666 = pneg %p4665
      $region38: #{tpu_custom_call.1} parent=5 // pred_check_branch
        %4668 = sbr.rel (%p4666) target = $region40
      $region39: #{tpu_custom_call.1} parent=5 // pred_region
        %s4669 = ssub.s32 %s12, 2
        // Predicated region
        $region41: #{tpu_custom_call.1} parent=39 // pred_check
          %p4670 = pneg %p109
        $region42: #{tpu_custom_call.1} parent=39 // pred_check_branch
          %4672 = sbr.rel (%p4670) target = $region44
        $region43: #{tpu_custom_call.1} parent=39 // pred_region
          %s4673 = sand.u32 %s94, 1
          %s4674 = scalar_lea.sflag [#allocation3], %s4673
          %s4675 = sand.u32 %s94, 1
          %s4676 = smul.addr %s4675, 32
          %s4677 = scalar_lea.vmem [#allocation2], %s4676
          %4678 = dma.done %s4674, 512
        $region44: #{tpu_custom_call.1} parent=39 // pred_fallthru
          _
      $region40: #{tpu_custom_call.1} parent=5 // pred_fallthru
        _
    $region6: #{tpu_custom_call.1} parent=1 // loop_footer
      %s16 = sadd.s32 1, %s12
    $region7: #{tpu_custom_call.1} parent=1 // loop_footer_branch
      %11 = sbr.rel target = $region3
    $region8: #{tpu_custom_call.1} parent=1 // loop_exit
      _
    %4679 = vsyncpa [#allocation3], 1
    %s4680 = scalar_lea.sflag [#allocation3], 1
    %4681 = vsyncpa %s4680, 1

</llo_original>
